<compile_context>
chip_gen: v5e
topology: v5e:2x2
jax: 0.10.0
libtpu: 0.0.40
codegen_flags: <defaults>
</compile_context>

<pallas_src>
import functools
import math

import jax
import jax.numpy as jnp
from jax import lax
from jax.experimental import pallas as pl
from jax.experimental.pallas import tpu as pltpu


def _round_up(x, m):
    return (x + m - 1) // m * m


def _bigru_kernel(x_f_ref, x_b_ref, m_f_ref, m_b_ref,
                  wih_f_ref, whh_f_ref, bx_f_ref, bhn_f_ref,
                  wih_b_ref, whh_b_ref, bx_b_ref, bhn_b_ref,
                  out_f_ref, out_b_ref,
                  gi_f_scr, gi_b_scr, h_f_scr, h_b_scr):
    """One (batch-tile, time-chunk) grid step of the fused bi-GRU.

    x_*_ref:   (Tc, Bt, Din) bf16   forward chunk / time-reversed chunk of x
    m_*_ref:   (Tc, Bt, 1)   f32    validity mask (1.0 where t < len)
    wih_*:     (Din, 3Hp)    bf16   input->gates weights (gate-lane padded)
    whh_*:     (Hp, 3Hp)     bf16   hidden->gates weights
    bx_*:      (1, 3Hp)      f32    b_ih (+ b_hh for r,z) folded into gi
    bhn_*:     (1, Hp)       f32    b_hh of the n gate (lives inside r*(.))
    out_*_ref: (Tc, Bt, Hp)  f32    per-direction outputs (time-major)
    gi_*_scr:  (Tc, Bt, 3Hp) f32    hoisted input projections (scratch)
    h_*_scr:   (Bt, Hp)      f32    carried hidden state across time-chunks
    """
    Tc, Bt, Din = x_f_ref.shape
    Hp = h_f_scr.shape[1]

    # Reset carried hidden states at the start of each batch-tile's time sweep.
    @pl.when(pl.program_id(1) == 0)
    def _():
        h_f_scr[...] = jnp.zeros_like(h_f_scr)
        h_b_scr[...] = jnp.zeros_like(h_b_scr)

    # ---- Phase 1: hoisted input projections -- one MXU GEMM per direction
    #      with M = Tc*Bt, completely off the serial recurrent path.
    xf = x_f_ref[...].reshape(Tc * Bt, Din)                       # bf16
    gi_f_scr[...] = (jnp.dot(xf, wih_f_ref[...],
                             preferred_element_type=jnp.float32)
                     + bx_f_ref[...]).reshape(Tc, Bt, 3 * Hp)
    xb = x_b_ref[...].reshape(Tc * Bt, Din)
    gi_b_scr[...] = (jnp.dot(xb, wih_b_ref[...],
                             preferred_element_type=jnp.float32)
                     + bx_b_ref[...]).reshape(Tc, Bt, 3 * Hp)

    whh_f = whh_f_ref[...]        # resident across the chunk
    whh_b = whh_b_ref[...]
    bhn_f = bhn_f_ref[...]
    bhn_b = bhn_b_ref[...]

    def cell(gi, h, whh, bhn):
        # PyTorch GRU, gate order [r, z, n]:
        #   r = sig(gi_r + gh_r); z = sig(gi_z + gh_z)
        #   n = tanh(gi_n + r * (gh_n + b_hn)); h' = (1-z)*n + z*h
        gh = jnp.dot(h.astype(jnp.bfloat16), whh,
                     preferred_element_type=jnp.float32)          # (Bt, 3Hp)
        r = jax.nn.sigmoid(gi[:, 0:Hp] + gh[:, 0:Hp])
        z = jax.nn.sigmoid(gi[:, Hp:2 * Hp] + gh[:, Hp:2 * Hp])
        n = jnp.tanh(gi[:, 2 * Hp:3 * Hp] + r * (gh[:, 2 * Hp:3 * Hp] + bhn))
        return n + z * (h - n)                                    # == (1-z)n + zh

    # ---- Phase 2: fused forward/backward recurrence over this chunk.
    def step(tt, carry):
        h_f, h_b = carry
        # forward chain: local time tt (global t = chunk*Tc + tt)
        hf_new = cell(gi_f_scr[tt], h_f, whh_f, bhn_f)
        valid_f = m_f_ref[tt] > 0.0                               # (Bt, 1) bool
        out_f_ref[tt] = jnp.where(valid_f, hf_new, 0.0)           # 0 when padded
        h_f = jnp.where(valid_f, hf_new, h_f)                     # freeze past len
        # backward chain: local time Tc-1-tt of the time-reversed chunk
        ss = Tc - 1 - tt
        hb_new = cell(gi_b_scr[ss], h_b, whh_b, bhn_b)
        valid_b = m_b_ref[ss] > 0.0
        out_b_ref[ss] = jnp.where(valid_b, hb_new, 0.0)
        h_b = jnp.where(valid_b, hb_new, h_b)                     # stays 0 until t<len
        return (h_f, h_b)

    h_f, h_b = lax.fori_loop(0, Tc, step, (h_f_scr[...], h_b_scr[...]),
                             unroll=True)
    h_f_scr[...] = h_f
    h_b_scr[...] = h_b


def init_gru_params(key, d_in, d_out):
    """PyTorch nn.GRU(bidirectional=True) shaped params, U(-1/sqrt(H), 1/sqrt(H))."""
    H = d_out
    k = 1.0 / math.sqrt(H)
    keys = jax.random.split(key, 8)
    u = lambda kk, shape: jax.random.uniform(kk, shape, jnp.float32, -k, k)
    return {
        "w_ih_f": u(keys[0], (3 * H, d_in)), "w_hh_f": u(keys[1], (3 * H, H)),
        "b_ih_f": u(keys[2], (3 * H,)),      "b_hh_f": u(keys[3], (3 * H,)),
        "w_ih_b": u(keys[4], (3 * H, d_in)), "w_hh_b": u(keys[5], (3 * H, H)),
        "b_ih_b": u(keys[6], (3 * H,)),      "b_hh_b": u(keys[7], (3 * H,)),
    }


def _pack_direction(w_ih, w_hh, b_ih, b_hh, d_in, H, Hp):
    """Repack one direction into the lane-aligned kernel layout.

    Each gate is placed at lane offset g*Hp, so gate slices inside the kernel
    are full-width, 128-lane-aligned.  Zero padding keeps the math exact in the
    first H lanes of every gate.  b_ih (+ b_hh for r,z) is folded into the
    hoisted input-projection bias; b_hh of the n gate stays separate."""
    wih = jnp.zeros((d_in, 3 * Hp), jnp.float32)
    whh = jnp.zeros((Hp, 3 * Hp), jnp.float32)
    bx = jnp.zeros((1, 3 * Hp), jnp.float32)
    for g in range(3):
        wih = wih.at[:, g * Hp:g * Hp + H].set(w_ih[g * H:(g + 1) * H, :].T)
        whh = whh.at[:H, g * Hp:g * Hp + H].set(w_hh[g * H:(g + 1) * H, :].T)
        bg = b_ih[g * H:(g + 1) * H]
        if g < 2:
            bg = bg + b_hh[g * H:(g + 1) * H]
        bx = bx.at[0, g * Hp:g * Hp + H].set(bg)
    bhn = jnp.zeros((1, Hp), jnp.float32).at[0, :H].set(b_hh[2 * H:3 * H])
    return wih.astype(jnp.bfloat16), whh.astype(jnp.bfloat16), bx, bhn


@functools.partial(jax.jit, static_argnames=("n_to_1", "t_chunk"))
def rnn_forward(x, x_len, params, n_to_1=False, t_chunk=8):
    """Equivalent of RNN.forward (d_in=x.shape[-1], d_out=H, bi=True, 1 layer).

    x:     (B, T, d_in) float32, batch-first
    x_len: (B,) int32 valid lengths
    returns (B, T, 2*H) zero-padded output, or (B, 2*H) if n_to_1."""
    B, T, d_in = x.shape
    H = params["w_hh_f"].shape[1]
    Hp = _round_up(H, 128)                       # lane-aligned gate width
    b_tile = min(128, _round_up(B, 16))          # bf16 sublane tile / MXU M
    Bp = _round_up(B, b_tile)
    Tc = t_chunk
    Tp = _round_up(T, Tc)
    nB, nT = Bp // b_tile, Tp // Tc

    wih_f, whh_f, bx_f, bhn_f = _pack_direction(
        params["w_ih_f"], params["w_hh_f"], params["b_ih_f"], params["b_hh_f"],
        d_in, H, Hp)
    wih_b, whh_b, bx_b, bhn_b = _pack_direction(
        params["w_ih_b"], params["w_hh_b"], params["b_ih_b"], params["b_hh_b"],
        d_in, H, Hp)

    # Time-major, zero-padded, bf16 activations for the MXU.
    x_tm = jnp.transpose(x, (1, 0, 2)).astype(jnp.bfloat16)
    x_tm = jnp.pad(x_tm, ((0, Tp - T), (0, Bp - B), (0, 0)))
    lens = jnp.pad(x_len.astype(jnp.int32), (0, Bp - B))          # pad rows: len 0
    mask = (jnp.arange(Tp, dtype=jnp.int32)[:, None] < lens[None, :])
    mask = mask.astype(jnp.float32)[:, :, None]                   # (Tp, Bp, 1)

    fwd = lambda b, t: (t, b, 0)
    bwd = lambda b, t: (nT - 1 - t, b, 0)
    const2 = lambda b, t: (0, 0)

    out_f, out_b = pl.pallas_call(
        _bigru_kernel,
        out_shape=(jax.ShapeDtypeStruct((Tp, Bp, Hp), jnp.float32),
                   jax.ShapeDtypeStruct((Tp, Bp, Hp), jnp.float32)),
        grid_spec=pltpu.PrefetchScalarGridSpec(
            num_scalar_prefetch=0,
            grid=(nB, nT),
            in_specs=[
                pl.BlockSpec((Tc, b_tile, d_in), fwd),       # x, forward chunks
                pl.BlockSpec((Tc, b_tile, d_in), bwd),       # x, reversed chunks
                pl.BlockSpec((Tc, b_tile, 1), fwd),          # mask, forward
                pl.BlockSpec((Tc, b_tile, 1), bwd),          # mask, reversed
                pl.BlockSpec((d_in, 3 * Hp), const2),        # W_ih fwd
                pl.BlockSpec((Hp, 3 * Hp), const2),          # W_hh fwd
                pl.BlockSpec((1, 3 * Hp), const2),           # gi bias fwd
                pl.BlockSpec((1, Hp), const2),               # b_hn fwd
                pl.BlockSpec((d_in, 3 * Hp), const2),        # W_ih bwd
                pl.BlockSpec((Hp, 3 * Hp), const2),          # W_hh bwd
                pl.BlockSpec((1, 3 * Hp), const2),           # gi bias bwd
                pl.BlockSpec((1, Hp), const2),               # b_hn bwd
            ],
            out_specs=(pl.BlockSpec((Tc, b_tile, Hp), fwd),
                       pl.BlockSpec((Tc, b_tile, Hp), bwd)),
            scratch_shapes=[
                pltpu.VMEM((Tc, b_tile, 3 * Hp), jnp.float32),   # gi fwd
                pltpu.VMEM((Tc, b_tile, 3 * Hp), jnp.float32),   # gi bwd
                pltpu.VMEM((b_tile, Hp), jnp.float32),           # h fwd
                pltpu.VMEM((b_tile, Hp), jnp.float32),           # h bwd
            ]),
        compiler_params=pltpu.CompilerParams(
            dimension_semantics=("parallel", "arbitrary"),   # batch sharded on v7x
            vmem_limit_bytes=48 << 20),                      # < 64 MiB (v7x safe)
    )(x_tm, x_tm, mask, mask,
      wih_f, whh_f, bx_f, bhn_f,
      wih_b, whh_b, bx_b, bhn_b)

    out = jnp.concatenate([out_f[:T, :B, :H], out_b[:T, :B, :H]], axis=-1)
    out = jnp.transpose(out, (1, 0, 2))                          # (B, T, 2H)
    # TODO(synk): emit batch-first directly from the kernel to drop this
    # transpose (needs dynamic sublane-indexed stores or an in-kernel chunk
    # transpose).

    if n_to_1:
        # last_item_from_packed: packed output at t = len-1 for each sequence.
        idx = jnp.clip(x_len.astype(jnp.int32) - 1, 0, T - 1)
        return out[jnp.arange(B), idx]
    return out


def _gru_reference(x, x_len, params):
    """Plain-JAX f32 bidirectional GRU with packed-sequence masking (oracle)."""
    B, T, _ = x.shape
    H = params["w_hh_f"].shape[1]

    def run(w_ih, w_hh, b_ih, b_hh, reverse):
        def cell(h, xt):
            gi = xt @ w_ih.T + b_ih
            gh = h @ w_hh.T + b_hh
            r = jax.nn.sigmoid(gi[:, :H] + gh[:, :H])
            z = jax.nn.sigmoid(gi[:, H:2 * H] + gh[:, H:2 * H])
            n = jnp.tanh(gi[:, 2 * H:] + r * gh[:, 2 * H:])
            return (1.0 - z) * n + z * h
        h = jnp.zeros((B, H), jnp.float32)
        out = jnp.zeros((B, T, H), jnp.float32)
        steps = range(T - 1, -1, -1) if reverse else range(T)
        for t in steps:
            h_new = cell(h, x[:, t])
            m = (t < x_len)[:, None].astype(jnp.float32)
            out = out.at[:, t].set(m * h_new)
            h = m * h_new + (1.0 - m) * h
        return out

    out_f = run(params["w_ih_f"], params["w_hh_f"],
                params["b_ih_f"], params["b_hh_f"], reverse=False)
    out_b = run(params["w_ih_b"], params["w_hh_b"],
                params["b_ih_b"], params["b_hh_b"], reverse=True)
    return jnp.concatenate([out_f, out_b], axis=-1)


if __name__ == "__main__":
    B, T, D_IN, D_OUT = 2, 8, 16, 32

    key = jax.random.PRNGKey(0)
    k_x, k_p = jax.random.split(key)
    x = jax.random.normal(k_x, (B, T, D_IN), dtype=jnp.float32)
    x_len = jnp.array([8, 5], dtype=jnp.int32)                # variable lengths

    params = init_gru_params(k_p, D_IN, D_OUT)

    out = rnn_forward(x, x_len, params, n_to_1=False)         # (B, T, 2*D_OUT)
    out = jax.block_until_ready(out)
    out_last = rnn_forward(x, x_len, params, n_to_1=True)     # (B, 2*D_OUT)
    out_last = jax.block_until_ready(out_last)

    assert out.shape == (B, T, 2 * D_OUT)
    assert out_last.shape == (B, 2 * D_OUT)
    assert bool(jnp.all(jnp.isfinite(out)))
    # padded positions (t >= len) are exactly zero (pad_packed_sequence)
    assert bool(jnp.all(out[1, 5:, :] == 0.0))

    # numerics vs a plain f32 JAX reference (bf16 MXU inputs -> loose tol)
    ref = _gru_reference(x, x_len, params)
    err = float(jnp.max(jnp.abs(out - ref)))
    assert err < 5e-2, f"max abs err {err}"
    idx = jnp.clip(x_len - 1, 0, T - 1)
    ref_last = ref[jnp.arange(B), idx]
    assert float(jnp.max(jnp.abs(out_last - ref_last))) < 5e-2

    print("KERNEL_OK")
</pallas_src>

<mosaic_0001>
module attributes {stable_mosaic.version = 11 : i64} {
  func.func @_bigru_kernel(%arg0: i32, %arg1: i32, %arg2: memref<8x16x16xbf16, #tpu.memory_space<vmem>>, %arg3: memref<8x16x16xbf16, #tpu.memory_space<vmem>>, %arg4: memref<8x16x1xf32, #tpu.memory_space<vmem>>, %arg5: memref<8x16x1xf32, #tpu.memory_space<vmem>>, %arg6: memref<16x384xbf16, #tpu.memory_space<vmem>>, %arg7: memref<128x384xbf16, #tpu.memory_space<vmem>>, %arg8: memref<1x384xf32, #tpu.memory_space<vmem>>, %arg9: memref<1x128xf32, #tpu.memory_space<vmem>>, %arg10: memref<16x384xbf16, #tpu.memory_space<vmem>>, %arg11: memref<128x384xbf16, #tpu.memory_space<vmem>>, %arg12: memref<1x384xf32, #tpu.memory_space<vmem>>, %arg13: memref<1x128xf32, #tpu.memory_space<vmem>>, %arg14: memref<8x16x128xf32, #tpu.memory_space<vmem>>, %arg15: memref<8x16x128xf32, #tpu.memory_space<vmem>>, %arg16: memref<8x16x384xf32, #tpu.memory_space<vmem>>, %arg17: memref<8x16x384xf32, #tpu.memory_space<vmem>>, %arg18: memref<16x128xf32, #tpu.memory_space<vmem>>, %arg19: memref<16x128xf32, #tpu.memory_space<vmem>>) attributes {dimension_semantics = [#tpu.dimension_semantics<parallel>, #tpu.dimension_semantics<arbitrary>], iteration_bounds = array<i64: 1, 1>, scalar_prefetch = 0 : i64, scratch_operands = 4 : i64, tpu.core_type = #tpu.core_type<tc>, window_params = [{transform_indices = @transform_0, window_bounds = array<i64: 8, 16, 16>}, {transform_indices = @transform_1, window_bounds = array<i64: 8, 16, 16>}, {transform_indices = @transform_2, window_bounds = array<i64: 8, 16, 1>}, {transform_indices = @transform_3, window_bounds = array<i64: 8, 16, 1>}, {pipeline_mode = #tpu.pipeline_mode<synchronous>, transform_indices = @transform_4, window_bounds = array<i64: 16, 384>}, {pipeline_mode = #tpu.pipeline_mode<synchronous>, transform_indices = @transform_5, window_bounds = array<i64: 128, 384>}, {pipeline_mode = #tpu.pipeline_mode<synchronous>, transform_indices = @transform_6, window_bounds = array<i64: 1, 384>}, {pipeline_mode = #tpu.pipeline_mode<synchronous>, transform_indices = @transform_7, window_bounds = array<i64: 1, 128>}, {pipeline_mode = #tpu.pipeline_mode<synchronous>, transform_indices = @transform_8, window_bounds = array<i64: 16, 384>}, {pipeline_mode = #tpu.pipeline_mode<synchronous>, transform_indices = @transform_9, window_bounds = array<i64: 128, 384>}, {pipeline_mode = #tpu.pipeline_mode<synchronous>, transform_indices = @transform_10, window_bounds = array<i64: 1, 384>}, {pipeline_mode = #tpu.pipeline_mode<synchronous>, transform_indices = @transform_11, window_bounds = array<i64: 1, 128>}, {transform_indices = @transform_12, window_bounds = array<i64: 8, 16, 128>}, {transform_indices = @transform_13, window_bounds = array<i64: 8, 16, 128>}]} {
    %c0_i32 = arith.constant 0 : i32
    %0 = arith.cmpi eq, %arg1, %c0_i32 : i32
    %1 = arith.extui %0 : i1 to i32
    %c0_i32_0 = arith.constant 0 : i32
    %2 = arith.cmpi ne, %1, %c0_i32_0 : i32
    scf.if %2 {
      %cst_222 = arith.constant 0.000000e+00 : f32
      %789 = vector.broadcast %cst_222 : f32 to vector<16x128xf32>
      %c0_223 = arith.constant 0 : index
      %c0_224 = arith.constant 0 : index
      %790 = vector.load %arg18[%c0_223, %c0_224] : memref<16x128xf32, #tpu.memory_space<vmem>>, vector<16x128xf32>
      tpu.vector_store %arg18[%c0_223, %c0_224], %789 {strides = array<i32>} : memref<16x128xf32, #tpu.memory_space<vmem>>, vector<16x128xf32>,
      %cst_225 = arith.constant 0.000000e+00 : f32
      %791 = vector.broadcast %cst_225 : f32 to vector<16x128xf32>
      %c0_226 = arith.constant 0 : index
      %c0_227 = arith.constant 0 : index
      %792 = vector.load %arg19[%c0_226, %c0_227] : memref<16x128xf32, #tpu.memory_space<vmem>>, vector<16x128xf32>
      tpu.vector_store %arg19[%c0_226, %c0_227], %791 {strides = array<i32>} : memref<16x128xf32, #tpu.memory_space<vmem>>, vector<16x128xf32>,
    } else {
    }
    %c0 = arith.constant 0 : index
    %c0_1 = arith.constant 0 : index
    %c0_2 = arith.constant 0 : index
    %3 = vector.load %arg2[%c0, %c0_1, %c0_2] : memref<8x16x16xbf16, #tpu.memory_space<vmem>>, vector<8x16x16xbf16>
    %4 = vector.shape_cast %3 : vector<8x16x16xbf16> to vector<128x16xbf16>
    %c0_3 = arith.constant 0 : index
    %c0_4 = arith.constant 0 : index
    %5 = vector.load %arg6[%c0_3, %c0_4] : memref<16x384xbf16, #tpu.memory_space<vmem>>, vector<16x384xbf16>
    %cst = arith.constant dense<0.000000e+00> : vector<128x384xf32>
    %6 = tpu.matmul %4, %5, %cst {dimension_numbers = #tpu.dot_dimension_numbers<[1], [0], [0], [1], [0, 0, 1, 1], [], []>} : vector<128x16xbf16>, vector<16x384xbf16>, vector<128x384xf32> -> vector<128x384xf32>
    %c0_5 = arith.constant 0 : index
    %c0_6 = arith.constant 0 : index
    %7 = vector.load %arg8[%c0_5, %c0_6] : memref<1x384xf32, #tpu.memory_space<vmem>>, vector<1x384xf32>
    %8 = vector.broadcast %7 : vector<1x384xf32> to vector<128x384xf32>
    %9 = arith.addf %6, %8 : vector<128x384xf32>
    %10 = vector.shape_cast %9 : vector<128x384xf32> to vector<8x16x384xf32>
    %c0_7 = arith.constant 0 : index
    %c0_8 = arith.constant 0 : index
    %c0_9 = arith.constant 0 : index
    %11 = vector.load %arg16[%c0_7, %c0_8, %c0_9] : memref<8x16x384xf32, #tpu.memory_space<vmem>>, vector<8x16x384xf32>
    tpu.vector_store %arg16[%c0_7, %c0_8, %c0_9], %10 {strides = array<i32>} : memref<8x16x384xf32, #tpu.memory_space<vmem>>, vector<8x16x384xf32>,
    %c0_10 = arith.constant 0 : index
    %c0_11 = arith.constant 0 : index
    %c0_12 = arith.constant 0 : index
    %12 = vector.load %arg3[%c0_10, %c0_11, %c0_12] : memref<8x16x16xbf16, #tpu.memory_space<vmem>>, vector<8x16x16xbf16>
    %13 = vector.shape_cast %12 : vector<8x16x16xbf16> to vector<128x16xbf16>
    %c0_13 = arith.constant 0 : index
    %c0_14 = arith.constant 0 : index
    %14 = vector.load %arg10[%c0_13, %c0_14] : memref<16x384xbf16, #tpu.memory_space<vmem>>, vector<16x384xbf16>
    %cst_15 = arith.constant dense<0.000000e+00> : vector<128x384xf32>
    %15 = tpu.matmul %13, %14, %cst_15 {dimension_numbers = #tpu.dot_dimension_numbers<[1], [0], [0], [1], [0, 0, 1, 1], [], []>} : vector<128x16xbf16>, vector<16x384xbf16>, vector<128x384xf32> -> vector<128x384xf32>
    %c0_16 = arith.constant 0 : index
    %c0_17 = arith.constant 0 : index
    %16 = vector.load %arg12[%c0_16, %c0_17] : memref<1x384xf32, #tpu.memory_space<vmem>>, vector<1x384xf32>
    %17 = vector.broadcast %16 : vector<1x384xf32> to vector<128x384xf32>
    %18 = arith.addf %15, %17 : vector<128x384xf32>
    %19 = vector.shape_cast %18 : vector<128x384xf32> to vector<8x16x384xf32>
    %c0_18 = arith.constant 0 : index
    %c0_19 = arith.constant 0 : index
    %c0_20 = arith.constant 0 : index
    %20 = vector.load %arg17[%c0_18, %c0_19, %c0_20] : memref<8x16x384xf32, #tpu.memory_space<vmem>>, vector<8x16x384xf32>
    tpu.vector_store %arg17[%c0_18, %c0_19, %c0_20], %19 {strides = array<i32>} : memref<8x16x384xf32, #tpu.memory_space<vmem>>, vector<8x16x384xf32>,
    %c0_21 = arith.constant 0 : index
    %c0_22 = arith.constant 0 : index
    %21 = vector.load %arg7[%c0_21, %c0_22] : memref<128x384xbf16, #tpu.memory_space<vmem>>, vector<128x384xbf16>
    %c0_23 = arith.constant 0 : index
    %c0_24 = arith.constant 0 : index
    %22 = vector.load %arg11[%c0_23, %c0_24] : memref<128x384xbf16, #tpu.memory_space<vmem>>, vector<128x384xbf16>
    %c0_25 = arith.constant 0 : index
    %c0_26 = arith.constant 0 : index
    %23 = vector.load %arg9[%c0_25, %c0_26] : memref<1x128xf32, #tpu.memory_space<vmem>>, vector<1x128xf32>
    %c0_27 = arith.constant 0 : index
    %c0_28 = arith.constant 0 : index
    %24 = vector.load %arg13[%c0_27, %c0_28] : memref<1x128xf32, #tpu.memory_space<vmem>>, vector<1x128xf32>
    %c0_29 = arith.constant 0 : index
    %c0_30 = arith.constant 0 : index
    %25 = vector.load %arg18[%c0_29, %c0_30] : memref<16x128xf32, #tpu.memory_space<vmem>>, vector<16x128xf32>
    %c0_31 = arith.constant 0 : index
    %c0_32 = arith.constant 0 : index
    %26 = vector.load %arg19[%c0_31, %c0_32] : memref<16x128xf32, #tpu.memory_space<vmem>>, vector<16x128xf32>
    %c0_i32_33 = arith.constant 0 : i32
    %27 = arith.index_cast %c0_i32_33 : i32 to index
    %c0_34 = arith.constant 0 : index
    %c0_35 = arith.constant 0 : index
    %28 = vector.load %arg16[%27, %c0_34, %c0_35] : memref<8x16x384xf32, #tpu.memory_space<vmem>>, vector<1x16x384xf32>
    %29 = vector.shape_cast %28 : vector<1x16x384xf32> to vector<16x384xf32>
    %30 = arith.truncf %25 : vector<16x128xf32> to vector<16x128xbf16>
    %cst_36 = arith.constant dense<0.000000e+00> : vector<16x384xf32>
    %31 = tpu.matmul %30, %21, %cst_36 {dimension_numbers = #tpu.dot_dimension_numbers<[1], [0], [0], [1], [0, 0, 1, 1], [], []>} : vector<16x128xbf16>, vector<128x384xbf16>, vector<16x384xf32> -> vector<16x384xf32>
    %32 = vector.extract_strided_slice %29 {offsets = [0, 0], sizes = [16, 128], strides = [1, 1]} : vector<16x384xf32> to vector<16x128xf32>
    %33 = vector.extract_strided_slice %31 {offsets = [0, 0], sizes = [16, 128], strides = [1, 1]} : vector<16x384xf32> to vector<16x128xf32>
    %34 = arith.addf %32, %33 : vector<16x128xf32>
    %35 = arith.negf %34 : vector<16x128xf32>
    %36 = math.exp %35 : vector<16x128xf32>
    %cst_37 = arith.constant 1.000000e+00 : f32
    %37 = vector.broadcast %cst_37 : f32 to vector<16x128xf32>
    %38 = arith.addf %37, %36 : vector<16x128xf32>
    %39 = arith.divf %37, %38 : vector<16x128xf32>
    %40 = vector.extract_strided_slice %29 {offsets = [0, 128], sizes = [16, 128], strides = [1, 1]} : vector<16x384xf32> to vector<16x128xf32>
    %41 = vector.extract_strided_slice %31 {offsets = [0, 128], sizes = [16, 128], strides = [1, 1]} : vector<16x384xf32> to vector<16x128xf32>
    %42 = arith.addf %40, %41 : vector<16x128xf32>
    %43 = arith.negf %42 : vector<16x128xf32>
    %44 = math.exp %43 : vector<16x128xf32>
    %cst_38 = arith.constant 1.000000e+00 : f32
    %45 = vector.broadcast %cst_38 : f32 to vector<16x128xf32>
    %46 = arith.addf %45, %44 : vector<16x128xf32>
    %47 = arith.divf %45, %46 : vector<16x128xf32>
    %48 = vector.extract_strided_slice %29 {offsets = [0, 256], sizes = [16, 128], strides = [1, 1]} : vector<16x384xf32> to vector<16x128xf32>
    %49 = vector.extract_strided_slice %31 {offsets = [0, 256], sizes = [16, 128], strides = [1, 1]} : vector<16x384xf32> to vector<16x128xf32>
    %50 = vector.broadcast %23 : vector<1x128xf32> to vector<16x128xf32>
    %51 = arith.addf %49, %50 : vector<16x128xf32>
    %52 = arith.mulf %39, %51 : vector<16x128xf32>
    %53 = arith.addf %48, %52 : vector<16x128xf32>
    %54 = math.tanh %53 : vector<16x128xf32>
    %55 = arith.subf %25, %54 : vector<16x128xf32>
    %56 = arith.mulf %47, %55 : vector<16x128xf32>
    %57 = arith.addf %54, %56 : vector<16x128xf32>
    %58 = arith.index_cast %c0_i32_33 : i32 to index
    %c0_39 = arith.constant 0 : index
    %c0_40 = arith.constant 0 : index
    %59 = vector.load %arg4[%58, %c0_39, %c0_40] : memref<8x16x1xf32, #tpu.memory_space<vmem>>, vector<1x16x1xf32>
    %60 = vector.shape_cast %59 : vector<1x16x1xf32> to vector<16x1xf32>
    %cst_41 = arith.constant 0.000000e+00 : f32
    %61 = vector.broadcast %cst_41 : f32 to vector<16x1xf32>
    %62 = arith.cmpf ogt, %60, %61 : vector<16x1xf32>
    %cst_42 = arith.constant 0.000000e+00 : f32
    %63 = vector.shape_cast %62 : vector<16x1xi1> to vector<16x1xi1>
    %64 = vector.broadcast %63 : vector<16x1xi1> to vector<16x128xi1>
    %65 = vector.broadcast %cst_42 : f32 to vector<16x128xf32>
    %66 = arith.select %64, %57, %65 : vector<16x128xi1>, vector<16x128xf32>
    %67 = arith.index_cast %c0_i32_33 : i32 to index
    %c0_43 = arith.constant 0 : index
    %c0_44 = arith.constant 0 : index
    %68 = vector.load %arg14[%67, %c0_43, %c0_44] : memref<8x16x128xf32, #tpu.memory_space<vmem>>, vector<1x16x128xf32>
    %69 = vector.shape_cast %68 : vector<1x16x128xf32> to vector<16x128xf32>
    %70 = vector.shape_cast %66 : vector<16x128xf32> to vector<1x16x128xf32>
    tpu.vector_store %arg14[%67, %c0_43, %c0_44], %70 {strides = array<i32>} : memref<8x16x128xf32, #tpu.memory_space<vmem>>, vector<1x16x128xf32>,
    %71 = vector.shape_cast %62 : vector<16x1xi1> to vector<16x1xi1>
    %72 = vector.broadcast %71 : vector<16x1xi1> to vector<16x128xi1>
    %73 = arith.select %72, %57, %25 : vector<16x128xi1>, vector<16x128xf32>
    %c7_i32 = arith.constant 7 : i32
    %74 = arith.subi %c7_i32, %c0_i32_33 : i32
    %75 = arith.index_cast %74 : i32 to index
    %c0_45 = arith.constant 0 : index
    %c0_46 = arith.constant 0 : index
    %76 = vector.load %arg17[%75, %c0_45, %c0_46] : memref<8x16x384xf32, #tpu.memory_space<vmem>>, vector<1x16x384xf32>
    %77 = vector.shape_cast %76 : vector<1x16x384xf32> to vector<16x384xf32>
    %78 = arith.truncf %26 : vector<16x128xf32> to vector<16x128xbf16>
    %cst_47 = arith.constant dense<0.000000e+00> : vector<16x384xf32>
    %79 = tpu.matmul %78, %22, %cst_47 {dimension_numbers = #tpu.dot_dimension_numbers<[1], [0], [0], [1], [0, 0, 1, 1], [], []>} : vector<16x128xbf16>, vector<128x384xbf16>, vector<16x384xf32> -> vector<16x384xf32>
    %80 = vector.extract_strided_slice %77 {offsets = [0, 0], sizes = [16, 128], strides = [1, 1]} : vector<16x384xf32> to vector<16x128xf32>
    %81 = vector.extract_strided_slice %79 {offsets = [0, 0], sizes = [16, 128], strides = [1, 1]} : vector<16x384xf32> to vector<16x128xf32>
    %82 = arith.addf %80, %81 : vector<16x128xf32>
    %83 = arith.negf %82 : vector<16x128xf32>
    %84 = math.exp %83 : vector<16x128xf32>
    %cst_48 = arith.constant 1.000000e+00 : f32
    %85 = vector.broadcast %cst_48 : f32 to vector<16x128xf32>
    %86 = arith.addf %85, %84 : vector<16x128xf32>
    %87 = arith.divf %85, %86 : vector<16x128xf32>
    %88 = vector.extract_strided_slice %77 {offsets = [0, 128], sizes = [16, 128], strides = [1, 1]} : vector<16x384xf32> to vector<16x128xf32>
    %89 = vector.extract_strided_slice %79 {offsets = [0, 128], sizes = [16, 128], strides = [1, 1]} : vector<16x384xf32> to vector<16x128xf32>
    %90 = arith.addf %88, %89 : vector<16x128xf32>
    %91 = arith.negf %90 : vector<16x128xf32>
    %92 = math.exp %91 : vector<16x128xf32>
    %cst_49 = arith.constant 1.000000e+00 : f32
    %93 = vector.broadcast %cst_49 : f32 to vector<16x128xf32>
    %94 = arith.addf %93, %92 : vector<16x128xf32>
    %95 = arith.divf %93, %94 : vector<16x128xf32>
    %96 = vector.extract_strided_slice %77 {offsets = [0, 256], sizes = [16, 128], strides = [1, 1]} : vector<16x384xf32> to vector<16x128xf32>
    %97 = vector.extract_strided_slice %79 {offsets = [0, 256], sizes = [16, 128], strides = [1, 1]} : vector<16x384xf32> to vector<16x128xf32>
    %98 = vector.broadcast %24 : vector<1x128xf32> to vector<16x128xf32>
    %99 = arith.addf %97, %98 : vector<16x128xf32>
    %100 = arith.mulf %87, %99 : vector<16x128xf32>
    %101 = arith.addf %96, %100 : vector<16x128xf32>
    %102 = math.tanh %101 : vector<16x128xf32>
    %103 = arith.subf %26, %102 : vector<16x128xf32>
    %104 = arith.mulf %95, %103 : vector<16x128xf32>
    %105 = arith.addf %102, %104 : vector<16x128xf32>
    %106 = arith.index_cast %74 : i32 to index
    %c0_50 = arith.constant 0 : index
    %c0_51 = arith.constant 0 : index
    %107 = vector.load %arg5[%106, %c0_50, %c0_51] : memref<8x16x1xf32, #tpu.memory_space<vmem>>, vector<1x16x1xf32>
    %108 = vector.shape_cast %107 : vector<1x16x1xf32> to vector<16x1xf32>
    %cst_52 = arith.constant 0.000000e+00 : f32
    %109 = vector.broadcast %cst_52 : f32 to vector<16x1xf32>
    %110 = arith.cmpf ogt, %108, %109 : vector<16x1xf32>
    %cst_53 = arith.constant 0.000000e+00 : f32
    %111 = vector.shape_cast %110 : vector<16x1xi1> to vector<16x1xi1>
    %112 = vector.broadcast %111 : vector<16x1xi1> to vector<16x128xi1>
    %113 = vector.broadcast %cst_53 : f32 to vector<16x128xf32>
    %114 = arith.select %112, %105, %113 : vector<16x128xi1>, vector<16x128xf32>
    %115 = arith.index_cast %74 : i32 to index
    %c0_54 = arith.constant 0 : index
    %c0_55 = arith.constant 0 : index
    %116 = vector.load %arg15[%115, %c0_54, %c0_55] : memref<8x16x128xf32, #tpu.memory_space<vmem>>, vector<1x16x128xf32>
    %117 = vector.shape_cast %116 : vector<1x16x128xf32> to vector<16x128xf32>
    %118 = vector.shape_cast %114 : vector<16x128xf32> to vector<1x16x128xf32>
    tpu.vector_store %arg15[%115, %c0_54, %c0_55], %118 {strides = array<i32>} : memref<8x16x128xf32, #tpu.memory_space<vmem>>, vector<1x16x128xf32>,
    %119 = vector.shape_cast %110 : vector<16x1xi1> to vector<16x1xi1>
    %120 = vector.broadcast %119 : vector<16x1xi1> to vector<16x128xi1>
    %121 = arith.select %120, %105, %26 : vector<16x128xi1>, vector<16x128xf32>
    %c1_i32 = arith.constant 1 : i32
    %122 = arith.index_cast %c1_i32 : i32 to index
    %c0_56 = arith.constant 0 : index
    %c0_57 = arith.constant 0 : index
    %123 = vector.load %arg16[%122, %c0_56, %c0_57] : memref<8x16x384xf32, #tpu.memory_space<vmem>>, vector<1x16x384xf32>
    %124 = vector.shape_cast %123 : vector<1x16x384xf32> to vector<16x384xf32>
    %125 = arith.truncf %73 : vector<16x128xf32> to vector<16x128xbf16>
    %cst_58 = arith.constant dense<0.000000e+00> : vector<16x384xf32>
    %126 = tpu.matmul %125, %21, %cst_58 {dimension_numbers = #tpu.dot_dimension_numbers<[1], [0], [0], [1], [0, 0, 1, 1], [], []>} : vector<16x128xbf16>, vector<128x384xbf16>, vector<16x384xf32> -> vector<16x384xf32>
    %127 = vector.extract_strided_slice %124 {offsets = [0, 0], sizes = [16, 128], strides = [1, 1]} : vector<16x384xf32> to vector<16x128xf32>
    %128 = vector.extract_strided_slice %126 {offsets = [0, 0], sizes = [16, 128], strides = [1, 1]} : vector<16x384xf32> to vector<16x128xf32>
    %129 = arith.addf %127, %128 : vector<16x128xf32>
    %130 = arith.negf %129 : vector<16x128xf32>
    %131 = math.exp %130 : vector<16x128xf32>
    %cst_59 = arith.constant 1.000000e+00 : f32
    %132 = vector.broadcast %cst_59 : f32 to vector<16x128xf32>
    %133 = arith.addf %132, %131 : vector<16x128xf32>
    %134 = arith.divf %132, %133 : vector<16x128xf32>
    %135 = vector.extract_strided_slice %124 {offsets = [0, 128], sizes = [16, 128], strides = [1, 1]} : vector<16x384xf32> to vector<16x128xf32>
    %136 = vector.extract_strided_slice %126 {offsets = [0, 128], sizes = [16, 128], strides = [1, 1]} : vector<16x384xf32> to vector<16x128xf32>
    %137 = arith.addf %135, %136 : vector<16x128xf32>
    %138 = arith.negf %137 : vector<16x128xf32>
    %139 = math.exp %138 : vector<16x128xf32>
    %cst_60 = arith.constant 1.000000e+00 : f32
    %140 = vector.broadcast %cst_60 : f32 to vector<16x128xf32>
    %141 = arith.addf %140, %139 : vector<16x128xf32>
    %142 = arith.divf %140, %141 : vector<16x128xf32>
    %143 = vector.extract_strided_slice %124 {offsets = [0, 256], sizes = [16, 128], strides = [1, 1]} : vector<16x384xf32> to vector<16x128xf32>
    %144 = vector.extract_strided_slice %126 {offsets = [0, 256], sizes = [16, 128], strides = [1, 1]} : vector<16x384xf32> to vector<16x128xf32>
    %145 = vector.broadcast %23 : vector<1x128xf32> to vector<16x128xf32>
    %146 = arith.addf %144, %145 : vector<16x128xf32>
    %147 = arith.mulf %134, %146 : vector<16x128xf32>
    %148 = arith.addf %143, %147 : vector<16x128xf32>
    %149 = math.tanh %148 : vector<16x128xf32>
    %150 = arith.subf %73, %149 : vector<16x128xf32>
    %151 = arith.mulf %142, %150 : vector<16x128xf32>
    %152 = arith.addf %149, %151 : vector<16x128xf32>
    %153 = arith.index_cast %c1_i32 : i32 to index
    %c0_61 = arith.constant 0 : index
    %c0_62 = arith.constant 0 : index
    %154 = vector.load %arg4[%153, %c0_61, %c0_62] : memref<8x16x1xf32, #tpu.memory_space<vmem>>, vector<1x16x1xf32>
    %155 = vector.shape_cast %154 : vector<1x16x1xf32> to vector<16x1xf32>
    %cst_63 = arith.constant 0.000000e+00 : f32
    %156 = vector.broadcast %cst_63 : f32 to vector<16x1xf32>
    %157 = arith.cmpf ogt, %155, %156 : vector<16x1xf32>
    %cst_64 = arith.constant 0.000000e+00 : f32
    %158 = vector.shape_cast %157 : vector<16x1xi1> to vector<16x1xi1>
    %159 = vector.broadcast %158 : vector<16x1xi1> to vector<16x128xi1>
    %160 = vector.broadcast %cst_64 : f32 to vector<16x128xf32>
    %161 = arith.select %159, %152, %160 : vector<16x128xi1>, vector<16x128xf32>
    %162 = arith.index_cast %c1_i32 : i32 to index
    %c0_65 = arith.constant 0 : index
    %c0_66 = arith.constant 0 : index
    %163 = vector.load %arg14[%162, %c0_65, %c0_66] : memref<8x16x128xf32, #tpu.memory_space<vmem>>, vector<1x16x128xf32>
    %164 = vector.shape_cast %163 : vector<1x16x128xf32> to vector<16x128xf32>
    %165 = vector.shape_cast %161 : vector<16x128xf32> to vector<1x16x128xf32>
    tpu.vector_store %arg14[%162, %c0_65, %c0_66], %165 {strides = array<i32>} : memref<8x16x128xf32, #tpu.memory_space<vmem>>, vector<1x16x128xf32>,
    %166 = vector.shape_cast %157 : vector<16x1xi1> to vector<16x1xi1>
    %167 = vector.broadcast %166 : vector<16x1xi1> to vector<16x128xi1>
    %168 = arith.select %167, %152, %73 : vector<16x128xi1>, vector<16x128xf32>
    %c7_i32_67 = arith.constant 7 : i32
    %169 = arith.subi %c7_i32_67, %c1_i32 : i32
    %170 = arith.index_cast %169 : i32 to index
    %c0_68 = arith.constant 0 : index
    %c0_69 = arith.constant 0 : index
    %171 = vector.load %arg17[%170, %c0_68, %c0_69] : memref<8x16x384xf32, #tpu.memory_space<vmem>>, vector<1x16x384xf32>
    %172 = vector.shape_cast %171 : vector<1x16x384xf32> to vector<16x384xf32>
    %173 = arith.truncf %121 : vector<16x128xf32> to vector<16x128xbf16>
    %cst_70 = arith.constant dense<0.000000e+00> : vector<16x384xf32>
    %174 = tpu.matmul %173, %22, %cst_70 {dimension_numbers = #tpu.dot_dimension_numbers<[1], [0], [0], [1], [0, 0, 1, 1], [], []>} : vector<16x128xbf16>, vector<128x384xbf16>, vector<16x384xf32> -> vector<16x384xf32>
    %175 = vector.extract_strided_slice %172 {offsets = [0, 0], sizes = [16, 128], strides = [1, 1]} : vector<16x384xf32> to vector<16x128xf32>
    %176 = vector.extract_strided_slice %174 {offsets = [0, 0], sizes = [16, 128], strides = [1, 1]} : vector<16x384xf32> to vector<16x128xf32>
    %177 = arith.addf %175, %176 : vector<16x128xf32>
    %178 = arith.negf %177 : vector<16x128xf32>
    %179 = math.exp %178 : vector<16x128xf32>
    %cst_71 = arith.constant 1.000000e+00 : f32
    %180 = vector.broadcast %cst_71 : f32 to vector<16x128xf32>
    %181 = arith.addf %180, %179 : vector<16x128xf32>
    %182 = arith.divf %180, %181 : vector<16x128xf32>
    %183 = vector.extract_strided_slice %172 {offsets = [0, 128], sizes = [16, 128], strides = [1, 1]} : vector<16x384xf32> to vector<16x128xf32>
    %184 = vector.extract_strided_slice %174 {offsets = [0, 128], sizes = [16, 128], strides = [1, 1]} : vector<16x384xf32> to vector<16x128xf32>
    %185 = arith.addf %183, %184 : vector<16x128xf32>
    %186 = arith.negf %185 : vector<16x128xf32>
    %187 = math.exp %186 : vector<16x128xf32>
    %cst_72 = arith.constant 1.000000e+00 : f32
    %188 = vector.broadcast %cst_72 : f32 to vector<16x128xf32>
    %189 = arith.addf %188, %187 : vector<16x128xf32>
    %190 = arith.divf %188, %189 : vector<16x128xf32>
    %191 = vector.extract_strided_slice %172 {offsets = [0, 256], sizes = [16, 128], strides = [1, 1]} : vector<16x384xf32> to vector<16x128xf32>
    %192 = vector.extract_strided_slice %174 {offsets = [0, 256], sizes = [16, 128], strides = [1, 1]} : vector<16x384xf32> to vector<16x128xf32>
    %193 = vector.broadcast %24 : vector<1x128xf32> to vector<16x128xf32>
    %194 = arith.addf %192, %193 : vector<16x128xf32>
    %195 = arith.mulf %182, %194 : vector<16x128xf32>
    %196 = arith.addf %191, %195 : vector<16x128xf32>
    %197 = math.tanh %196 : vector<16x128xf32>
    %198 = arith.subf %121, %197 : vector<16x128xf32>
    %199 = arith.mulf %190, %198 : vector<16x128xf32>
    %200 = arith.addf %197, %199 : vector<16x128xf32>
    %201 = arith.index_cast %169 : i32 to index
    %c0_73 = arith.constant 0 : index
    %c0_74 = arith.constant 0 : index
    %202 = vector.load %arg5[%201, %c0_73, %c0_74] : memref<8x16x1xf32, #tpu.memory_space<vmem>>, vector<1x16x1xf32>
    %203 = vector.shape_cast %202 : vector<1x16x1xf32> to vector<16x1xf32>
    %cst_75 = arith.constant 0.000000e+00 : f32
    %204 = vector.broadcast %cst_75 : f32 to vector<16x1xf32>
    %205 = arith.cmpf ogt, %203, %204 : vector<16x1xf32>
    %cst_76 = arith.constant 0.000000e+00 : f32
    %206 = vector.shape_cast %205 : vector<16x1xi1> to vector<16x1xi1>
    %207 = vector.broadcast %206 : vector<16x1xi1> to vector<16x128xi1>
    %208 = vector.broadcast %cst_76 : f32 to vector<16x128xf32>
    %209 = arith.select %207, %200, %208 : vector<16x128xi1>, vector<16x128xf32>
    %210 = arith.index_cast %169 : i32 to index
    %c0_77 = arith.constant 0 : index
    %c0_78 = arith.constant 0 : index
    %211 = vector.load %arg15[%210, %c0_77, %c0_78] : memref<8x16x128xf32, #tpu.memory_space<vmem>>, vector<1x16x128xf32>
    %212 = vector.shape_cast %211 : vector<1x16x128xf32> to vector<16x128xf32>
    %213 = vector.shape_cast %209 : vector<16x128xf32> to vector<1x16x128xf32>
    tpu.vector_store %arg15[%210, %c0_77, %c0_78], %213 {strides = array<i32>} : memref<8x16x128xf32, #tpu.memory_space<vmem>>, vector<1x16x128xf32>,
    %214 = vector.shape_cast %205 : vector<16x1xi1> to vector<16x1xi1>
    %215 = vector.broadcast %214 : vector<16x1xi1> to vector<16x128xi1>
    %216 = arith.select %215, %200, %121 : vector<16x128xi1>, vector<16x128xf32>
    %c2_i32 = arith.constant 2 : i32
    %217 = arith.index_cast %c2_i32 : i32 to index
    %c0_79 = arith.constant 0 : index
    %c0_80 = arith.constant 0 : index
    %218 = vector.load %arg16[%217, %c0_79, %c0_80] : memref<8x16x384xf32, #tpu.memory_space<vmem>>, vector<1x16x384xf32>
    %219 = vector.shape_cast %218 : vector<1x16x384xf32> to vector<16x384xf32>
    %220 = arith.truncf %168 : vector<16x128xf32> to vector<16x128xbf16>
    %cst_81 = arith.constant dense<0.000000e+00> : vector<16x384xf32>
    %221 = tpu.matmul %220, %21, %cst_81 {dimension_numbers = #tpu.dot_dimension_numbers<[1], [0], [0], [1], [0, 0, 1, 1], [], []>} : vector<16x128xbf16>, vector<128x384xbf16>, vector<16x384xf32> -> vector<16x384xf32>
    %222 = vector.extract_strided_slice %219 {offsets = [0, 0], sizes = [16, 128], strides = [1, 1]} : vector<16x384xf32> to vector<16x128xf32>
    %223 = vector.extract_strided_slice %221 {offsets = [0, 0], sizes = [16, 128], strides = [1, 1]} : vector<16x384xf32> to vector<16x128xf32>
    %224 = arith.addf %222, %223 : vector<16x128xf32>
    %225 = arith.negf %224 : vector<16x128xf32>
    %226 = math.exp %225 : vector<16x128xf32>
    %cst_82 = arith.constant 1.000000e+00 : f32
    %227 = vector.broadcast %cst_82 : f32 to vector<16x128xf32>
    %228 = arith.addf %227, %226 : vector<16x128xf32>
    %229 = arith.divf %227, %228 : vector<16x128xf32>
    %230 = vector.extract_strided_slice %219 {offsets = [0, 128], sizes = [16, 128], strides = [1, 1]} : vector<16x384xf32> to vector<16x128xf32>
    %231 = vector.extract_strided_slice %221 {offsets = [0, 128], sizes = [16, 128], strides = [1, 1]} : vector<16x384xf32> to vector<16x128xf32>
    %232 = arith.addf %230, %231 : vector<16x128xf32>
    %233 = arith.negf %232 : vector<16x128xf32>
    %234 = math.exp %233 : vector<16x128xf32>
    %cst_83 = arith.constant 1.000000e+00 : f32
    %235 = vector.broadcast %cst_83 : f32 to vector<16x128xf32>
    %236 = arith.addf %235, %234 : vector<16x128xf32>
    %237 = arith.divf %235, %236 : vector<16x128xf32>
    %238 = vector.extract_strided_slice %219 {offsets = [0, 256], sizes = [16, 128], strides = [1, 1]} : vector<16x384xf32> to vector<16x128xf32>
    %239 = vector.extract_strided_slice %221 {offsets = [0, 256], sizes = [16, 128], strides = [1, 1]} : vector<16x384xf32> to vector<16x128xf32>
    %240 = vector.broadcast %23 : vector<1x128xf32> to vector<16x128xf32>
    %241 = arith.addf %239, %240 : vector<16x128xf32>
    %242 = arith.mulf %229, %241 : vector<16x128xf32>
    %243 = arith.addf %238, %242 : vector<16x128xf32>
    %244 = math.tanh %243 : vector<16x128xf32>
    %245 = arith.subf %168, %244 : vector<16x128xf32>
    %246 = arith.mulf %237, %245 : vector<16x128xf32>
    %247 = arith.addf %244, %246 : vector<16x128xf32>
    %248 = arith.index_cast %c2_i32 : i32 to index
    %c0_84 = arith.constant 0 : index
    %c0_85 = arith.constant 0 : index
    %249 = vector.load %arg4[%248, %c0_84, %c0_85] : memref<8x16x1xf32, #tpu.memory_space<vmem>>, vector<1x16x1xf32>
    %250 = vector.shape_cast %249 : vector<1x16x1xf32> to vector<16x1xf32>
    %cst_86 = arith.constant 0.000000e+00 : f32
    %251 = vector.broadcast %cst_86 : f32 to vector<16x1xf32>
    %252 = arith.cmpf ogt, %250, %251 : vector<16x1xf32>
    %cst_87 = arith.constant 0.000000e+00 : f32
    %253 = vector.shape_cast %252 : vector<16x1xi1> to vector<16x1xi1>
    %254 = vector.broadcast %253 : vector<16x1xi1> to vector<16x128xi1>
    %255 = vector.broadcast %cst_87 : f32 to vector<16x128xf32>
    %256 = arith.select %254, %247, %255 : vector<16x128xi1>, vector<16x128xf32>
    %257 = arith.index_cast %c2_i32 : i32 to index
    %c0_88 = arith.constant 0 : index
    %c0_89 = arith.constant 0 : index
    %258 = vector.load %arg14[%257, %c0_88, %c0_89] : memref<8x16x128xf32, #tpu.memory_space<vmem>>, vector<1x16x128xf32>
    %259 = vector.shape_cast %258 : vector<1x16x128xf32> to vector<16x128xf32>
    %260 = vector.shape_cast %256 : vector<16x128xf32> to vector<1x16x128xf32>
    tpu.vector_store %arg14[%257, %c0_88, %c0_89], %260 {strides = array<i32>} : memref<8x16x128xf32, #tpu.memory_space<vmem>>, vector<1x16x128xf32>,
    %261 = vector.shape_cast %252 : vector<16x1xi1> to vector<16x1xi1>
    %262 = vector.broadcast %261 : vector<16x1xi1> to vector<16x128xi1>
    %263 = arith.select %262, %247, %168 : vector<16x128xi1>, vector<16x128xf32>
    %c7_i32_90 = arith.constant 7 : i32
    %264 = arith.subi %c7_i32_90, %c2_i32 : i32
    %265 = arith.index_cast %264 : i32 to index
    %c0_91 = arith.constant 0 : index
    %c0_92 = arith.constant 0 : index
    %266 = vector.load %arg17[%265, %c0_91, %c0_92] : memref<8x16x384xf32, #tpu.memory_space<vmem>>, vector<1x16x384xf32>
    %267 = vector.shape_cast %266 : vector<1x16x384xf32> to vector<16x384xf32>
    %268 = arith.truncf %216 : vector<16x128xf32> to vector<16x128xbf16>
    %cst_93 = arith.constant dense<0.000000e+00> : vector<16x384xf32>
    %269 = tpu.matmul %268, %22, %cst_93 {dimension_numbers = #tpu.dot_dimension_numbers<[1], [0], [0], [1], [0, 0, 1, 1], [], []>} : vector<16x128xbf16>, vector<128x384xbf16>, vector<16x384xf32> -> vector<16x384xf32>
    %270 = vector.extract_strided_slice %267 {offsets = [0, 0], sizes = [16, 128], strides = [1, 1]} : vector<16x384xf32> to vector<16x128xf32>
    %271 = vector.extract_strided_slice %269 {offsets = [0, 0], sizes = [16, 128], strides = [1, 1]} : vector<16x384xf32> to vector<16x128xf32>
    %272 = arith.addf %270, %271 : vector<16x128xf32>
    %273 = arith.negf %272 : vector<16x128xf32>
    %274 = math.exp %273 : vector<16x128xf32>
    %cst_94 = arith.constant 1.000000e+00 : f32
    %275 = vector.broadcast %cst_94 : f32 to vector<16x128xf32>
    %276 = arith.addf %275, %274 : vector<16x128xf32>
    %277 = arith.divf %275, %276 : vector<16x128xf32>
    %278 = vector.extract_strided_slice %267 {offsets = [0, 128], sizes = [16, 128], strides = [1, 1]} : vector<16x384xf32> to vector<16x128xf32>
    %279 = vector.extract_strided_slice %269 {offsets = [0, 128], sizes = [16, 128], strides = [1, 1]} : vector<16x384xf32> to vector<16x128xf32>
    %280 = arith.addf %278, %279 : vector<16x128xf32>
    %281 = arith.negf %280 : vector<16x128xf32>
    %282 = math.exp %281 : vector<16x128xf32>
    %cst_95 = arith.constant 1.000000e+00 : f32
    %283 = vector.broadcast %cst_95 : f32 to vector<16x128xf32>
    %284 = arith.addf %283, %282 : vector<16x128xf32>
    %285 = arith.divf %283, %284 : vector<16x128xf32>
    %286 = vector.extract_strided_slice %267 {offsets = [0, 256], sizes = [16, 128], strides = [1, 1]} : vector<16x384xf32> to vector<16x128xf32>
    %287 = vector.extract_strided_slice %269 {offsets = [0, 256], sizes = [16, 128], strides = [1, 1]} : vector<16x384xf32> to vector<16x128xf32>
    %288 = vector.broadcast %24 : vector<1x128xf32> to vector<16x128xf32>
    %289 = arith.addf %287, %288 : vector<16x128xf32>
    %290 = arith.mulf %277, %289 : vector<16x128xf32>
    %291 = arith.addf %286, %290 : vector<16x128xf32>
    %292 = math.tanh %291 : vector<16x128xf32>
    %293 = arith.subf %216, %292 : vector<16x128xf32>
    %294 = arith.mulf %285, %293 : vector<16x128xf32>
    %295 = arith.addf %292, %294 : vector<16x128xf32>
    %296 = arith.index_cast %264 : i32 to index
    %c0_96 = arith.constant 0 : index
    %c0_97 = arith.constant 0 : index
    %297 = vector.load %arg5[%296, %c0_96, %c0_97] : memref<8x16x1xf32, #tpu.memory_space<vmem>>, vector<1x16x1xf32>
    %298 = vector.shape_cast %297 : vector<1x16x1xf32> to vector<16x1xf32>
    %cst_98 = arith.constant 0.000000e+00 : f32
    %299 = vector.broadcast %cst_98 : f32 to vector<16x1xf32>
    %300 = arith.cmpf ogt, %298, %299 : vector<16x1xf32>
    %cst_99 = arith.constant 0.000000e+00 : f32
    %301 = vector.shape_cast %300 : vector<16x1xi1> to vector<16x1xi1>
    %302 = vector.broadcast %301 : vector<16x1xi1> to vector<16x128xi1>
    %303 = vector.broadcast %cst_99 : f32 to vector<16x128xf32>
    %304 = arith.select %302, %295, %303 : vector<16x128xi1>, vector<16x128xf32>
    %305 = arith.index_cast %264 : i32 to index
    %c0_100 = arith.constant 0 : index
    %c0_101 = arith.constant 0 : index
    %306 = vector.load %arg15[%305, %c0_100, %c0_101] : memref<8x16x128xf32, #tpu.memory_space<vmem>>, vector<1x16x128xf32>
    %307 = vector.shape_cast %306 : vector<1x16x128xf32> to vector<16x128xf32>
    %308 = vector.shape_cast %304 : vector<16x128xf32> to vector<1x16x128xf32>
    tpu.vector_store %arg15[%305, %c0_100, %c0_101], %308 {strides = array<i32>} : memref<8x16x128xf32, #tpu.memory_space<vmem>>, vector<1x16x128xf32>,
    %309 = vector.shape_cast %300 : vector<16x1xi1> to vector<16x1xi1>
    %310 = vector.broadcast %309 : vector<16x1xi1> to vector<16x128xi1>
    %311 = arith.select %310, %295, %216 : vector<16x128xi1>, vector<16x128xf32>
    %c3_i32 = arith.constant 3 : i32
    %312 = arith.index_cast %c3_i32 : i32 to index
    %c0_102 = arith.constant 0 : index
    %c0_103 = arith.constant 0 : index
    %313 = vector.load %arg16[%312, %c0_102, %c0_103] : memref<8x16x384xf32, #tpu.memory_space<vmem>>, vector<1x16x384xf32>
    %314 = vector.shape_cast %313 : vector<1x16x384xf32> to vector<16x384xf32>
    %315 = arith.truncf %263 : vector<16x128xf32> to vector<16x128xbf16>
    %cst_104 = arith.constant dense<0.000000e+00> : vector<16x384xf32>
    %316 = tpu.matmul %315, %21, %cst_104 {dimension_numbers = #tpu.dot_dimension_numbers<[1], [0], [0], [1], [0, 0, 1, 1], [], []>} : vector<16x128xbf16>, vector<128x384xbf16>, vector<16x384xf32> -> vector<16x384xf32>
    %317 = vector.extract_strided_slice %314 {offsets = [0, 0], sizes = [16, 128], strides = [1, 1]} : vector<16x384xf32> to vector<16x128xf32>
    %318 = vector.extract_strided_slice %316 {offsets = [0, 0], sizes = [16, 128], strides = [1, 1]} : vector<16x384xf32> to vector<16x128xf32>
    %319 = arith.addf %317, %318 : vector<16x128xf32>
    %320 = arith.negf %319 : vector<16x128xf32>
    %321 = math.exp %320 : vector<16x128xf32>
    %cst_105 = arith.constant 1.000000e+00 : f32
    %322 = vector.broadcast %cst_105 : f32 to vector<16x128xf32>
    %323 = arith.addf %322, %321 : vector<16x128xf32>
    %324 = arith.divf %322, %323 : vector<16x128xf32>
    %325 = vector.extract_strided_slice %314 {offsets = [0, 128], sizes = [16, 128], strides = [1, 1]} : vector<16x384xf32> to vector<16x128xf32>
    %326 = vector.extract_strided_slice %316 {offsets = [0, 128], sizes = [16, 128], strides = [1, 1]} : vector<16x384xf32> to vector<16x128xf32>
    %327 = arith.addf %325, %326 : vector<16x128xf32>
    %328 = arith.negf %327 : vector<16x128xf32>
    %329 = math.exp %328 : vector<16x128xf32>
    %cst_106 = arith.constant 1.000000e+00 : f32
    %330 = vector.broadcast %cst_106 : f32 to vector<16x128xf32>
    %331 = arith.addf %330, %329 : vector<16x128xf32>
    %332 = arith.divf %330, %331 : vector<16x128xf32>
    %333 = vector.extract_strided_slice %314 {offsets = [0, 256], sizes = [16, 128], strides = [1, 1]} : vector<16x384xf32> to vector<16x128xf32>
    %334 = vector.extract_strided_slice %316 {offsets = [0, 256], sizes = [16, 128], strides = [1, 1]} : vector<16x384xf32> to vector<16x128xf32>
    %335 = vector.broadcast %23 : vector<1x128xf32> to vector<16x128xf32>
    %336 = arith.addf %334, %335 : vector<16x128xf32>
    %337 = arith.mulf %324, %336 : vector<16x128xf32>
    %338 = arith.addf %333, %337 : vector<16x128xf32>
    %339 = math.tanh %338 : vector<16x128xf32>
    %340 = arith.subf %263, %339 : vector<16x128xf32>
    %341 = arith.mulf %332, %340 : vector<16x128xf32>
    %342 = arith.addf %339, %341 : vector<16x128xf32>
    %343 = arith.index_cast %c3_i32 : i32 to index
    %c0_107 = arith.constant 0 : index
    %c0_108 = arith.constant 0 : index
    %344 = vector.load %arg4[%343, %c0_107, %c0_108] : memref<8x16x1xf32, #tpu.memory_space<vmem>>, vector<1x16x1xf32>
    %345 = vector.shape_cast %344 : vector<1x16x1xf32> to vector<16x1xf32>
    %cst_109 = arith.constant 0.000000e+00 : f32
    %346 = vector.broadcast %cst_109 : f32 to vector<16x1xf32>
    %347 = arith.cmpf ogt, %345, %346 : vector<16x1xf32>
    %cst_110 = arith.constant 0.000000e+00 : f32
    %348 = vector.shape_cast %347 : vector<16x1xi1> to vector<16x1xi1>
    %349 = vector.broadcast %348 : vector<16x1xi1> to vector<16x128xi1>
    %350 = vector.broadcast %cst_110 : f32 to vector<16x128xf32>
    %351 = arith.select %349, %342, %350 : vector<16x128xi1>, vector<16x128xf32>
    %352 = arith.index_cast %c3_i32 : i32 to index
    %c0_111 = arith.constant 0 : index
    %c0_112 = arith.constant 0 : index
    %353 = vector.load %arg14[%352, %c0_111, %c0_112] : memref<8x16x128xf32, #tpu.memory_space<vmem>>, vector<1x16x128xf32>
    %354 = vector.shape_cast %353 : vector<1x16x128xf32> to vector<16x128xf32>
    %355 = vector.shape_cast %351 : vector<16x128xf32> to vector<1x16x128xf32>
    tpu.vector_store %arg14[%352, %c0_111, %c0_112], %355 {strides = array<i32>} : memref<8x16x128xf32, #tpu.memory_space<vmem>>, vector<1x16x128xf32>,
    %356 = vector.shape_cast %347 : vector<16x1xi1> to vector<16x1xi1>
    %357 = vector.broadcast %356 : vector<16x1xi1> to vector<16x128xi1>
    %358 = arith.select %357, %342, %263 : vector<16x128xi1>, vector<16x128xf32>
    %c7_i32_113 = arith.constant 7 : i32
    %359 = arith.subi %c7_i32_113, %c3_i32 : i32
    %360 = arith.index_cast %359 : i32 to index
    %c0_114 = arith.constant 0 : index
    %c0_115 = arith.constant 0 : index
    %361 = vector.load %arg17[%360, %c0_114, %c0_115] : memref<8x16x384xf32, #tpu.memory_space<vmem>>, vector<1x16x384xf32>
    %362 = vector.shape_cast %361 : vector<1x16x384xf32> to vector<16x384xf32>
    %363 = arith.truncf %311 : vector<16x128xf32> to vector<16x128xbf16>
    %cst_116 = arith.constant dense<0.000000e+00> : vector<16x384xf32>
    %364 = tpu.matmul %363, %22, %cst_116 {dimension_numbers = #tpu.dot_dimension_numbers<[1], [0], [0], [1], [0, 0, 1, 1], [], []>} : vector<16x128xbf16>, vector<128x384xbf16>, vector<16x384xf32> -> vector<16x384xf32>
    %365 = vector.extract_strided_slice %362 {offsets = [0, 0], sizes = [16, 128], strides = [1, 1]} : vector<16x384xf32> to vector<16x128xf32>
    %366 = vector.extract_strided_slice %364 {offsets = [0, 0], sizes = [16, 128], strides = [1, 1]} : vector<16x384xf32> to vector<16x128xf32>
    %367 = arith.addf %365, %366 : vector<16x128xf32>
    %368 = arith.negf %367 : vector<16x128xf32>
    %369 = math.exp %368 : vector<16x128xf32>
    %cst_117 = arith.constant 1.000000e+00 : f32
    %370 = vector.broadcast %cst_117 : f32 to vector<16x128xf32>
    %371 = arith.addf %370, %369 : vector<16x128xf32>
    %372 = arith.divf %370, %371 : vector<16x128xf32>
    %373 = vector.extract_strided_slice %362 {offsets = [0, 128], sizes = [16, 128], strides = [1, 1]} : vector<16x384xf32> to vector<16x128xf32>
    %374 = vector.extract_strided_slice %364 {offsets = [0, 128], sizes = [16, 128], strides = [1, 1]} : vector<16x384xf32> to vector<16x128xf32>
    %375 = arith.addf %373, %374 : vector<16x128xf32>
    %376 = arith.negf %375 : vector<16x128xf32>
    %377 = math.exp %376 : vector<16x128xf32>
    %cst_118 = arith.constant 1.000000e+00 : f32
    %378 = vector.broadcast %cst_118 : f32 to vector<16x128xf32>
    %379 = arith.addf %378, %377 : vector<16x128xf32>
    %380 = arith.divf %378, %379 : vector<16x128xf32>
    %381 = vector.extract_strided_slice %362 {offsets = [0, 256], sizes = [16, 128], strides = [1, 1]} : vector<16x384xf32> to vector<16x128xf32>
    %382 = vector.extract_strided_slice %364 {offsets = [0, 256], sizes = [16, 128], strides = [1, 1]} : vector<16x384xf32> to vector<16x128xf32>
    %383 = vector.broadcast %24 : vector<1x128xf32> to vector<16x128xf32>
    %384 = arith.addf %382, %383 : vector<16x128xf32>
    %385 = arith.mulf %372, %384 : vector<16x128xf32>
    %386 = arith.addf %381, %385 : vector<16x128xf32>
    %387 = math.tanh %386 : vector<16x128xf32>
    %388 = arith.subf %311, %387 : vector<16x128xf32>
    %389 = arith.mulf %380, %388 : vector<16x128xf32>
    %390 = arith.addf %387, %389 : vector<16x128xf32>
    %391 = arith.index_cast %359 : i32 to index
    %c0_119 = arith.constant 0 : index
    %c0_120 = arith.constant 0 : index
    %392 = vector.load %arg5[%391, %c0_119, %c0_120] : memref<8x16x1xf32, #tpu.memory_space<vmem>>, vector<1x16x1xf32>
    %393 = vector.shape_cast %392 : vector<1x16x1xf32> to vector<16x1xf32>
    %cst_121 = arith.constant 0.000000e+00 : f32
    %394 = vector.broadcast %cst_121 : f32 to vector<16x1xf32>
    %395 = arith.cmpf ogt, %393, %394 : vector<16x1xf32>
    %cst_122 = arith.constant 0.000000e+00 : f32
    %396 = vector.shape_cast %395 : vector<16x1xi1> to vector<16x1xi1>
    %397 = vector.broadcast %396 : vector<16x1xi1> to vector<16x128xi1>
    %398 = vector.broadcast %cst_122 : f32 to vector<16x128xf32>
    %399 = arith.select %397, %390, %398 : vector<16x128xi1>, vector<16x128xf32>
    %400 = arith.index_cast %359 : i32 to index
    %c0_123 = arith.constant 0 : index
    %c0_124 = arith.constant 0 : index
    %401 = vector.load %arg15[%400, %c0_123, %c0_124] : memref<8x16x128xf32, #tpu.memory_space<vmem>>, vector<1x16x128xf32>
    %402 = vector.shape_cast %401 : vector<1x16x128xf32> to vector<16x128xf32>
    %403 = vector.shape_cast %399 : vector<16x128xf32> to vector<1x16x128xf32>
    tpu.vector_store %arg15[%400, %c0_123, %c0_124], %403 {strides = array<i32>} : memref<8x16x128xf32, #tpu.memory_space<vmem>>, vector<1x16x128xf32>,
    %404 = vector.shape_cast %395 : vector<16x1xi1> to vector<16x1xi1>
    %405 = vector.broadcast %404 : vector<16x1xi1> to vector<16x128xi1>
    %406 = arith.select %405, %390, %311 : vector<16x128xi1>, vector<16x128xf32>
    %c4_i32 = arith.constant 4 : i32
    %407 = arith.index_cast %c4_i32 : i32 to index
    %c0_125 = arith.constant 0 : index
    %c0_126 = arith.constant 0 : index
    %408 = vector.load %arg16[%407, %c0_125, %c0_126] : memref<8x16x384xf32, #tpu.memory_space<vmem>>, vector<1x16x384xf32>
    %409 = vector.shape_cast %408 : vector<1x16x384xf32> to vector<16x384xf32>
    %410 = arith.truncf %358 : vector<16x128xf32> to vector<16x128xbf16>
    %cst_127 = arith.constant dense<0.000000e+00> : vector<16x384xf32>
    %411 = tpu.matmul %410, %21, %cst_127 {dimension_numbers = #tpu.dot_dimension_numbers<[1], [0], [0], [1], [0, 0, 1, 1], [], []>} : vector<16x128xbf16>, vector<128x384xbf16>, vector<16x384xf32> -> vector<16x384xf32>
    %412 = vector.extract_strided_slice %409 {offsets = [0, 0], sizes = [16, 128], strides = [1, 1]} : vector<16x384xf32> to vector<16x128xf32>
    %413 = vector.extract_strided_slice %411 {offsets = [0, 0], sizes = [16, 128], strides = [1, 1]} : vector<16x384xf32> to vector<16x128xf32>
    %414 = arith.addf %412, %413 : vector<16x128xf32>
    %415 = arith.negf %414 : vector<16x128xf32>
    %416 = math.exp %415 : vector<16x128xf32>
    %cst_128 = arith.constant 1.000000e+00 : f32
    %417 = vector.broadcast %cst_128 : f32 to vector<16x128xf32>
    %418 = arith.addf %417, %416 : vector<16x128xf32>
    %419 = arith.divf %417, %418 : vector<16x128xf32>
    %420 = vector.extract_strided_slice %409 {offsets = [0, 128], sizes = [16, 128], strides = [1, 1]} : vector<16x384xf32> to vector<16x128xf32>
    %421 = vector.extract_strided_slice %411 {offsets = [0, 128], sizes = [16, 128], strides = [1, 1]} : vector<16x384xf32> to vector<16x128xf32>
    %422 = arith.addf %420, %421 : vector<16x128xf32>
    %423 = arith.negf %422 : vector<16x128xf32>
    %424 = math.exp %423 : vector<16x128xf32>
    %cst_129 = arith.constant 1.000000e+00 : f32
    %425 = vector.broadcast %cst_129 : f32 to vector<16x128xf32>
    %426 = arith.addf %425, %424 : vector<16x128xf32>
    %427 = arith.divf %425, %426 : vector<16x128xf32>
    %428 = vector.extract_strided_slice %409 {offsets = [0, 256], sizes = [16, 128], strides = [1, 1]} : vector<16x384xf32> to vector<16x128xf32>
    %429 = vector.extract_strided_slice %411 {offsets = [0, 256], sizes = [16, 128], strides = [1, 1]} : vector<16x384xf32> to vector<16x128xf32>
    %430 = vector.broadcast %23 : vector<1x128xf32> to vector<16x128xf32>
    %431 = arith.addf %429, %430 : vector<16x128xf32>
    %432 = arith.mulf %419, %431 : vector<16x128xf32>
    %433 = arith.addf %428, %432 : vector<16x128xf32>
    %434 = math.tanh %433 : vector<16x128xf32>
    %435 = arith.subf %358, %434 : vector<16x128xf32>
    %436 = arith.mulf %427, %435 : vector<16x128xf32>
    %437 = arith.addf %434, %436 : vector<16x128xf32>
    %438 = arith.index_cast %c4_i32 : i32 to index
    %c0_130 = arith.constant 0 : index
    %c0_131 = arith.constant 0 : index
    %439 = vector.load %arg4[%438, %c0_130, %c0_131] : memref<8x16x1xf32, #tpu.memory_space<vmem>>, vector<1x16x1xf32>
    %440 = vector.shape_cast %439 : vector<1x16x1xf32> to vector<16x1xf32>
    %cst_132 = arith.constant 0.000000e+00 : f32
    %441 = vector.broadcast %cst_132 : f32 to vector<16x1xf32>
    %442 = arith.cmpf ogt, %440, %441 : vector<16x1xf32>
    %cst_133 = arith.constant 0.000000e+00 : f32
    %443 = vector.shape_cast %442 : vector<16x1xi1> to vector<16x1xi1>
    %444 = vector.broadcast %443 : vector<16x1xi1> to vector<16x128xi1>
    %445 = vector.broadcast %cst_133 : f32 to vector<16x128xf32>
    %446 = arith.select %444, %437, %445 : vector<16x128xi1>, vector<16x128xf32>
    %447 = arith.index_cast %c4_i32 : i32 to index
    %c0_134 = arith.constant 0 : index
    %c0_135 = arith.constant 0 : index
    %448 = vector.load %arg14[%447, %c0_134, %c0_135] : memref<8x16x128xf32, #tpu.memory_space<vmem>>, vector<1x16x128xf32>
    %449 = vector.shape_cast %448 : vector<1x16x128xf32> to vector<16x128xf32>
    %450 = vector.shape_cast %446 : vector<16x128xf32> to vector<1x16x128xf32>
    tpu.vector_store %arg14[%447, %c0_134, %c0_135], %450 {strides = array<i32>} : memref<8x16x128xf32, #tpu.memory_space<vmem>>, vector<1x16x128xf32>,
    %451 = vector.shape_cast %442 : vector<16x1xi1> to vector<16x1xi1>
    %452 = vector.broadcast %451 : vector<16x1xi1> to vector<16x128xi1>
    %453 = arith.select %452, %437, %358 : vector<16x128xi1>, vector<16x128xf32>
    %c7_i32_136 = arith.constant 7 : i32
    %454 = arith.subi %c7_i32_136, %c4_i32 : i32
    %455 = arith.index_cast %454 : i32 to index
    %c0_137 = arith.constant 0 : index
    %c0_138 = arith.constant 0 : index
    %456 = vector.load %arg17[%455, %c0_137, %c0_138] : memref<8x16x384xf32, #tpu.memory_space<vmem>>, vector<1x16x384xf32>
    %457 = vector.shape_cast %456 : vector<1x16x384xf32> to vector<16x384xf32>
    %458 = arith.truncf %406 : vector<16x128xf32> to vector<16x128xbf16>
    %cst_139 = arith.constant dense<0.000000e+00> : vector<16x384xf32>
    %459 = tpu.matmul %458, %22, %cst_139 {dimension_numbers = #tpu.dot_dimension_numbers<[1], [0], [0], [1], [0, 0, 1, 1], [], []>} : vector<16x128xbf16>, vector<128x384xbf16>, vector<16x384xf32> -> vector<16x384xf32>
    %460 = vector.extract_strided_slice %457 {offsets = [0, 0], sizes = [16, 128], strides = [1, 1]} : vector<16x384xf32> to vector<16x128xf32>
    %461 = vector.extract_strided_slice %459 {offsets = [0, 0], sizes = [16, 128], strides = [1, 1]} : vector<16x384xf32> to vector<16x128xf32>
    %462 = arith.addf %460, %461 : vector<16x128xf32>
    %463 = arith.negf %462 : vector<16x128xf32>
    %464 = math.exp %463 : vector<16x128xf32>
    %cst_140 = arith.constant 1.000000e+00 : f32
    %465 = vector.broadcast %cst_140 : f32 to vector<16x128xf32>
    %466 = arith.addf %465, %464 : vector<16x128xf32>
    %467 = arith.divf %465, %466 : vector<16x128xf32>
    %468 = vector.extract_strided_slice %457 {offsets = [0, 128], sizes = [16, 128], strides = [1, 1]} : vector<16x384xf32> to vector<16x128xf32>
    %469 = vector.extract_strided_slice %459 {offsets = [0, 128], sizes = [16, 128], strides = [1, 1]} : vector<16x384xf32> to vector<16x128xf32>
    %470 = arith.addf %468, %469 : vector<16x128xf32>
    %471 = arith.negf %470 : vector<16x128xf32>
    %472 = math.exp %471 : vector<16x128xf32>
    %cst_141 = arith.constant 1.000000e+00 : f32
    %473 = vector.broadcast %cst_141 : f32 to vector<16x128xf32>
    %474 = arith.addf %473, %472 : vector<16x128xf32>
    %475 = arith.divf %473, %474 : vector<16x128xf32>
    %476 = vector.extract_strided_slice %457 {offsets = [0, 256], sizes = [16, 128], strides = [1, 1]} : vector<16x384xf32> to vector<16x128xf32>
    %477 = vector.extract_strided_slice %459 {offsets = [0, 256], sizes = [16, 128], strides = [1, 1]} : vector<16x384xf32> to vector<16x128xf32>
    %478 = vector.broadcast %24 : vector<1x128xf32> to vector<16x128xf32>
    %479 = arith.addf %477, %478 : vector<16x128xf32>
    %480 = arith.mulf %467, %479 : vector<16x128xf32>
    %481 = arith.addf %476, %480 : vector<16x128xf32>
    %482 = math.tanh %481 : vector<16x128xf32>
    %483 = arith.subf %406, %482 : vector<16x128xf32>
    %484 = arith.mulf %475, %483 : vector<16x128xf32>
    %485 = arith.addf %482, %484 : vector<16x128xf32>
    %486 = arith.index_cast %454 : i32 to index
    %c0_142 = arith.constant 0 : index
    %c0_143 = arith.constant 0 : index
    %487 = vector.load %arg5[%486, %c0_142, %c0_143] : memref<8x16x1xf32, #tpu.memory_space<vmem>>, vector<1x16x1xf32>
    %488 = vector.shape_cast %487 : vector<1x16x1xf32> to vector<16x1xf32>
    %cst_144 = arith.constant 0.000000e+00 : f32
    %489 = vector.broadcast %cst_144 : f32 to vector<16x1xf32>
    %490 = arith.cmpf ogt, %488, %489 : vector<16x1xf32>
    %cst_145 = arith.constant 0.000000e+00 : f32
    %491 = vector.shape_cast %490 : vector<16x1xi1> to vector<16x1xi1>
    %492 = vector.broadcast %491 : vector<16x1xi1> to vector<16x128xi1>
    %493 = vector.broadcast %cst_145 : f32 to vector<16x128xf32>
    %494 = arith.select %492, %485, %493 : vector<16x128xi1>, vector<16x128xf32>
    %495 = arith.index_cast %454 : i32 to index
    %c0_146 = arith.constant 0 : index
    %c0_147 = arith.constant 0 : index
    %496 = vector.load %arg15[%495, %c0_146, %c0_147] : memref<8x16x128xf32, #tpu.memory_space<vmem>>, vector<1x16x128xf32>
    %497 = vector.shape_cast %496 : vector<1x16x128xf32> to vector<16x128xf32>
    %498 = vector.shape_cast %494 : vector<16x128xf32> to vector<1x16x128xf32>
    tpu.vector_store %arg15[%495, %c0_146, %c0_147], %498 {strides = array<i32>} : memref<8x16x128xf32, #tpu.memory_space<vmem>>, vector<1x16x128xf32>,
    %499 = vector.shape_cast %490 : vector<16x1xi1> to vector<16x1xi1>
    %500 = vector.broadcast %499 : vector<16x1xi1> to vector<16x128xi1>
    %501 = arith.select %500, %485, %406 : vector<16x128xi1>, vector<16x128xf32>
    %c5_i32 = arith.constant 5 : i32
    %502 = arith.index_cast %c5_i32 : i32 to index
    %c0_148 = arith.constant 0 : index
    %c0_149 = arith.constant 0 : index
    %503 = vector.load %arg16[%502, %c0_148, %c0_149] : memref<8x16x384xf32, #tpu.memory_space<vmem>>, vector<1x16x384xf32>
    %504 = vector.shape_cast %503 : vector<1x16x384xf32> to vector<16x384xf32>
    %505 = arith.truncf %453 : vector<16x128xf32> to vector<16x128xbf16>
    %cst_150 = arith.constant dense<0.000000e+00> : vector<16x384xf32>
    %506 = tpu.matmul %505, %21, %cst_150 {dimension_numbers = #tpu.dot_dimension_numbers<[1], [0], [0], [1], [0, 0, 1, 1], [], []>} : vector<16x128xbf16>, vector<128x384xbf16>, vector<16x384xf32> -> vector<16x384xf32>
    %507 = vector.extract_strided_slice %504 {offsets = [0, 0], sizes = [16, 128], strides = [1, 1]} : vector<16x384xf32> to vector<16x128xf32>
    %508 = vector.extract_strided_slice %506 {offsets = [0, 0], sizes = [16, 128], strides = [1, 1]} : vector<16x384xf32> to vector<16x128xf32>
    %509 = arith.addf %507, %508 : vector<16x128xf32>
    %510 = arith.negf %509 : vector<16x128xf32>
    %511 = math.exp %510 : vector<16x128xf32>
    %cst_151 = arith.constant 1.000000e+00 : f32
    %512 = vector.broadcast %cst_151 : f32 to vector<16x128xf32>
    %513 = arith.addf %512, %511 : vector<16x128xf32>
    %514 = arith.divf %512, %513 : vector<16x128xf32>
    %515 = vector.extract_strided_slice %504 {offsets = [0, 128], sizes = [16, 128], strides = [1, 1]} : vector<16x384xf32> to vector<16x128xf32>
    %516 = vector.extract_strided_slice %506 {offsets = [0, 128], sizes = [16, 128], strides = [1, 1]} : vector<16x384xf32> to vector<16x128xf32>
    %517 = arith.addf %515, %516 : vector<16x128xf32>
    %518 = arith.negf %517 : vector<16x128xf32>
    %519 = math.exp %518 : vector<16x128xf32>
    %cst_152 = arith.constant 1.000000e+00 : f32
    %520 = vector.broadcast %cst_152 : f32 to vector<16x128xf32>
    %521 = arith.addf %520, %519 : vector<16x128xf32>
    %522 = arith.divf %520, %521 : vector<16x128xf32>
    %523 = vector.extract_strided_slice %504 {offsets = [0, 256], sizes = [16, 128], strides = [1, 1]} : vector<16x384xf32> to vector<16x128xf32>
    %524 = vector.extract_strided_slice %506 {offsets = [0, 256], sizes = [16, 128], strides = [1, 1]} : vector<16x384xf32> to vector<16x128xf32>
    %525 = vector.broadcast %23 : vector<1x128xf32> to vector<16x128xf32>
    %526 = arith.addf %524, %525 : vector<16x128xf32>
    %527 = arith.mulf %514, %526 : vector<16x128xf32>
    %528 = arith.addf %523, %527 : vector<16x128xf32>
    %529 = math.tanh %528 : vector<16x128xf32>
    %530 = arith.subf %453, %529 : vector<16x128xf32>
    %531 = arith.mulf %522, %530 : vector<16x128xf32>
    %532 = arith.addf %529, %531 : vector<16x128xf32>
    %533 = arith.index_cast %c5_i32 : i32 to index
    %c0_153 = arith.constant 0 : index
    %c0_154 = arith.constant 0 : index
    %534 = vector.load %arg4[%533, %c0_153, %c0_154] : memref<8x16x1xf32, #tpu.memory_space<vmem>>, vector<1x16x1xf32>
    %535 = vector.shape_cast %534 : vector<1x16x1xf32> to vector<16x1xf32>
    %cst_155 = arith.constant 0.000000e+00 : f32
    %536 = vector.broadcast %cst_155 : f32 to vector<16x1xf32>
    %537 = arith.cmpf ogt, %535, %536 : vector<16x1xf32>
    %cst_156 = arith.constant 0.000000e+00 : f32
    %538 = vector.shape_cast %537 : vector<16x1xi1> to vector<16x1xi1>
    %539 = vector.broadcast %538 : vector<16x1xi1> to vector<16x128xi1>
    %540 = vector.broadcast %cst_156 : f32 to vector<16x128xf32>
    %541 = arith.select %539, %532, %540 : vector<16x128xi1>, vector<16x128xf32>
    %542 = arith.index_cast %c5_i32 : i32 to index
    %c0_157 = arith.constant 0 : index
    %c0_158 = arith.constant 0 : index
    %543 = vector.load %arg14[%542, %c0_157, %c0_158] : memref<8x16x128xf32, #tpu.memory_space<vmem>>, vector<1x16x128xf32>
    %544 = vector.shape_cast %543 : vector<1x16x128xf32> to vector<16x128xf32>
    %545 = vector.shape_cast %541 : vector<16x128xf32> to vector<1x16x128xf32>
    tpu.vector_store %arg14[%542, %c0_157, %c0_158], %545 {strides = array<i32>} : memref<8x16x128xf32, #tpu.memory_space<vmem>>, vector<1x16x128xf32>,
    %546 = vector.shape_cast %537 : vector<16x1xi1> to vector<16x1xi1>
    %547 = vector.broadcast %546 : vector<16x1xi1> to vector<16x128xi1>
    %548 = arith.select %547, %532, %453 : vector<16x128xi1>, vector<16x128xf32>
    %c7_i32_159 = arith.constant 7 : i32
    %549 = arith.subi %c7_i32_159, %c5_i32 : i32
    %550 = arith.index_cast %549 : i32 to index
    %c0_160 = arith.constant 0 : index
    %c0_161 = arith.constant 0 : index
    %551 = vector.load %arg17[%550, %c0_160, %c0_161] : memref<8x16x384xf32, #tpu.memory_space<vmem>>, vector<1x16x384xf32>
    %552 = vector.shape_cast %551 : vector<1x16x384xf32> to vector<16x384xf32>
    %553 = arith.truncf %501 : vector<16x128xf32> to vector<16x128xbf16>
    %cst_162 = arith.constant dense<0.000000e+00> : vector<16x384xf32>
    %554 = tpu.matmul %553, %22, %cst_162 {dimension_numbers = #tpu.dot_dimension_numbers<[1], [0], [0], [1], [0, 0, 1, 1], [], []>} : vector<16x128xbf16>, vector<128x384xbf16>, vector<16x384xf32> -> vector<16x384xf32>
    %555 = vector.extract_strided_slice %552 {offsets = [0, 0], sizes = [16, 128], strides = [1, 1]} : vector<16x384xf32> to vector<16x128xf32>
    %556 = vector.extract_strided_slice %554 {offsets = [0, 0], sizes = [16, 128], strides = [1, 1]} : vector<16x384xf32> to vector<16x128xf32>
    %557 = arith.addf %555, %556 : vector<16x128xf32>
    %558 = arith.negf %557 : vector<16x128xf32>
    %559 = math.exp %558 : vector<16x128xf32>
    %cst_163 = arith.constant 1.000000e+00 : f32
    %560 = vector.broadcast %cst_163 : f32 to vector<16x128xf32>
    %561 = arith.addf %560, %559 : vector<16x128xf32>
    %562 = arith.divf %560, %561 : vector<16x128xf32>
    %563 = vector.extract_strided_slice %552 {offsets = [0, 128], sizes = [16, 128], strides = [1, 1]} : vector<16x384xf32> to vector<16x128xf32>
    %564 = vector.extract_strided_slice %554 {offsets = [0, 128], sizes = [16, 128], strides = [1, 1]} : vector<16x384xf32> to vector<16x128xf32>
    %565 = arith.addf %563, %564 : vector<16x128xf32>
    %566 = arith.negf %565 : vector<16x128xf32>
    %567 = math.exp %566 : vector<16x128xf32>
    %cst_164 = arith.constant 1.000000e+00 : f32
    %568 = vector.broadcast %cst_164 : f32 to vector<16x128xf32>
    %569 = arith.addf %568, %567 : vector<16x128xf32>
    %570 = arith.divf %568, %569 : vector<16x128xf32>
    %571 = vector.extract_strided_slice %552 {offsets = [0, 256], sizes = [16, 128], strides = [1, 1]} : vector<16x384xf32> to vector<16x128xf32>
    %572 = vector.extract_strided_slice %554 {offsets = [0, 256], sizes = [16, 128], strides = [1, 1]} : vector<16x384xf32> to vector<16x128xf32>
    %573 = vector.broadcast %24 : vector<1x128xf32> to vector<16x128xf32>
    %574 = arith.addf %572, %573 : vector<16x128xf32>
    %575 = arith.mulf %562, %574 : vector<16x128xf32>
    %576 = arith.addf %571, %575 : vector<16x128xf32>
    %577 = math.tanh %576 : vector<16x128xf32>
    %578 = arith.subf %501, %577 : vector<16x128xf32>
    %579 = arith.mulf %570, %578 : vector<16x128xf32>
    %580 = arith.addf %577, %579 : vector<16x128xf32>
    %581 = arith.index_cast %549 : i32 to index
    %c0_165 = arith.constant 0 : index
    %c0_166 = arith.constant 0 : index
    %582 = vector.load %arg5[%581, %c0_165, %c0_166] : memref<8x16x1xf32, #tpu.memory_space<vmem>>, vector<1x16x1xf32>
    %583 = vector.shape_cast %582 : vector<1x16x1xf32> to vector<16x1xf32>
    %cst_167 = arith.constant 0.000000e+00 : f32
    %584 = vector.broadcast %cst_167 : f32 to vector<16x1xf32>
    %585 = arith.cmpf ogt, %583, %584 : vector<16x1xf32>
    %cst_168 = arith.constant 0.000000e+00 : f32
    %586 = vector.shape_cast %585 : vector<16x1xi1> to vector<16x1xi1>
    %587 = vector.broadcast %586 : vector<16x1xi1> to vector<16x128xi1>
    %588 = vector.broadcast %cst_168 : f32 to vector<16x128xf32>
    %589 = arith.select %587, %580, %588 : vector<16x128xi1>, vector<16x128xf32>
    %590 = arith.index_cast %549 : i32 to index
    %c0_169 = arith.constant 0 : index
    %c0_170 = arith.constant 0 : index
    %591 = vector.load %arg15[%590, %c0_169, %c0_170] : memref<8x16x128xf32, #tpu.memory_space<vmem>>, vector<1x16x128xf32>
    %592 = vector.shape_cast %591 : vector<1x16x128xf32> to vector<16x128xf32>
    %593 = vector.shape_cast %589 : vector<16x128xf32> to vector<1x16x128xf32>
    tpu.vector_store %arg15[%590, %c0_169, %c0_170], %593 {strides = array<i32>} : memref<8x16x128xf32, #tpu.memory_space<vmem>>, vector<1x16x128xf32>,
    %594 = vector.shape_cast %585 : vector<16x1xi1> to vector<16x1xi1>
    %595 = vector.broadcast %594 : vector<16x1xi1> to vector<16x128xi1>
    %596 = arith.select %595, %580, %501 : vector<16x128xi1>, vector<16x128xf32>
    %c6_i32 = arith.constant 6 : i32
    %597 = arith.index_cast %c6_i32 : i32 to index
    %c0_171 = arith.constant 0 : index
    %c0_172 = arith.constant 0 : index
    %598 = vector.load %arg16[%597, %c0_171, %c0_172] : memref<8x16x384xf32, #tpu.memory_space<vmem>>, vector<1x16x384xf32>
    %599 = vector.shape_cast %598 : vector<1x16x384xf32> to vector<16x384xf32>
    %600 = arith.truncf %548 : vector<16x128xf32> to vector<16x128xbf16>
    %cst_173 = arith.constant dense<0.000000e+00> : vector<16x384xf32>
    %601 = tpu.matmul %600, %21, %cst_173 {dimension_numbers = #tpu.dot_dimension_numbers<[1], [0], [0], [1], [0, 0, 1, 1], [], []>} : vector<16x128xbf16>, vector<128x384xbf16>, vector<16x384xf32> -> vector<16x384xf32>
    %602 = vector.extract_strided_slice %599 {offsets = [0, 0], sizes = [16, 128], strides = [1, 1]} : vector<16x384xf32> to vector<16x128xf32>
    %603 = vector.extract_strided_slice %601 {offsets = [0, 0], sizes = [16, 128], strides = [1, 1]} : vector<16x384xf32> to vector<16x128xf32>
    %604 = arith.addf %602, %603 : vector<16x128xf32>
    %605 = arith.negf %604 : vector<16x128xf32>
    %606 = math.exp %605 : vector<16x128xf32>
    %cst_174 = arith.constant 1.000000e+00 : f32
    %607 = vector.broadcast %cst_174 : f32 to vector<16x128xf32>
    %608 = arith.addf %607, %606 : vector<16x128xf32>
    %609 = arith.divf %607, %608 : vector<16x128xf32>
    %610 = vector.extract_strided_slice %599 {offsets = [0, 128], sizes = [16, 128], strides = [1, 1]} : vector<16x384xf32> to vector<16x128xf32>
    %611 = vector.extract_strided_slice %601 {offsets = [0, 128], sizes = [16, 128], strides = [1, 1]} : vector<16x384xf32> to vector<16x128xf32>
    %612 = arith.addf %610, %611 : vector<16x128xf32>
    %613 = arith.negf %612 : vector<16x128xf32>
    %614 = math.exp %613 : vector<16x128xf32>
    %cst_175 = arith.constant 1.000000e+00 : f32
    %615 = vector.broadcast %cst_175 : f32 to vector<16x128xf32>
    %616 = arith.addf %615, %614 : vector<16x128xf32>
    %617 = arith.divf %615, %616 : vector<16x128xf32>
    %618 = vector.extract_strided_slice %599 {offsets = [0, 256], sizes = [16, 128], strides = [1, 1]} : vector<16x384xf32> to vector<16x128xf32>
    %619 = vector.extract_strided_slice %601 {offsets = [0, 256], sizes = [16, 128], strides = [1, 1]} : vector<16x384xf32> to vector<16x128xf32>
    %620 = vector.broadcast %23 : vector<1x128xf32> to vector<16x128xf32>
    %621 = arith.addf %619, %620 : vector<16x128xf32>
    %622 = arith.mulf %609, %621 : vector<16x128xf32>
    %623 = arith.addf %618, %622 : vector<16x128xf32>
    %624 = math.tanh %623 : vector<16x128xf32>
    %625 = arith.subf %548, %624 : vector<16x128xf32>
    %626 = arith.mulf %617, %625 : vector<16x128xf32>
    %627 = arith.addf %624, %626 : vector<16x128xf32>
    %628 = arith.index_cast %c6_i32 : i32 to index
    %c0_176 = arith.constant 0 : index
    %c0_177 = arith.constant 0 : index
    %629 = vector.load %arg4[%628, %c0_176, %c0_177] : memref<8x16x1xf32, #tpu.memory_space<vmem>>, vector<1x16x1xf32>
    %630 = vector.shape_cast %629 : vector<1x16x1xf32> to vector<16x1xf32>
    %cst_178 = arith.constant 0.000000e+00 : f32
    %631 = vector.broadcast %cst_178 : f32 to vector<16x1xf32>
    %632 = arith.cmpf ogt, %630, %631 : vector<16x1xf32>
    %cst_179 = arith.constant 0.000000e+00 : f32
    %633 = vector.shape_cast %632 : vector<16x1xi1> to vector<16x1xi1>
    %634 = vector.broadcast %633 : vector<16x1xi1> to vector<16x128xi1>
    %635 = vector.broadcast %cst_179 : f32 to vector<16x128xf32>
    %636 = arith.select %634, %627, %635 : vector<16x128xi1>, vector<16x128xf32>
    %637 = arith.index_cast %c6_i32 : i32 to index
    %c0_180 = arith.constant 0 : index
    %c0_181 = arith.constant 0 : index
    %638 = vector.load %arg14[%637, %c0_180, %c0_181] : memref<8x16x128xf32, #tpu.memory_space<vmem>>, vector<1x16x128xf32>
    %639 = vector.shape_cast %638 : vector<1x16x128xf32> to vector<16x128xf32>
    %640 = vector.shape_cast %636 : vector<16x128xf32> to vector<1x16x128xf32>
    tpu.vector_store %arg14[%637, %c0_180, %c0_181], %640 {strides = array<i32>} : memref<8x16x128xf32, #tpu.memory_space<vmem>>, vector<1x16x128xf32>,
    %641 = vector.shape_cast %632 : vector<16x1xi1> to vector<16x1xi1>
    %642 = vector.broadcast %641 : vector<16x1xi1> to vector<16x128xi1>
    %643 = arith.select %642, %627, %548 : vector<16x128xi1>, vector<16x128xf32>
    %c7_i32_182 = arith.constant 7 : i32
    %644 = arith.subi %c7_i32_182, %c6_i32 : i32
    %645 = arith.index_cast %644 : i32 to index
    %c0_183 = arith.constant 0 : index
    %c0_184 = arith.constant 0 : index
    %646 = vector.load %arg17[%645, %c0_183, %c0_184] : memref<8x16x384xf32, #tpu.memory_space<vmem>>, vector<1x16x384xf32>
    %647 = vector.shape_cast %646 : vector<1x16x384xf32> to vector<16x384xf32>
    %648 = arith.truncf %596 : vector<16x128xf32> to vector<16x128xbf16>
    %cst_185 = arith.constant dense<0.000000e+00> : vector<16x384xf32>
    %649 = tpu.matmul %648, %22, %cst_185 {dimension_numbers = #tpu.dot_dimension_numbers<[1], [0], [0], [1], [0, 0, 1, 1], [], []>} : vector<16x128xbf16>, vector<128x384xbf16>, vector<16x384xf32> -> vector<16x384xf32>
    %650 = vector.extract_strided_slice %647 {offsets = [0, 0], sizes = [16, 128], strides = [1, 1]} : vector<16x384xf32> to vector<16x128xf32>
    %651 = vector.extract_strided_slice %649 {offsets = [0, 0], sizes = [16, 128], strides = [1, 1]} : vector<16x384xf32> to vector<16x128xf32>
    %652 = arith.addf %650, %651 : vector<16x128xf32>
    %653 = arith.negf %652 : vector<16x128xf32>
    %654 = math.exp %653 : vector<16x128xf32>
    %cst_186 = arith.constant 1.000000e+00 : f32
    %655 = vector.broadcast %cst_186 : f32 to vector<16x128xf32>
    %656 = arith.addf %655, %654 : vector<16x128xf32>
    %657 = arith.divf %655, %656 : vector<16x128xf32>
    %658 = vector.extract_strided_slice %647 {offsets = [0, 128], sizes = [16, 128], strides = [1, 1]} : vector<16x384xf32> to vector<16x128xf32>
    %659 = vector.extract_strided_slice %649 {offsets = [0, 128], sizes = [16, 128], strides = [1, 1]} : vector<16x384xf32> to vector<16x128xf32>
    %660 = arith.addf %658, %659 : vector<16x128xf32>
    %661 = arith.negf %660 : vector<16x128xf32>
    %662 = math.exp %661 : vector<16x128xf32>
    %cst_187 = arith.constant 1.000000e+00 : f32
    %663 = vector.broadcast %cst_187 : f32 to vector<16x128xf32>
    %664 = arith.addf %663, %662 : vector<16x128xf32>
    %665 = arith.divf %663, %664 : vector<16x128xf32>
    %666 = vector.extract_strided_slice %647 {offsets = [0, 256], sizes = [16, 128], strides = [1, 1]} : vector<16x384xf32> to vector<16x128xf32>
    %667 = vector.extract_strided_slice %649 {offsets = [0, 256], sizes = [16, 128], strides = [1, 1]} : vector<16x384xf32> to vector<16x128xf32>
    %668 = vector.broadcast %24 : vector<1x128xf32> to vector<16x128xf32>
    %669 = arith.addf %667, %668 : vector<16x128xf32>
    %670 = arith.mulf %657, %669 : vector<16x128xf32>
    %671 = arith.addf %666, %670 : vector<16x128xf32>
    %672 = math.tanh %671 : vector<16x128xf32>
    %673 = arith.subf %596, %672 : vector<16x128xf32>
    %674 = arith.mulf %665, %673 : vector<16x128xf32>
    %675 = arith.addf %672, %674 : vector<16x128xf32>
    %676 = arith.index_cast %644 : i32 to index
    %c0_188 = arith.constant 0 : index
    %c0_189 = arith.constant 0 : index
    %677 = vector.load %arg5[%676, %c0_188, %c0_189] : memref<8x16x1xf32, #tpu.memory_space<vmem>>, vector<1x16x1xf32>
    %678 = vector.shape_cast %677 : vector<1x16x1xf32> to vector<16x1xf32>
    %cst_190 = arith.constant 0.000000e+00 : f32
    %679 = vector.broadcast %cst_190 : f32 to vector<16x1xf32>
    %680 = arith.cmpf ogt, %678, %679 : vector<16x1xf32>
    %cst_191 = arith.constant 0.000000e+00 : f32
    %681 = vector.shape_cast %680 : vector<16x1xi1> to vector<16x1xi1>
    %682 = vector.broadcast %681 : vector<16x1xi1> to vector<16x128xi1>
    %683 = vector.broadcast %cst_191 : f32 to vector<16x128xf32>
    %684 = arith.select %682, %675, %683 : vector<16x128xi1>, vector<16x128xf32>
    %685 = arith.index_cast %644 : i32 to index
    %c0_192 = arith.constant 0 : index
    %c0_193 = arith.constant 0 : index
    %686 = vector.load %arg15[%685, %c0_192, %c0_193] : memref<8x16x128xf32, #tpu.memory_space<vmem>>, vector<1x16x128xf32>
    %687 = vector.shape_cast %686 : vector<1x16x128xf32> to vector<16x128xf32>
    %688 = vector.shape_cast %684 : vector<16x128xf32> to vector<1x16x128xf32>
    tpu.vector_store %arg15[%685, %c0_192, %c0_193], %688 {strides = array<i32>} : memref<8x16x128xf32, #tpu.memory_space<vmem>>, vector<1x16x128xf32>,
    %689 = vector.shape_cast %680 : vector<16x1xi1> to vector<16x1xi1>
    %690 = vector.broadcast %689 : vector<16x1xi1> to vector<16x128xi1>
    %691 = arith.select %690, %675, %596 : vector<16x128xi1>, vector<16x128xf32>
    %c7_i32_194 = arith.constant 7 : i32
    %692 = arith.index_cast %c7_i32_194 : i32 to index
    %c0_195 = arith.constant 0 : index
    %c0_196 = arith.constant 0 : index
    %693 = vector.load %arg16[%692, %c0_195, %c0_196] : memref<8x16x384xf32, #tpu.memory_space<vmem>>, vector<1x16x384xf32>
    %694 = vector.shape_cast %693 : vector<1x16x384xf32> to vector<16x384xf32>
    %695 = arith.truncf %643 : vector<16x128xf32> to vector<16x128xbf16>
    %cst_197 = arith.constant dense<0.000000e+00> : vector<16x384xf32>
    %696 = tpu.matmul %695, %21, %cst_197 {dimension_numbers = #tpu.dot_dimension_numbers<[1], [0], [0], [1], [0, 0, 1, 1], [], []>} : vector<16x128xbf16>, vector<128x384xbf16>, vector<16x384xf32> -> vector<16x384xf32>
    %697 = vector.extract_strided_slice %694 {offsets = [0, 0], sizes = [16, 128], strides = [1, 1]} : vector<16x384xf32> to vector<16x128xf32>
    %698 = vector.extract_strided_slice %696 {offsets = [0, 0], sizes = [16, 128], strides = [1, 1]} : vector<16x384xf32> to vector<16x128xf32>
    %699 = arith.addf %697, %698 : vector<16x128xf32>
    %700 = arith.negf %699 : vector<16x128xf32>
    %701 = math.exp %700 : vector<16x128xf32>
    %cst_198 = arith.constant 1.000000e+00 : f32
    %702 = vector.broadcast %cst_198 : f32 to vector<16x128xf32>
    %703 = arith.addf %702, %701 : vector<16x128xf32>
    %704 = arith.divf %702, %703 : vector<16x128xf32>
    %705 = vector.extract_strided_slice %694 {offsets = [0, 128], sizes = [16, 128], strides = [1, 1]} : vector<16x384xf32> to vector<16x128xf32>
    %706 = vector.extract_strided_slice %696 {offsets = [0, 128], sizes = [16, 128], strides = [1, 1]} : vector<16x384xf32> to vector<16x128xf32>
    %707 = arith.addf %705, %706 : vector<16x128xf32>
    %708 = arith.negf %707 : vector<16x128xf32>
    %709 = math.exp %708 : vector<16x128xf32>
    %cst_199 = arith.constant 1.000000e+00 : f32
    %710 = vector.broadcast %cst_199 : f32 to vector<16x128xf32>
    %711 = arith.addf %710, %709 : vector<16x128xf32>
    %712 = arith.divf %710, %711 : vector<16x128xf32>
    %713 = vector.extract_strided_slice %694 {offsets = [0, 256], sizes = [16, 128], strides = [1, 1]} : vector<16x384xf32> to vector<16x128xf32>
    %714 = vector.extract_strided_slice %696 {offsets = [0, 256], sizes = [16, 128], strides = [1, 1]} : vector<16x384xf32> to vector<16x128xf32>
    %715 = vector.broadcast %23 : vector<1x128xf32> to vector<16x128xf32>
    %716 = arith.addf %714, %715 : vector<16x128xf32>
    %717 = arith.mulf %704, %716 : vector<16x128xf32>
    %718 = arith.addf %713, %717 : vector<16x128xf32>
    %719 = math.tanh %718 : vector<16x128xf32>
    %720 = arith.subf %643, %719 : vector<16x128xf32>
    %721 = arith.mulf %712, %720 : vector<16x128xf32>
    %722 = arith.addf %719, %721 : vector<16x128xf32>
    %723 = arith.index_cast %c7_i32_194 : i32 to index
    %c0_200 = arith.constant 0 : index
    %c0_201 = arith.constant 0 : index
    %724 = vector.load %arg4[%723, %c0_200, %c0_201] : memref<8x16x1xf32, #tpu.memory_space<vmem>>, vector<1x16x1xf32>
    %725 = vector.shape_cast %724 : vector<1x16x1xf32> to vector<16x1xf32>
    %cst_202 = arith.constant 0.000000e+00 : f32
    %726 = vector.broadcast %cst_202 : f32 to vector<16x1xf32>
    %727 = arith.cmpf ogt, %725, %726 : vector<16x1xf32>
    %cst_203 = arith.constant 0.000000e+00 : f32
    %728 = vector.shape_cast %727 : vector<16x1xi1> to vector<16x1xi1>
    %729 = vector.broadcast %728 : vector<16x1xi1> to vector<16x128xi1>
    %730 = vector.broadcast %cst_203 : f32 to vector<16x128xf32>
    %731 = arith.select %729, %722, %730 : vector<16x128xi1>, vector<16x128xf32>
    %732 = arith.index_cast %c7_i32_194 : i32 to index
    %c0_204 = arith.constant 0 : index
    %c0_205 = arith.constant 0 : index
    %733 = vector.load %arg14[%732, %c0_204, %c0_205] : memref<8x16x128xf32, #tpu.memory_space<vmem>>, vector<1x16x128xf32>
    %734 = vector.shape_cast %733 : vector<1x16x128xf32> to vector<16x128xf32>
    %735 = vector.shape_cast %731 : vector<16x128xf32> to vector<1x16x128xf32>
    tpu.vector_store %arg14[%732, %c0_204, %c0_205], %735 {strides = array<i32>} : memref<8x16x128xf32, #tpu.memory_space<vmem>>, vector<1x16x128xf32>,
    %736 = vector.shape_cast %727 : vector<16x1xi1> to vector<16x1xi1>
    %737 = vector.broadcast %736 : vector<16x1xi1> to vector<16x128xi1>
    %738 = arith.select %737, %722, %643 : vector<16x128xi1>, vector<16x128xf32>
    %c7_i32_206 = arith.constant 7 : i32
    %739 = arith.subi %c7_i32_206, %c7_i32_194 : i32
    %740 = arith.index_cast %739 : i32 to index
    %c0_207 = arith.constant 0 : index
    %c0_208 = arith.constant 0 : index
    %741 = vector.load %arg17[%740, %c0_207, %c0_208] : memref<8x16x384xf32, #tpu.memory_space<vmem>>, vector<1x16x384xf32>
    %742 = vector.shape_cast %741 : vector<1x16x384xf32> to vector<16x384xf32>
    %743 = arith.truncf %691 : vector<16x128xf32> to vector<16x128xbf16>
    %cst_209 = arith.constant dense<0.000000e+00> : vector<16x384xf32>
    %744 = tpu.matmul %743, %22, %cst_209 {dimension_numbers = #tpu.dot_dimension_numbers<[1], [0], [0], [1], [0, 0, 1, 1], [], []>} : vector<16x128xbf16>, vector<128x384xbf16>, vector<16x384xf32> -> vector<16x384xf32>
    %745 = vector.extract_strided_slice %742 {offsets = [0, 0], sizes = [16, 128], strides = [1, 1]} : vector<16x384xf32> to vector<16x128xf32>
    %746 = vector.extract_strided_slice %744 {offsets = [0, 0], sizes = [16, 128], strides = [1, 1]} : vector<16x384xf32> to vector<16x128xf32>
    %747 = arith.addf %745, %746 : vector<16x128xf32>
    %748 = arith.negf %747 : vector<16x128xf32>
    %749 = math.exp %748 : vector<16x128xf32>
    %cst_210 = arith.constant 1.000000e+00 : f32
    %750 = vector.broadcast %cst_210 : f32 to vector<16x128xf32>
    %751 = arith.addf %750, %749 : vector<16x128xf32>
    %752 = arith.divf %750, %751 : vector<16x128xf32>
    %753 = vector.extract_strided_slice %742 {offsets = [0, 128], sizes = [16, 128], strides = [1, 1]} : vector<16x384xf32> to vector<16x128xf32>
    %754 = vector.extract_strided_slice %744 {offsets = [0, 128], sizes = [16, 128], strides = [1, 1]} : vector<16x384xf32> to vector<16x128xf32>
    %755 = arith.addf %753, %754 : vector<16x128xf32>
    %756 = arith.negf %755 : vector<16x128xf32>
    %757 = math.exp %756 : vector<16x128xf32>
    %cst_211 = arith.constant 1.000000e+00 : f32
    %758 = vector.broadcast %cst_211 : f32 to vector<16x128xf32>
    %759 = arith.addf %758, %757 : vector<16x128xf32>
    %760 = arith.divf %758, %759 : vector<16x128xf32>
    %761 = vector.extract_strided_slice %742 {offsets = [0, 256], sizes = [16, 128], strides = [1, 1]} : vector<16x384xf32> to vector<16x128xf32>
    %762 = vector.extract_strided_slice %744 {offsets = [0, 256], sizes = [16, 128], strides = [1, 1]} : vector<16x384xf32> to vector<16x128xf32>
    %763 = vector.broadcast %24 : vector<1x128xf32> to vector<16x128xf32>
    %764 = arith.addf %762, %763 : vector<16x128xf32>
    %765 = arith.mulf %752, %764 : vector<16x128xf32>
    %766 = arith.addf %761, %765 : vector<16x128xf32>
    %767 = math.tanh %766 : vector<16x128xf32>
    %768 = arith.subf %691, %767 : vector<16x128xf32>
    %769 = arith.mulf %760, %768 : vector<16x128xf32>
    %770 = arith.addf %767, %769 : vector<16x128xf32>
    %771 = arith.index_cast %739 : i32 to index
    %c0_212 = arith.constant 0 : index
    %c0_213 = arith.constant 0 : index
    %772 = vector.load %arg5[%771, %c0_212, %c0_213] : memref<8x16x1xf32, #tpu.memory_space<vmem>>, vector<1x16x1xf32>
    %773 = vector.shape_cast %772 : vector<1x16x1xf32> to vector<16x1xf32>
    %cst_214 = arith.constant 0.000000e+00 : f32
    %774 = vector.broadcast %cst_214 : f32 to vector<16x1xf32>
    %775 = arith.cmpf ogt, %773, %774 : vector<16x1xf32>
    %cst_215 = arith.constant 0.000000e+00 : f32
    %776 = vector.shape_cast %775 : vector<16x1xi1> to vector<16x1xi1>
    %777 = vector.broadcast %776 : vector<16x1xi1> to vector<16x128xi1>
    %778 = vector.broadcast %cst_215 : f32 to vector<16x128xf32>
    %779 = arith.select %777, %770, %778 : vector<16x128xi1>, vector<16x128xf32>
    %780 = arith.index_cast %739 : i32 to index
    %c0_216 = arith.constant 0 : index
    %c0_217 = arith.constant 0 : index
    %781 = vector.load %arg15[%780, %c0_216, %c0_217] : memref<8x16x128xf32, #tpu.memory_space<vmem>>, vector<1x16x128xf32>
    %782 = vector.shape_cast %781 : vector<1x16x128xf32> to vector<16x128xf32>
    %783 = vector.shape_cast %779 : vector<16x128xf32> to vector<1x16x128xf32>
    tpu.vector_store %arg15[%780, %c0_216, %c0_217], %783 {strides = array<i32>} : memref<8x16x128xf32, #tpu.memory_space<vmem>>, vector<1x16x128xf32>,
    %784 = vector.shape_cast %775 : vector<16x1xi1> to vector<16x1xi1>
    %785 = vector.broadcast %784 : vector<16x1xi1> to vector<16x128xi1>
    %786 = arith.select %785, %770, %691 : vector<16x128xi1>, vector<16x128xf32>
    %c8_i32 = arith.constant 8 : i32
    %c0_218 = arith.constant 0 : index
    %c0_219 = arith.constant 0 : index
    %787 = vector.load %arg18[%c0_218, %c0_219] : memref<16x128xf32, #tpu.memory_space<vmem>>, vector<16x128xf32>
    tpu.vector_store %arg18[%c0_218, %c0_219], %738 {strides = array<i32>} : memref<16x128xf32, #tpu.memory_space<vmem>>, vector<16x128xf32>,
    %c0_220 = arith.constant 0 : index
    %c0_221 = arith.constant 0 : index
    %788 = vector.load %arg19[%c0_220, %c0_221] : memref<16x128xf32, #tpu.memory_space<vmem>>, vector<16x128xf32>
    tpu.vector_store %arg19[%c0_220, %c0_221], %786 {strides = array<i32>} : memref<16x128xf32, #tpu.memory_space<vmem>>, vector<16x128xf32>,
    return
  }
  func.func @transform_0(%arg0: i32, %arg1: i32) -> (i32, i32, i32) {
    %c0_i32 = arith.constant 0 : i32
    %c0_i32_0 = arith.constant 0 : i32
    return %arg1, %arg0, %c0_i32 : i32, i32, i32
  }
  func.func @transform_1(%arg0: i32, %arg1: i32) -> (i32, i32, i32) {
    %c0_i32 = arith.constant 0 : i32
    %0 = arith.subi %c0_i32, %arg1 : i32
    %c0_i32_0 = arith.constant 0 : i32
    %c0_i32_1 = arith.constant 0 : i32
    return %0, %arg0, %c0_i32_0 : i32, i32, i32
  }
  func.func @transform_2(%arg0: i32, %arg1: i32) -> (i32, i32, i32) {
    %c0_i32 = arith.constant 0 : i32
    %c0_i32_0 = arith.constant 0 : i32
    return %arg1, %arg0, %c0_i32 : i32, i32, i32
  }
  func.func @transform_3(%arg0: i32, %arg1: i32) -> (i32, i32, i32) {
    %c0_i32 = arith.constant 0 : i32
    %0 = arith.subi %c0_i32, %arg1 : i32
    %c0_i32_0 = arith.constant 0 : i32
    %c0_i32_1 = arith.constant 0 : i32
    return %0, %arg0, %c0_i32_0 : i32, i32, i32
  }
  func.func @transform_4(%arg0: i32, %arg1: i32) -> (i32, i32) {
    %c0_i32 = arith.constant 0 : i32
    %c0_i32_0 = arith.constant 0 : i32
    %c0_i32_1 = arith.constant 0 : i32
    return %c0_i32, %c0_i32_0 : i32, i32
  }
  func.func @transform_5(%arg0: i32, %arg1: i32) -> (i32, i32) {
    %c0_i32 = arith.constant 0 : i32
    %c0_i32_0 = arith.constant 0 : i32
    %c0_i32_1 = arith.constant 0 : i32
    return %c0_i32, %c0_i32_0 : i32, i32
  }
  func.func @transform_6(%arg0: i32, %arg1: i32) -> (i32, i32) {
    %c0_i32 = arith.constant 0 : i32
    %c0_i32_0 = arith.constant 0 : i32
    %c0_i32_1 = arith.constant 0 : i32
    return %c0_i32, %c0_i32_0 : i32, i32
  }
  func.func @transform_7(%arg0: i32, %arg1: i32) -> (i32, i32) {
    %c0_i32 = arith.constant 0 : i32
    %c0_i32_0 = arith.constant 0 : i32
    %c0_i32_1 = arith.constant 0 : i32
    return %c0_i32, %c0_i32_0 : i32, i32
  }
  func.func @transform_8(%arg0: i32, %arg1: i32) -> (i32, i32) {
    %c0_i32 = arith.constant 0 : i32
    %c0_i32_0 = arith.constant 0 : i32
    %c0_i32_1 = arith.constant 0 : i32
    return %c0_i32, %c0_i32_0 : i32, i32
  }
  func.func @transform_9(%arg0: i32, %arg1: i32) -> (i32, i32) {
    %c0_i32 = arith.constant 0 : i32
    %c0_i32_0 = arith.constant 0 : i32
    %c0_i32_1 = arith.constant 0 : i32
    return %c0_i32, %c0_i32_0 : i32, i32
  }
  func.func @transform_10(%arg0: i32, %arg1: i32) -> (i32, i32) {
    %c0_i32 = arith.constant 0 : i32
    %c0_i32_0 = arith.constant 0 : i32
    %c0_i32_1 = arith.constant 0 : i32
    return %c0_i32, %c0_i32_0 : i32, i32
  }
  func.func @transform_11(%arg0: i32, %arg1: i32) -> (i32, i32) {
    %c0_i32 = arith.constant 0 : i32
    %c0_i32_0 = arith.constant 0 : i32
    %c0_i32_1 = arith.constant 0 : i32
    return %c0_i32, %c0_i32_0 : i32, i32
  }
  func.func @transform_12(%arg0: i32, %arg1: i32) -> (i32, i32, i32) {
    %c0_i32 = arith.constant 0 : i32
    %c0_i32_0 = arith.constant 0 : i32
    return %arg1, %arg0, %c0_i32 : i32, i32, i32
  }
  func.func @transform_13(%arg0: i32, %arg1: i32) -> (i32, i32, i32) {
    %c0_i32 = arith.constant 0 : i32
    %0 = arith.subi %c0_i32, %arg1 : i32
    %c0_i32_0 = arith.constant 0 : i32
    %c0_i32_1 = arith.constant 0 : i32
    return %0, %arg0, %c0_i32_0 : i32, i32, i32
  }
}

</mosaic_0001>

<llo_original>
// kernel: rnn_forward.1
$region0: #{rnn_forward.1}
  #allocation0 [shape = 'u32[]', space=smem, size = 0x4, offset = 0x4, fixed_abs, tag = 'smem constant byte address 0x4 - core index']
  #allocation1 [shape = 'u32[72,128]{1,0:T(1,128)}', space=vmem, size = 0x9000, scoped, tag = 'internal scratch']
  #allocation2 [shape = 'f32[8,16,384]{2,1,0:T(8,128)}', space=vmem, size = 0x30000, scoped, tag = 'scratch operand']
  #allocation3 [shape = 'f32[8,16,384]{2,1,0:T(8,128)}', space=vmem, size = 0x30000, scoped, tag = 'scratch operand']
  #allocation4 [shape = 'f32[16,128]{1,0:T(8,128)}', space=vmem, size = 0x2000, scoped, tag = 'scratch operand']
  #allocation5 [shape = 'f32[16,128]{1,0:T(8,128)}', space=vmem, size = 0x2000, scoped, tag = 'scratch operand']
  %s0 = inlined_call_operand.vmem [shape: bf16[8,16,16], index: 0, kind: input, shape index: {}, may-alias: {0,1}]
  %s1 = inlined_call_operand.vmem [shape: bf16[8,16,16], index: 1, kind: input, shape index: {}, may-alias: {0,1}]
  %s2 = inlined_call_operand.vmem [shape: f32[8,16,1], index: 2, kind: input, shape index: {}, may-alias: {2,3}]
  %s3 = inlined_call_operand.vmem [shape: f32[8,16,1], index: 3, kind: input, shape index: {}, may-alias: {2,3}]
  %s4 = inlined_call_operand.vmem [shape: bf16[16,384], index: 4, kind: input, shape index: {}]
  %s5 = inlined_call_operand.vmem [shape: bf16[128,384], index: 5, kind: input, shape index: {}]
  %s6 = inlined_call_operand.vmem [shape: f32[1,384], index: 6, kind: input, shape index: {}]
  %s7 = inlined_call_operand.vmem [shape: f32[1,128], index: 7, kind: input, shape index: {}]
  %s8 = inlined_call_operand.vmem [shape: bf16[16,384], index: 8, kind: input, shape index: {}]
  %s9 = inlined_call_operand.vmem [shape: bf16[128,384], index: 9, kind: input, shape index: {}]
  %s10 = inlined_call_operand.vmem [shape: f32[1,384], index: 10, kind: input, shape index: {}]
  %s11 = inlined_call_operand.vmem [shape: f32[1,128], index: 11, kind: input, shape index: {}]
  %s12 = inlined_call_operand.vmem [shape: f32[8,16,128], index: 12, kind: output, shape index: {0}]
  %s13 = inlined_call_operand.vmem [shape: f32[8,16,128], index: 13, kind: output, shape index: {1}]
  %14 = xla_tuple %s12, %s13
  %s15 = sld [smem:[#allocation0]]
  $region70: #{rnn_forward.1} parent=0
    _
  %s17 = ssub.s32 1, %s15
  %s18 = scalar_select 0, %s17, %s15
  // Predicated region
  $region2: #{rnn_forward.1} parent=0 // pred_check
    _
  $region3: #{rnn_forward.1} parent=0 // pred_check_branch
    %20 = sbr.rel (0) target = $region5
  $region4: #{rnn_forward.1} parent=0 // pred_region
    _
  $region5: #{rnn_forward.1} parent=0 // pred_fallthru
    _
  // Predicated region
  $region6: #{rnn_forward.1} parent=0 // pred_check
    _
  $region7: #{rnn_forward.1} parent=0 // pred_check_branch
    %22 = sbr.rel (0) target = $region9
  $region8: #{rnn_forward.1} parent=0 // pred_region
    %s23 = ssub.s32 0, 0
    %s24 = smul.u32 8, %s23
    %p25 = scmp.lt.s32.totalorder %s24, 7
    %s26 = scalar_select %p25, %s24, 7
    %s27 = smul.addr %s26, 2
    %s28 = smul.addr %s27, 4
    %s29 = scalar_lea.vmem %s1, %s28
    %s30 = ssub.s32 0, 0
    %s31 = smul.u32 8, %s30
  $region9: #{rnn_forward.1} parent=0 // pred_fallthru
    _
  // Predicated region
  $region10: #{rnn_forward.1} parent=0 // pred_check
    _
  $region11: #{rnn_forward.1} parent=0 // pred_check_branch
    %33 = sbr.rel (0) target = $region13
  $region12: #{rnn_forward.1} parent=0 // pred_region
    _
  $region13: #{rnn_forward.1} parent=0 // pred_fallthru
    _
  // Predicated region
  $region14: #{rnn_forward.1} parent=0 // pred_check
    _
  $region15: #{rnn_forward.1} parent=0 // pred_check_branch
    %35 = sbr.rel (0) target = $region17
  $region16: #{rnn_forward.1} parent=0 // pred_region
    %s36 = ssub.s32 0, 0
    %s37 = smul.u32 8, %s36
    %p38 = scmp.lt.s32.totalorder %s37, 7
    %s39 = scalar_select %p38, %s37, 7
    %s40 = smul.addr %s39, 2
    %s41 = smul.addr %s40, 8
    %s42 = scalar_lea.vmem %s3, %s41
    %s43 = ssub.s32 0, 0
    %s44 = smul.u32 8, %s43
  $region17: #{rnn_forward.1} parent=0 // pred_fallthru
    _
  // Predicated region
  $region18: #{rnn_forward.1} parent=0 // pred_check
    _
  $region19: #{rnn_forward.1} parent=0 // pred_check_branch
    %46 = sbr.rel (0) target = $region21
  $region20: #{rnn_forward.1} parent=0 // pred_region
    _
  $region21: #{rnn_forward.1} parent=0 // pred_fallthru
    _
  // Predicated region
  $region22: #{rnn_forward.1} parent=0 // pred_check
    _
  $region23: #{rnn_forward.1} parent=0 // pred_check_branch
    %48 = sbr.rel (0) target = $region25
  $region24: #{rnn_forward.1} parent=0 // pred_region
    _
  $region25: #{rnn_forward.1} parent=0 // pred_fallthru
    _
  // Predicated region
  $region26: #{rnn_forward.1} parent=0 // pred_check
    _
  $region27: #{rnn_forward.1} parent=0 // pred_check_branch
    %50 = sbr.rel (0) target = $region29
  $region28: #{rnn_forward.1} parent=0 // pred_region
    _
  $region29: #{rnn_forward.1} parent=0 // pred_fallthru
    _
  // Predicated region
  $region30: #{rnn_forward.1} parent=0 // pred_check
    _
  $region31: #{rnn_forward.1} parent=0 // pred_check_branch
    %52 = sbr.rel (0) target = $region33
  $region32: #{rnn_forward.1} parent=0 // pred_region
    _
  $region33: #{rnn_forward.1} parent=0 // pred_fallthru
    _
  // Predicated region
  $region34: #{rnn_forward.1} parent=0 // pred_check
    _
  $region35: #{rnn_forward.1} parent=0 // pred_check_branch
    %54 = sbr.rel (0) target = $region37
  $region36: #{rnn_forward.1} parent=0 // pred_region
    _
  $region37: #{rnn_forward.1} parent=0 // pred_fallthru
    _
  // Predicated region
  $region38: #{rnn_forward.1} parent=0 // pred_check
    _
  $region39: #{rnn_forward.1} parent=0 // pred_check_branch
    %56 = sbr.rel (0) target = $region41
  $region40: #{rnn_forward.1} parent=0 // pred_region
    _
  $region41: #{rnn_forward.1} parent=0 // pred_fallthru
    _
  // Predicated region
  $region42: #{rnn_forward.1} parent=0 // pred_check
    _
  $region43: #{rnn_forward.1} parent=0 // pred_check_branch
    %58 = sbr.rel (0) target = $region45
  $region44: #{rnn_forward.1} parent=0 // pred_region
    _
  $region45: #{rnn_forward.1} parent=0 // pred_fallthru
    _
  // Predicated region
  $region46: #{rnn_forward.1} parent=0 // pred_check
    _
  $region47: #{rnn_forward.1} parent=0 // pred_check_branch
    %60 = sbr.rel (0) target = $region49
  $region48: #{rnn_forward.1} parent=0 // pred_region
    _
  $region49: #{rnn_forward.1} parent=0 // pred_fallthru
    _
  %s61 = ssub.s32 0, 0
  %s62 = smul.u32 8, %s61
  %p63 = scmp.lt.s32.totalorder %s62, 7
  %s64 = scalar_select %p63, %s62, 7
  %s65 = smul.addr %s64, 2
  %s66 = smul.addr %s65, 4
  %s67 = scalar_lea.vmem %s1, %s66
  %s68 = ssub.s32 0, 0
  %s69 = smul.u32 8, %s68
  %p70 = scmp.lt.s32.totalorder %s69, 7
  %s71 = scalar_select %p70, %s69, 7
  %s72 = smul.addr %s71, 2
  %s73 = smul.addr %s72, 8
  %s74 = scalar_lea.vmem %s3, %s73
  %s75 = ssub.s32 0, 0
  %s76 = smul.u32 8, %s75
  %p77 = scmp.lt.s32.totalorder %s76, 7
  %s78 = scalar_select %p77, %s76, 7
  %s79 = smul.addr %s78, 2
  %s80 = smul.addr %s79, 8
  %s81 = scalar_lea.vmem %s13, %s80
  %s82 = ssub.s32 0, 0
  %s83 = smul.u32 8, %s82
  %p84 = scmp.lt.s32.totalorder %s83, 7
  %s85 = scalar_select %p84, %s83, 7
  %s86 = smul.addr %s85, 2
  %s87 = smul.addr %s86, 4
  %s88 = scalar_lea.vmem %s1, %s87
  %s89 = ssub.s32 0, 0
  %s90 = smul.u32 8, %s89
  %s91 = ssub.s32 0, 0
  %s92 = smul.u32 8, %s91
  %p93 = scmp.lt.s32.totalorder %s92, 7
  %s94 = scalar_select %p93, %s92, 7
  %s95 = smul.addr %s94, 2
  %s96 = smul.addr %s95, 8
  %s97 = scalar_lea.vmem %s3, %s96
  %s98 = ssub.s32 0, 0
  %s99 = smul.u32 8, %s98
  %s100 = ssub.s32 0, 0
  %s101 = smul.u32 8, %s100
  %p102 = scmp.lt.s32.totalorder %s101, 7
  %s103 = scalar_select %p102, %s101, 7
  %s104 = smul.addr %s103, 2
  %s105 = smul.addr %s104, 8
  %s106 = scalar_lea.vmem %s13, %s105
  %s107 = ssub.s32 0, 0
  %s108 = smul.u32 8, %s107
  %p110 = scmp.eq.s32.totalorder 0, 0
  // Predicated region
  $region50: #{rnn_forward.1} parent=0 // pred_check
    %p111 = pneg %p110
  $region51: #{rnn_forward.1} parent=0 // pred_check_branch
    %113 = sbr.rel (%p111) target = $region53
  $region52: #{rnn_forward.1} parent=0 // pred_region
    %114 = vst [vmem:[#allocation4] sm:$0xff] 0.0
    %115 = vst [vmem:[#allocation4 + $0x8] sm:$0xff] 0.0
    %116 = vst [vmem:[#allocation5] sm:$0xff] 0.0
    %117 = vst [vmem:[#allocation5 + $0x8] sm:$0xff] 0.0
  $region53: #{rnn_forward.1} parent=0 // pred_fallthru
    _
  %v118 = vld [vmem:[%s0] sm:$0xf]
  %v119 = vld [vmem:[%s0 + $0x4] sm:$0xf]
  %v120 = vld [vmem:[%s0 + $0x8] sm:$0xf]
  %v121 = vld [vmem:[%s0 + $0xc] sm:$0xf]
  %v122 = vld [vmem:[%s0 + $0x10] sm:$0xf]
  %v123 = vld [vmem:[%s0 + $0x14] sm:$0xf]
  %v124 = vld [vmem:[%s0 + $0x18] sm:$0xf]
  %v125 = vld [vmem:[%s0 + $0x1c] sm:$0xf]
  %v126 = vld [vmem:[%s0 + $0x20] sm:$0xf]
  %v127 = vld [vmem:[%s0 + $0x24] sm:$0xf]
  %v128 = vld [vmem:[%s0 + $0x28] sm:$0xf]
  %v129 = vld [vmem:[%s0 + $0x2c] sm:$0xf]
  %v130 = vld [vmem:[%s0 + $0x30] sm:$0xf]
  %v131 = vld [vmem:[%s0 + $0x34] sm:$0xf]
  %v132 = vld [vmem:[%s0 + $0x38] sm:$0xf]
  %v133 = vld [vmem:[%s0 + $0x3c] sm:$0xf]
  %v134 = vld [vmem:[%s4] sm:$0xff]
  %v135 = vld [vmem:[%s4 + $0x8] sm:$0xf]
  %v136 = vld [vmem:[%s4 + $0xc] sm:$0xff]
  %v137 = vld [vmem:[%s4 + $0x14] sm:$0xf]
  %v138 = vld [vmem:[%s6] sm:$0x7]
  %v140 = vperm.slane %v138, 0
  %v141 = vperm.slane %v138, 1
  %v142 = vperm.slane %v138, 2
  %v162 = vunpack.c.l.b16 %v118
  %v163 = vunpack.c.l.b16 %v119
  %v164 = vunpack.c.l.b16 %v120
  %v165 = vunpack.c.l.b16 %v121
  %v166 = vunpack.c.l.b16 %v122
  %v167 = vunpack.c.l.b16 %v123
  %v168 = vunpack.c.l.b16 %v124
  %v169 = vunpack.c.l.b16 %v125
  %v170 = vunpack.c.l.b16 %v126
  %v171 = vunpack.c.l.b16 %v127
  %v172 = vunpack.c.l.b16 %v128
  %v173 = vunpack.c.l.b16 %v129
  %v174 = vunpack.c.l.b16 %v130
  %v175 = vunpack.c.l.b16 %v131
  %v176 = vunpack.c.l.b16 %v132
  %v177 = vunpack.c.l.b16 %v133
  %v178 = vpack.c.b16 %v163, %v162
  %v179 = vpack.c.b16 %v165, %v164
  %v180 = vpack.c.b16 %v167, %v166
  %v181 = vpack.c.b16 %v169, %v168
  %v182 = vpack.c.b16 %v171, %v170
  %v183 = vpack.c.b16 %v173, %v172
  %v184 = vpack.c.b16 %v175, %v174
  %v185 = vpack.c.b16 %v177, %v176
  %v190 = vunpack.c.l.b16 %v134
  %v191 = vunpack.c.h.b16 %v134
  %v192 = vunpack.c.l.b16 %v135
  %v193 = vunpack.c.l.b16 %v136
  %v194 = vunpack.c.h.b16 %v136
  %v195 = vunpack.c.l.b16 %v137
  %v196 = vpack.c.b16 %v193, %v190
  %v197 = vpack.c.b16 %v194, %v191
  %v198 = vpack.c.b16 %v195, %v192
  %vm202 = vcmask 130048
  %v204 = vsel %vm202, %v178, 0
  %v207 = vsel %vm202, %v179, 0
  %v210 = vsel %vm202, %v180, 0
  %v213 = vsel %vm202, %v181, 0
  %v216 = vsel %vm202, %v182, 0
  %v219 = vsel %vm202, %v183, 0
  %v222 = vsel %vm202, %v184, 0
  %v225 = vsel %vm202, %v185, 0
  %227 = vmatpush.bf16.msra.mxu0 0
  %228 = vmatpush.bf16.msra.mxu0 0
  %229 = vmatpush.bf16.msra.mxu0 0
  %230 = vmatpush.bf16.msra.mxu0 0
  %231 = vmatpush.bf16.msra.mxu0 0
  %232 = vmatpush.bf16.msra.mxu0 0
  %233 = vmatpush.bf16.msra.mxu0 0
  %234 = vmatpush.bf16.msra.mxu0 %v196
  %235 = vmatmul.bf16.gmra.mxu0 %v204
  %v236 = vpop.f32.mrf.mxu0
  %v237 = vadd.f32 %v140, %v236
  %v238 = vpop.f32.mrf.mxu0
  %v239 = vadd.f32 %v140, %v238
  %240 = vmatmul.bf16.gmra.mxu0 %v207
  %v241 = vpop.f32.mrf.mxu0
  %v242 = vadd.f32 %v140, %v241
  %v243 = vpop.f32.mrf.mxu0
  %v244 = vadd.f32 %v140, %v243
  %245 = vmatmul.bf16.gmra.mxu0 %v210
  %v246 = vpop.f32.mrf.mxu0
  %v247 = vadd.f32 %v140, %v246
  %v248 = vpop.f32.mrf.mxu0
  %v249 = vadd.f32 %v140, %v248
  %250 = vmatmul.bf16.gmra.mxu0 %v213
  %v251 = vpop.f32.mrf.mxu0
  %v252 = vadd.f32 %v140, %v251
  %v253 = vpop.f32.mrf.mxu0
  %v254 = vadd.f32 %v140, %v253
  %255 = vmatmul.bf16.gmra.mxu0 %v216
  %v256 = vpop.f32.mrf.mxu0
  %v257 = vadd.f32 %v140, %v256
  %v258 = vpop.f32.mrf.mxu0
  %v259 = vadd.f32 %v140, %v258
  %260 = vmatmul.bf16.gmra.mxu0 %v219
  %v261 = vpop.f32.mrf.mxu0
  %v262 = vadd.f32 %v140, %v261
  %v263 = vpop.f32.mrf.mxu0
  %v264 = vadd.f32 %v140, %v263
  %265 = vmatmul.bf16.gmra.mxu0 %v222
  %v266 = vpop.f32.mrf.mxu0
  %v267 = vadd.f32 %v140, %v266
  %v268 = vpop.f32.mrf.mxu0
  %v269 = vadd.f32 %v140, %v268
  %270 = vmatmul.bf16.gmra.mxu0 %v225
  %v271 = vpop.f32.mrf.mxu0
  %v272 = vadd.f32 %v140, %v271
  %v273 = vpop.f32.mrf.mxu0
  %v274 = vadd.f32 %v140, %v273
  %275 = vdwg.mxu0
  %276 = vmatpush.bf16.msra.mxu0 0
  %277 = vmatpush.bf16.msra.mxu0 0
  %278 = vmatpush.bf16.msra.mxu0 0
  %279 = vmatpush.bf16.msra.mxu0 0
  %280 = vmatpush.bf16.msra.mxu0 0
  %281 = vmatpush.bf16.msra.mxu0 0
  %282 = vmatpush.bf16.msra.mxu0 0
  %283 = vmatpush.bf16.msra.mxu0 %v197
  %284 = vmatmul.bf16.gmra.mxu0 %v204
  %v285 = vpop.f32.mrf.mxu0
  %v286 = vadd.f32 %v141, %v285
  %v287 = vpop.f32.mrf.mxu0
  %v288 = vadd.f32 %v141, %v287
  %289 = vmatmul.bf16.gmra.mxu0 %v207
  %v290 = vpop.f32.mrf.mxu0
  %v291 = vadd.f32 %v141, %v290
  %v292 = vpop.f32.mrf.mxu0
  %v293 = vadd.f32 %v141, %v292
  %294 = vmatmul.bf16.gmra.mxu0 %v210
  %v295 = vpop.f32.mrf.mxu0
  %v296 = vadd.f32 %v141, %v295
  %v297 = vpop.f32.mrf.mxu0
  %v298 = vadd.f32 %v141, %v297
  %299 = vmatmul.bf16.gmra.mxu0 %v213
  %v300 = vpop.f32.mrf.mxu0
  %v301 = vadd.f32 %v141, %v300
  %v302 = vpop.f32.mrf.mxu0
  %v303 = vadd.f32 %v141, %v302
  %304 = vmatmul.bf16.gmra.mxu0 %v216
  %v305 = vpop.f32.mrf.mxu0
  %v306 = vadd.f32 %v141, %v305
  %v307 = vpop.f32.mrf.mxu0
  %v308 = vadd.f32 %v141, %v307
  %309 = vmatmul.bf16.gmra.mxu0 %v219
  %v310 = vpop.f32.mrf.mxu0
  %v311 = vadd.f32 %v141, %v310
  %v312 = vpop.f32.mrf.mxu0
  %v313 = vadd.f32 %v141, %v312
  %314 = vmatmul.bf16.gmra.mxu0 %v222
  %v315 = vpop.f32.mrf.mxu0
  %v316 = vadd.f32 %v141, %v315
  %v317 = vpop.f32.mrf.mxu0
  %v318 = vadd.f32 %v141, %v317
  %319 = vmatmul.bf16.gmra.mxu0 %v225
  %v320 = vpop.f32.mrf.mxu0
  %v321 = vadd.f32 %v141, %v320
  %v322 = vpop.f32.mrf.mxu0
  %v323 = vadd.f32 %v141, %v322
  %324 = vdwg.mxu0
  %325 = vmatpush.bf16.msra.mxu0 0
  %326 = vmatpush.bf16.msra.mxu0 0
  %327 = vmatpush.bf16.msra.mxu0 0
  %328 = vmatpush.bf16.msra.mxu0 0
  %329 = vmatpush.bf16.msra.mxu0 0
  %330 = vmatpush.bf16.msra.mxu0 0
  %331 = vmatpush.bf16.msra.mxu0 0
  %332 = vmatpush.bf16.msra.mxu0 %v198
  %333 = vmatmul.bf16.gmra.mxu0 %v204
  %v334 = vpop.f32.mrf.mxu0
  %v335 = vadd.f32 %v142, %v334
  %v336 = vpop.f32.mrf.mxu0
  %v337 = vadd.f32 %v142, %v336
  %338 = vmatmul.bf16.gmra.mxu0 %v207
  %v339 = vpop.f32.mrf.mxu0
  %v340 = vadd.f32 %v142, %v339
  %v341 = vpop.f32.mrf.mxu0
  %v342 = vadd.f32 %v142, %v341
  %343 = vmatmul.bf16.gmra.mxu0 %v210
  %v344 = vpop.f32.mrf.mxu0
  %v345 = vadd.f32 %v142, %v344
  %v346 = vpop.f32.mrf.mxu0
  %v347 = vadd.f32 %v142, %v346
  %348 = vmatmul.bf16.gmra.mxu0 %v213
  %v349 = vpop.f32.mrf.mxu0
  %v350 = vadd.f32 %v142, %v349
  %v351 = vpop.f32.mrf.mxu0
  %v352 = vadd.f32 %v142, %v351
  %353 = vmatmul.bf16.gmra.mxu0 %v216
  %v354 = vpop.f32.mrf.mxu0
  %v355 = vadd.f32 %v142, %v354
  %v356 = vpop.f32.mrf.mxu0
  %v357 = vadd.f32 %v142, %v356
  %358 = vmatmul.bf16.gmra.mxu0 %v219
  %v359 = vpop.f32.mrf.mxu0
  %v360 = vadd.f32 %v142, %v359
  %v361 = vpop.f32.mrf.mxu0
  %v362 = vadd.f32 %v142, %v361
  %363 = vmatmul.bf16.gmra.mxu0 %v222
  %v364 = vpop.f32.mrf.mxu0
  %v365 = vadd.f32 %v142, %v364
  %v366 = vpop.f32.mrf.mxu0
  %v367 = vadd.f32 %v142, %v366
  %368 = vmatmul.bf16.gmra.mxu0 %v225
  %v369 = vpop.f32.mrf.mxu0
  %v370 = vadd.f32 %v142, %v369
  %v371 = vpop.f32.mrf.mxu0
  %v372 = vadd.f32 %v142, %v371
  %373 = vdwg.mxu0
  %374 = vst [vmem:[#allocation2] sm:$0xff] %v237
  %375 = vst [vmem:[#allocation2 + $0x8] sm:$0xff] %v286
  %376 = vst [vmem:[#allocation2 + $0x10] sm:$0xff] %v335
  %377 = vst [vmem:[#allocation2 + $0x18] sm:$0xff] %v239
  %378 = vst [vmem:[#allocation2 + $0x20] sm:$0xff] %v288
  %379 = vst [vmem:[#allocation2 + $0x28] sm:$0xff] %v337
  %380 = vst [vmem:[#allocation2 + $0x30] sm:$0xff] %v242
  %381 = vst [vmem:[#allocation2 + $0x38] sm:$0xff] %v291
  %382 = vst [vmem:[#allocation2 + $0x40] sm:$0xff] %v340
  %383 = vst [vmem:[#allocation2 + $0x48] sm:$0xff] %v244
  %384 = vst [vmem:[#allocation2 + $0x50] sm:$0xff] %v293
  %385 = vst [vmem:[#allocation2 + $0x58] sm:$0xff] %v342
  %386 = vst [vmem:[#allocation2 + $0x60] sm:$0xff] %v247
  %387 = vst [vmem:[#allocation2 + $0x68] sm:$0xff] %v296
  %388 = vst [vmem:[#allocation2 + $0x70] sm:$0xff] %v345
  %389 = vst [vmem:[#allocation2 + $0x78] sm:$0xff] %v249
  %390 = vst [vmem:[#allocation2 + $0x80] sm:$0xff] %v298
  %391 = vst [vmem:[#allocation2 + $0x88] sm:$0xff] %v347
  %392 = vst [vmem:[#allocation2 + $0x90] sm:$0xff] %v252
  %393 = vst [vmem:[#allocation2 + $0x98] sm:$0xff] %v301
  %394 = vst [vmem:[#allocation2 + $0xa0] sm:$0xff] %v350
  %395 = vst [vmem:[#allocation2 + $0xa8] sm:$0xff] %v254
  %396 = vst [vmem:[#allocation2 + $0xb0] sm:$0xff] %v303
  %397 = vst [vmem:[#allocation2 + $0xb8] sm:$0xff] %v352
  %398 = vst [vmem:[#allocation2 + $0xc0] sm:$0xff] %v257
  %399 = vst [vmem:[#allocation2 + $0xc8] sm:$0xff] %v306
  %400 = vst [vmem:[#allocation2 + $0xd0] sm:$0xff] %v355
  %401 = vst [vmem:[#allocation2 + $0xd8] sm:$0xff] %v259
  %402 = vst [vmem:[#allocation2 + $0xe0] sm:$0xff] %v308
  %403 = vst [vmem:[#allocation2 + $0xe8] sm:$0xff] %v357
  %404 = vst [vmem:[#allocation2 + $0xf0] sm:$0xff] %v262
  %405 = vst [vmem:[#allocation2 + $0xf8] sm:$0xff] %v311
  %406 = vst [vmem:[#allocation2 + $0x100] sm:$0xff] %v360
  %407 = vst [vmem:[#allocation2 + $0x108] sm:$0xff] %v264
  %408 = vst [vmem:[#allocation2 + $0x110] sm:$0xff] %v313
  %409 = vst [vmem:[#allocation2 + $0x118] sm:$0xff] %v362
  %410 = vst [vmem:[#allocation2 + $0x120] sm:$0xff] %v267
  %411 = vst [vmem:[#allocation2 + $0x128] sm:$0xff] %v316
  %412 = vst [vmem:[#allocation2 + $0x130] sm:$0xff] %v365
  %413 = vst [vmem:[#allocation2 + $0x138] sm:$0xff] %v269
  %414 = vst [vmem:[#allocation2 + $0x140] sm:$0xff] %v318
  %415 = vst [vmem:[#allocation2 + $0x148] sm:$0xff] %v367
  %416 = vst [vmem:[#allocation2 + $0x150] sm:$0xff] %v272
  %417 = vst [vmem:[#allocation2 + $0x158] sm:$0xff] %v321
  %418 = vst [vmem:[#allocation2 + $0x160] sm:$0xff] %v370
  %419 = vst [vmem:[#allocation2 + $0x168] sm:$0xff] %v274
  %420 = vst [vmem:[#allocation2 + $0x170] sm:$0xff] %v323
  %421 = vst [vmem:[#allocation2 + $0x178] sm:$0xff] %v372
  %v422 = vld [vmem:[%s88] sm:$0xf]
  %v423 = vld [vmem:[%s88 + $0x4] sm:$0xf]
  %v424 = vld [vmem:[%s88 + $0x8] sm:$0xf]
  %v425 = vld [vmem:[%s88 + $0xc] sm:$0xf]
  %v426 = vld [vmem:[%s88 + $0x10] sm:$0xf]
  %v427 = vld [vmem:[%s88 + $0x14] sm:$0xf]
  %v428 = vld [vmem:[%s88 + $0x18] sm:$0xf]
  %v429 = vld [vmem:[%s88 + $0x1c] sm:$0xf]
  %v430 = vld [vmem:[%s88 + $0x20] sm:$0xf]
  %v431 = vld [vmem:[%s88 + $0x24] sm:$0xf]
  %v432 = vld [vmem:[%s88 + $0x28] sm:$0xf]
  %v433 = vld [vmem:[%s88 + $0x2c] sm:$0xf]
  %v434 = vld [vmem:[%s88 + $0x30] sm:$0xf]
  %v435 = vld [vmem:[%s88 + $0x34] sm:$0xf]
  %v436 = vld [vmem:[%s88 + $0x38] sm:$0xf]
  %v437 = vld [vmem:[%s88 + $0x3c] sm:$0xf]
  %v438 = vld [vmem:[%s8] sm:$0xff]
  %v439 = vld [vmem:[%s8 + $0x8] sm:$0xf]
  %v440 = vld [vmem:[%s8 + $0xc] sm:$0xff]
  %v441 = vld [vmem:[%s8 + $0x14] sm:$0xf]
  %v442 = vld [vmem:[%s10] sm:$0x7]
  %v444 = vperm.slane %v442, 0
  %v445 = vperm.slane %v442, 1
  %v446 = vperm.slane %v442, 2
  %v466 = vunpack.c.l.b16 %v422
  %v467 = vunpack.c.l.b16 %v423
  %v468 = vunpack.c.l.b16 %v424
  %v469 = vunpack.c.l.b16 %v425
  %v470 = vunpack.c.l.b16 %v426
  %v471 = vunpack.c.l.b16 %v427
  %v472 = vunpack.c.l.b16 %v428
  %v473 = vunpack.c.l.b16 %v429
  %v474 = vunpack.c.l.b16 %v430
  %v475 = vunpack.c.l.b16 %v431
  %v476 = vunpack.c.l.b16 %v432
  %v477 = vunpack.c.l.b16 %v433
  %v478 = vunpack.c.l.b16 %v434
  %v479 = vunpack.c.l.b16 %v435
  %v480 = vunpack.c.l.b16 %v436
  %v481 = vunpack.c.l.b16 %v437
  %v482 = vpack.c.b16 %v467, %v466
  %v483 = vpack.c.b16 %v469, %v468
  %v484 = vpack.c.b16 %v471, %v470
  %v485 = vpack.c.b16 %v473, %v472
  %v486 = vpack.c.b16 %v475, %v474
  %v487 = vpack.c.b16 %v477, %v476
  %v488 = vpack.c.b16 %v479, %v478
  %v489 = vpack.c.b16 %v481, %v480
  %v494 = vunpack.c.l.b16 %v438
  %v495 = vunpack.c.h.b16 %v438
  %v496 = vunpack.c.l.b16 %v439
  %v497 = vunpack.c.l.b16 %v440
  %v498 = vunpack.c.h.b16 %v440
  %v499 = vunpack.c.l.b16 %v441
  %v500 = vpack.c.b16 %v497, %v494
  %v501 = vpack.c.b16 %v498, %v495
  %v502 = vpack.c.b16 %v499, %v496
  %v507 = vsel %vm202, %v482, 0
  %v510 = vsel %vm202, %v483, 0
  %v513 = vsel %vm202, %v484, 0
  %v516 = vsel %vm202, %v485, 0
  %v519 = vsel %vm202, %v486, 0
  %v522 = vsel %vm202, %v487, 0
  %v525 = vsel %vm202, %v488, 0
  %v528 = vsel %vm202, %v489, 0
  %530 = vmatpush.bf16.msra.mxu0 0
  %531 = vmatpush.bf16.msra.mxu0 0
  %532 = vmatpush.bf16.msra.mxu0 0
  %533 = vmatpush.bf16.msra.mxu0 0
  %534 = vmatpush.bf16.msra.mxu0 0
  %535 = vmatpush.bf16.msra.mxu0 0
  %536 = vmatpush.bf16.msra.mxu0 0
  %537 = vmatpush.bf16.msra.mxu0 %v500
  %538 = vmatmul.bf16.gmra.mxu0 %v507
  %v539 = vpop.f32.mrf.mxu0
  %v540 = vadd.f32 %v444, %v539
  %v541 = vpop.f32.mrf.mxu0
  %v542 = vadd.f32 %v444, %v541
  %543 = vmatmul.bf16.gmra.mxu0 %v510
  %v544 = vpop.f32.mrf.mxu0
  %v545 = vadd.f32 %v444, %v544
  %v546 = vpop.f32.mrf.mxu0
  %v547 = vadd.f32 %v444, %v546
  %548 = vmatmul.bf16.gmra.mxu0 %v513
  %v549 = vpop.f32.mrf.mxu0
  %v550 = vadd.f32 %v444, %v549
  %v551 = vpop.f32.mrf.mxu0
  %v552 = vadd.f32 %v444, %v551
  %553 = vmatmul.bf16.gmra.mxu0 %v516
  %v554 = vpop.f32.mrf.mxu0
  %v555 = vadd.f32 %v444, %v554
  %v556 = vpop.f32.mrf.mxu0
  %v557 = vadd.f32 %v444, %v556
  %558 = vmatmul.bf16.gmra.mxu0 %v519
  %v559 = vpop.f32.mrf.mxu0
  %v560 = vadd.f32 %v444, %v559
  %v561 = vpop.f32.mrf.mxu0
  %v562 = vadd.f32 %v444, %v561
  %563 = vmatmul.bf16.gmra.mxu0 %v522
  %v564 = vpop.f32.mrf.mxu0
  %v565 = vadd.f32 %v444, %v564
  %v566 = vpop.f32.mrf.mxu0
  %v567 = vadd.f32 %v444, %v566
  %568 = vmatmul.bf16.gmra.mxu0 %v525
  %v569 = vpop.f32.mrf.mxu0
  %v570 = vadd.f32 %v444, %v569
  %v571 = vpop.f32.mrf.mxu0
  %v572 = vadd.f32 %v444, %v571
  %573 = vmatmul.bf16.gmra.mxu0 %v528
  %v574 = vpop.f32.mrf.mxu0
  %v575 = vadd.f32 %v444, %v574
  %v576 = vpop.f32.mrf.mxu0
  %v577 = vadd.f32 %v444, %v576
  %578 = vdwg.mxu0
  %579 = vmatpush.bf16.msra.mxu0 0
  %580 = vmatpush.bf16.msra.mxu0 0
  %581 = vmatpush.bf16.msra.mxu0 0
  %582 = vmatpush.bf16.msra.mxu0 0
  %583 = vmatpush.bf16.msra.mxu0 0
  %584 = vmatpush.bf16.msra.mxu0 0
  %585 = vmatpush.bf16.msra.mxu0 0
  %586 = vmatpush.bf16.msra.mxu0 %v501
  %587 = vmatmul.bf16.gmra.mxu0 %v507
  %v588 = vpop.f32.mrf.mxu0
  %v589 = vadd.f32 %v445, %v588
  %v590 = vpop.f32.mrf.mxu0
  %v591 = vadd.f32 %v445, %v590
  %592 = vmatmul.bf16.gmra.mxu0 %v510
  %v593 = vpop.f32.mrf.mxu0
  %v594 = vadd.f32 %v445, %v593
  %v595 = vpop.f32.mrf.mxu0
  %v596 = vadd.f32 %v445, %v595
  %597 = vmatmul.bf16.gmra.mxu0 %v513
  %v598 = vpop.f32.mrf.mxu0
  %v599 = vadd.f32 %v445, %v598
  %v600 = vpop.f32.mrf.mxu0
  %v601 = vadd.f32 %v445, %v600
  %602 = vmatmul.bf16.gmra.mxu0 %v516
  %v603 = vpop.f32.mrf.mxu0
  %v604 = vadd.f32 %v445, %v603
  %v605 = vpop.f32.mrf.mxu0
  %v606 = vadd.f32 %v445, %v605
  %607 = vmatmul.bf16.gmra.mxu0 %v519
  %v608 = vpop.f32.mrf.mxu0
  %v609 = vadd.f32 %v445, %v608
  %v610 = vpop.f32.mrf.mxu0
  %v611 = vadd.f32 %v445, %v610
  %612 = vmatmul.bf16.gmra.mxu0 %v522
  %v613 = vpop.f32.mrf.mxu0
  %v614 = vadd.f32 %v445, %v613
  %v615 = vpop.f32.mrf.mxu0
  %v616 = vadd.f32 %v445, %v615
  %617 = vmatmul.bf16.gmra.mxu0 %v525
  %v618 = vpop.f32.mrf.mxu0
  %v619 = vadd.f32 %v445, %v618
  %v620 = vpop.f32.mrf.mxu0
  %v621 = vadd.f32 %v445, %v620
  %622 = vmatmul.bf16.gmra.mxu0 %v528
  %v623 = vpop.f32.mrf.mxu0
  %v624 = vadd.f32 %v445, %v623
  %v625 = vpop.f32.mrf.mxu0
  %v626 = vadd.f32 %v445, %v625
  %627 = vdwg.mxu0
  %628 = vmatpush.bf16.msra.mxu0 0
  %629 = vmatpush.bf16.msra.mxu0 0
  %630 = vmatpush.bf16.msra.mxu0 0
  %631 = vmatpush.bf16.msra.mxu0 0
  %632 = vmatpush.bf16.msra.mxu0 0
  %633 = vmatpush.bf16.msra.mxu0 0
  %634 = vmatpush.bf16.msra.mxu0 0
  %635 = vmatpush.bf16.msra.mxu0 %v502
  %636 = vmatmul.bf16.gmra.mxu0 %v507
  %v637 = vpop.f32.mrf.mxu0
  %v638 = vadd.f32 %v446, %v637
  %v639 = vpop.f32.mrf.mxu0
  %v640 = vadd.f32 %v446, %v639
  %641 = vmatmul.bf16.gmra.mxu0 %v510
  %v642 = vpop.f32.mrf.mxu0
  %v643 = vadd.f32 %v446, %v642
  %v644 = vpop.f32.mrf.mxu0
  %v645 = vadd.f32 %v446, %v644
  %646 = vmatmul.bf16.gmra.mxu0 %v513
  %v647 = vpop.f32.mrf.mxu0
  %v648 = vadd.f32 %v446, %v647
  %v649 = vpop.f32.mrf.mxu0
  %v650 = vadd.f32 %v446, %v649
  %651 = vmatmul.bf16.gmra.mxu0 %v516
  %v652 = vpop.f32.mrf.mxu0
  %v653 = vadd.f32 %v446, %v652
  %v654 = vpop.f32.mrf.mxu0
  %v655 = vadd.f32 %v446, %v654
  %656 = vmatmul.bf16.gmra.mxu0 %v519
  %v657 = vpop.f32.mrf.mxu0
  %v658 = vadd.f32 %v446, %v657
  %v659 = vpop.f32.mrf.mxu0
  %v660 = vadd.f32 %v446, %v659
  %661 = vmatmul.bf16.gmra.mxu0 %v522
  %v662 = vpop.f32.mrf.mxu0
  %v663 = vadd.f32 %v446, %v662
  %v664 = vpop.f32.mrf.mxu0
  %v665 = vadd.f32 %v446, %v664
  %666 = vmatmul.bf16.gmra.mxu0 %v525
  %v667 = vpop.f32.mrf.mxu0
  %v668 = vadd.f32 %v446, %v667
  %v669 = vpop.f32.mrf.mxu0
  %v670 = vadd.f32 %v446, %v669
  %671 = vmatmul.bf16.gmra.mxu0 %v528
  %v672 = vpop.f32.mrf.mxu0
  %v673 = vadd.f32 %v446, %v672
  %v674 = vpop.f32.mrf.mxu0
  %v675 = vadd.f32 %v446, %v674
  %676 = vdwg.mxu0
  %677 = vst [vmem:[#allocation3] sm:$0xff] %v540
  %678 = vst [vmem:[#allocation3 + $0x8] sm:$0xff] %v589
  %679 = vst [vmem:[#allocation3 + $0x10] sm:$0xff] %v638
  %680 = vst [vmem:[#allocation3 + $0x18] sm:$0xff] %v542
  %681 = vst [vmem:[#allocation3 + $0x20] sm:$0xff] %v591
  %682 = vst [vmem:[#allocation3 + $0x28] sm:$0xff] %v640
  %683 = vst [vmem:[#allocation3 + $0x30] sm:$0xff] %v545
  %684 = vst [vmem:[#allocation3 + $0x38] sm:$0xff] %v594
  %685 = vst [vmem:[#allocation3 + $0x40] sm:$0xff] %v643
  %686 = vst [vmem:[#allocation3 + $0x48] sm:$0xff] %v547
  %687 = vst [vmem:[#allocation3 + $0x50] sm:$0xff] %v596
  %688 = vst [vmem:[#allocation3 + $0x58] sm:$0xff] %v645
  %689 = vst [vmem:[#allocation3 + $0x60] sm:$0xff] %v550
  %690 = vst [vmem:[#allocation3 + $0x68] sm:$0xff] %v599
  %691 = vst [vmem:[#allocation3 + $0x70] sm:$0xff] %v648
  %692 = vst [vmem:[#allocation3 + $0x78] sm:$0xff] %v552
  %693 = vst [vmem:[#allocation3 + $0x80] sm:$0xff] %v601
  %694 = vst [vmem:[#allocation3 + $0x88] sm:$0xff] %v650
  %695 = vst [vmem:[#allocation3 + $0x90] sm:$0xff] %v555
  %696 = vst [vmem:[#allocation3 + $0x98] sm:$0xff] %v604
  %697 = vst [vmem:[#allocation3 + $0xa0] sm:$0xff] %v653
  %698 = vst [vmem:[#allocation3 + $0xa8] sm:$0xff] %v557
  %699 = vst [vmem:[#allocation3 + $0xb0] sm:$0xff] %v606
  %700 = vst [vmem:[#allocation3 + $0xb8] sm:$0xff] %v655
  %701 = vst [vmem:[#allocation3 + $0xc0] sm:$0xff] %v560
  %702 = vst [vmem:[#allocation3 + $0xc8] sm:$0xff] %v609
  %703 = vst [vmem:[#allocation3 + $0xd0] sm:$0xff] %v658
  %704 = vst [vmem:[#allocation3 + $0xd8] sm:$0xff] %v562
  %705 = vst [vmem:[#allocation3 + $0xe0] sm:$0xff] %v611
  %706 = vst [vmem:[#allocation3 + $0xe8] sm:$0xff] %v660
  %707 = vst [vmem:[#allocation3 + $0xf0] sm:$0xff] %v565
  %708 = vst [vmem:[#allocation3 + $0xf8] sm:$0xff] %v614
  %709 = vst [vmem:[#allocation3 + $0x100] sm:$0xff] %v663
  %710 = vst [vmem:[#allocation3 + $0x108] sm:$0xff] %v567
  %711 = vst [vmem:[#allocation3 + $0x110] sm:$0xff] %v616
  %712 = vst [vmem:[#allocation3 + $0x118] sm:$0xff] %v665
  %713 = vst [vmem:[#allocation3 + $0x120] sm:$0xff] %v570
  %714 = vst [vmem:[#allocation3 + $0x128] sm:$0xff] %v619
  %715 = vst [vmem:[#allocation3 + $0x130] sm:$0xff] %v668
  %716 = vst [vmem:[#allocation3 + $0x138] sm:$0xff] %v572
  %717 = vst [vmem:[#allocation3 + $0x140] sm:$0xff] %v621
  %718 = vst [vmem:[#allocation3 + $0x148] sm:$0xff] %v670
  %719 = vst [vmem:[#allocation3 + $0x150] sm:$0xff] %v575
  %720 = vst [vmem:[#allocation3 + $0x158] sm:$0xff] %v624
  %721 = vst [vmem:[#allocation3 + $0x160] sm:$0xff] %v673
  %722 = vst [vmem:[#allocation3 + $0x168] sm:$0xff] %v577
  %723 = vst [vmem:[#allocation3 + $0x170] sm:$0xff] %v626
  %724 = vst [vmem:[#allocation3 + $0x178] sm:$0xff] %v675
  %v725 = vld [vmem:[%s5] sm:$0xff]
  %v726 = vld [vmem:[%s5 + $0x8] sm:$0xf]
  %v727 = vld [vmem:[%s5 + $0xc] sm:$0xff]
  %v728 = vld [vmem:[%s5 + $0x14] sm:$0xf]
  %v729 = vld [vmem:[%s5 + $0x18] sm:$0xff]
  %v730 = vld [vmem:[%s5 + $0x20] sm:$0xf]
  %v731 = vld [vmem:[%s5 + $0x24] sm:$0xff]
  %v732 = vld [vmem:[%s5 + $0x2c] sm:$0xf]
  %v733 = vld [vmem:[%s5 + $0x30] sm:$0xff]
  %v734 = vld [vmem:[%s5 + $0x38] sm:$0xf]
  %v735 = vld [vmem:[%s5 + $0x3c] sm:$0xff]
  %v736 = vld [vmem:[%s5 + $0x44] sm:$0xf]
  %v737 = vld [vmem:[%s5 + $0x48] sm:$0xff]
  %v738 = vld [vmem:[%s5 + $0x50] sm:$0xf]
  %v739 = vld [vmem:[%s5 + $0x54] sm:$0xff]
  %v740 = vld [vmem:[%s5 + $0x5c] sm:$0xf]
  %v741 = vld [vmem:[%s5 + $0x60] sm:$0xff]
  %v742 = vld [vmem:[%s5 + $0x68] sm:$0xf]
  %v743 = vld [vmem:[%s5 + $0x6c] sm:$0xff]
  %v744 = vld [vmem:[%s5 + $0x74] sm:$0xf]
  %v745 = vld [vmem:[%s5 + $0x78] sm:$0xff]
  %v746 = vld [vmem:[%s5 + $0x80] sm:$0xf]
  %v747 = vld [vmem:[%s5 + $0x84] sm:$0xff]
  %v748 = vld [vmem:[%s5 + $0x8c] sm:$0xf]
  %v749 = vld [vmem:[%s5 + $0x90] sm:$0xff]
  %v750 = vld [vmem:[%s5 + $0x98] sm:$0xf]
  %v751 = vld [vmem:[%s5 + $0x9c] sm:$0xff]
  %v752 = vld [vmem:[%s5 + $0xa4] sm:$0xf]
  %v753 = vld [vmem:[%s5 + $0xa8] sm:$0xff]
  %v754 = vld [vmem:[%s5 + $0xb0] sm:$0xf]
  %v755 = vld [vmem:[%s5 + $0xb4] sm:$0xff]
  %v756 = vld [vmem:[%s5 + $0xbc] sm:$0xf]
  %v757 = vld [vmem:[%s9] sm:$0xff]
  %v758 = vld [vmem:[%s9 + $0x8] sm:$0xf]
  %v759 = vld [vmem:[%s9 + $0xc] sm:$0xff]
  %v760 = vld [vmem:[%s9 + $0x14] sm:$0xf]
  %v761 = vld [vmem:[%s9 + $0x18] sm:$0xff]
  %v762 = vld [vmem:[%s9 + $0x20] sm:$0xf]
  %v763 = vld [vmem:[%s9 + $0x24] sm:$0xff]
  %v764 = vld [vmem:[%s9 + $0x2c] sm:$0xf]
  %v765 = vld [vmem:[%s9 + $0x30] sm:$0xff]
  %v766 = vld [vmem:[%s9 + $0x38] sm:$0xf]
  %v767 = vld [vmem:[%s9 + $0x3c] sm:$0xff]
  %v768 = vld [vmem:[%s9 + $0x44] sm:$0xf]
  %v769 = vld [vmem:[%s9 + $0x48] sm:$0xff]
  %v770 = vld [vmem:[%s9 + $0x50] sm:$0xf]
  %v771 = vld [vmem:[%s9 + $0x54] sm:$0xff]
  %v772 = vld [vmem:[%s9 + $0x5c] sm:$0xf]
  %v773 = vld [vmem:[%s9 + $0x60] sm:$0xff]
  %v774 = vld [vmem:[%s9 + $0x68] sm:$0xf]
  %v775 = vld [vmem:[%s9 + $0x6c] sm:$0xff]
  %v776 = vld [vmem:[%s9 + $0x74] sm:$0xf]
  %v777 = vld [vmem:[%s9 + $0x78] sm:$0xff]
  %v778 = vld [vmem:[%s9 + $0x80] sm:$0xf]
  %v779 = vld [vmem:[%s9 + $0x84] sm:$0xff]
  %v780 = vld [vmem:[%s9 + $0x8c] sm:$0xf]
  %v781 = vld [vmem:[%s9 + $0x90] sm:$0xff]
  %v782 = vld [vmem:[%s9 + $0x98] sm:$0xf]
  %v783 = vld [vmem:[%s9 + $0x9c] sm:$0xff]
  %v784 = vld [vmem:[%s9 + $0xa4] sm:$0xf]
  %v785 = vld [vmem:[%s9 + $0xa8] sm:$0xff]
  %v786 = vld [vmem:[%s9 + $0xb0] sm:$0xf]
  %v787 = vld [vmem:[%s9 + $0xb4] sm:$0xff]
  %v788 = vld [vmem:[%s9 + $0xbc] sm:$0xf]
  %v789 = vld [vmem:[%s7] sm:$0x1]
  %v790 = vld [vmem:[%s11] sm:$0x1]
  %v791 = vld [vmem:[#allocation4] sm:$0xff]
  %v792 = vld [vmem:[#allocation4 + $0x8] sm:$0xff]
  %v793 = vld [vmem:[#allocation5] sm:$0xff]
  %v794 = vld [vmem:[#allocation5 + $0x8] sm:$0xff]
  %v795 = vld [vmem:[#allocation2] sm:$0xff]
  %v796 = vld [vmem:[#allocation2 + $0x8] sm:$0xff]
  %v797 = vld [vmem:[#allocation2 + $0x10] sm:$0xff]
  %v798 = vld [vmem:[#allocation2 + $0x18] sm:$0xff]
  %v799 = vld [vmem:[#allocation2 + $0x20] sm:$0xff]
  %v800 = vld [vmem:[#allocation2 + $0x28] sm:$0xff]
  %v801 = vpack.c.bf16 %v792, %v791
  %v834 = vunpack.c.l.b16 %v725
  %v835 = vunpack.c.h.b16 %v725
  %v836 = vunpack.c.l.b16 %v726
  %v837 = vunpack.c.l.b16 %v727
  %v838 = vunpack.c.h.b16 %v727
  %v839 = vunpack.c.l.b16 %v728
  %v840 = vunpack.c.l.b16 %v729
  %v841 = vunpack.c.h.b16 %v729
  %v842 = vunpack.c.l.b16 %v730
  %v843 = vunpack.c.l.b16 %v731
  %v844 = vunpack.c.h.b16 %v731
  %v845 = vunpack.c.l.b16 %v732
  %v846 = vunpack.c.l.b16 %v733
  %v847 = vunpack.c.h.b16 %v733
  %v848 = vunpack.c.l.b16 %v734
  %v849 = vunpack.c.l.b16 %v735
  %v850 = vunpack.c.h.b16 %v735
  %v851 = vunpack.c.l.b16 %v736
  %v852 = vunpack.c.l.b16 %v737
  %v853 = vunpack.c.h.b16 %v737
  %v854 = vunpack.c.l.b16 %v738
  %v855 = vunpack.c.l.b16 %v739
  %v856 = vunpack.c.h.b16 %v739
  %v857 = vunpack.c.l.b16 %v740
  %v858 = vunpack.c.l.b16 %v741
  %v859 = vunpack.c.h.b16 %v741
  %v860 = vunpack.c.l.b16 %v742
  %v861 = vunpack.c.l.b16 %v743
  %v862 = vunpack.c.h.b16 %v743
  %v863 = vunpack.c.l.b16 %v744
  %v864 = vunpack.c.l.b16 %v745
  %v865 = vunpack.c.h.b16 %v745
  %v866 = vunpack.c.l.b16 %v746
  %v867 = vunpack.c.l.b16 %v747
  %v868 = vunpack.c.h.b16 %v747
  %v869 = vunpack.c.l.b16 %v748
  %v870 = vunpack.c.l.b16 %v749
  %v871 = vunpack.c.h.b16 %v749
  %v872 = vunpack.c.l.b16 %v750
  %v873 = vunpack.c.l.b16 %v751
  %v874 = vunpack.c.h.b16 %v751
  %v875 = vunpack.c.l.b16 %v752
  %v876 = vunpack.c.l.b16 %v753
  %v877 = vunpack.c.h.b16 %v753
  %v878 = vunpack.c.l.b16 %v754
  %v879 = vunpack.c.l.b16 %v755
  %v880 = vunpack.c.h.b16 %v755
  %v881 = vunpack.c.l.b16 %v756
  %v882 = vpack.c.b16 %v837, %v834
  %v883 = vpack.c.b16 %v838, %v835
  %v884 = vpack.c.b16 %v839, %v836
  %v885 = vpack.c.b16 %v843, %v840
  %v886 = vpack.c.b16 %v844, %v841
  %v887 = vpack.c.b16 %v845, %v842
  %v888 = vpack.c.b16 %v849, %v846
  %v889 = vpack.c.b16 %v850, %v847
  %v890 = vpack.c.b16 %v851, %v848
  %v891 = vpack.c.b16 %v855, %v852
  %v892 = vpack.c.b16 %v856, %v853
  %v893 = vpack.c.b16 %v857, %v854
  %v894 = vpack.c.b16 %v861, %v858
  %v895 = vpack.c.b16 %v862, %v859
  %v896 = vpack.c.b16 %v863, %v860
  %v897 = vpack.c.b16 %v867, %v864
  %v898 = vpack.c.b16 %v868, %v865
  %v899 = vpack.c.b16 %v869, %v866
  %v900 = vpack.c.b16 %v873, %v870
  %v901 = vpack.c.b16 %v874, %v871
  %v902 = vpack.c.b16 %v875, %v872
  %v903 = vpack.c.b16 %v879, %v876
  %v904 = vpack.c.b16 %v880, %v877
  %v905 = vpack.c.b16 %v881, %v878
  %930 = vmatpush.bf16.msra.mxu0 %v903
  %931 = vmatpush.bf16.msra.mxu0 %v900
  %932 = vmatpush.bf16.msra.mxu0 %v897
  %933 = vmatpush.bf16.msra.mxu0 %v894
  %934 = vmatpush.bf16.msra.mxu0 %v891
  %935 = vmatpush.bf16.msra.mxu0 %v888
  %936 = vmatpush.bf16.msra.mxu0 %v885
  %937 = vmatpush.bf16.msra.mxu0 %v882
  %938 = vmatmul.bf16.gmra.mxu0 %v801
  %v939 = vpop.f32.mrf.mxu0
  %v940 = vadd.f32 0.0, %v939
  %v941 = vpop.f32.mrf.mxu0
  %v942 = vadd.f32 0.0, %v941
  %943 = vdwg.mxu0
  %944 = vmatpush.bf16.msra.mxu0 %v904
  %945 = vmatpush.bf16.msra.mxu0 %v901
  %946 = vmatpush.bf16.msra.mxu0 %v898
  %947 = vmatpush.bf16.msra.mxu0 %v895
  %948 = vmatpush.bf16.msra.mxu0 %v892
  %949 = vmatpush.bf16.msra.mxu0 %v889
  %950 = vmatpush.bf16.msra.mxu0 %v886
  %951 = vmatpush.bf16.msra.mxu0 %v883
  %952 = vmatmul.bf16.gmra.mxu0 %v801
  %v953 = vpop.f32.mrf.mxu0
  %v954 = vadd.f32 0.0, %v953
  %v955 = vpop.f32.mrf.mxu0
  %v956 = vadd.f32 0.0, %v955
  %957 = vdwg.mxu0
  %958 = vmatpush.bf16.msra.mxu0 %v905
  %959 = vmatpush.bf16.msra.mxu0 %v902
  %960 = vmatpush.bf16.msra.mxu0 %v899
  %961 = vmatpush.bf16.msra.mxu0 %v896
  %962 = vmatpush.bf16.msra.mxu0 %v893
  %963 = vmatpush.bf16.msra.mxu0 %v890
  %964 = vmatpush.bf16.msra.mxu0 %v887
  %965 = vmatpush.bf16.msra.mxu0 %v884
  %966 = vmatmul.bf16.gmra.mxu0 %v801
  %v967 = vpop.f32.mrf.mxu0
  %v968 = vadd.f32 0.0, %v967
  %v969 = vpop.f32.mrf.mxu0
  %v970 = vadd.f32 0.0, %v969
  %971 = vdwg.mxu0
  %v972 = vadd.f32 %v795, %v940
  %v973 = vadd.f32 %v798, %v942
  %v974 = vxor.u32 %v972, 2147483648
  %v975 = vxor.u32 %v973, 2147483648
  %v976 = vmul.f32 %v974, 1.442695
  %v977 = vpow.pop %v976
  %v978 = vmul.f32 %v975, 1.442695
  %v979 = vpow.pop %v978
  %v980 = vadd.f32 %v977, 1.0
  %v981 = vadd.f32 %v979, 1.0
  %v982 = vrcp.pop %v980
  %v983 = vmul.f32 %v980, %v982
  %v984 = vsub.f32 1.0, %v983
  %v985 = vmul.f32 %v982, %v984
  %v986 = vadd.f32 %v982, %v985
  %vm987 = vweird.f32 %v980
  %vm988 = vweird.f32 %v982
  %vm989 = vmor %vm987, %vm988
  %v990 = vsel %vm989, %v982, %v986
  %v991 = vand.u32 2147483647, %v980
  %vm992 = vcmp.eq.f32.partialorder %v991, 8.507059e+37
  %v993 = vand.u32 %v980, 2147483648
  %v994 = vor.u32 1.1754944e-38, %v993
  %v995 = vsel %vm992, %v994, %v990
  %v996 = vmul.f32 1.0, %v995
  %v997 = vrcp.pop %v981
  %v998 = vmul.f32 %v981, %v997
  %v999 = vsub.f32 1.0, %v998
  %v1000 = vmul.f32 %v997, %v999
  %v1001 = vadd.f32 %v997, %v1000
  %vm1002 = vweird.f32 %v981
  %vm1003 = vweird.f32 %v997
  %vm1004 = vmor %vm1002, %vm1003
  %v1005 = vsel %vm1004, %v997, %v1001
  %v1006 = vand.u32 2147483647, %v981
  %vm1007 = vcmp.eq.f32.partialorder %v1006, 8.507059e+37
  %v1008 = vand.u32 %v981, 2147483648
  %v1009 = vor.u32 1.1754944e-38, %v1008
  %v1010 = vsel %vm1007, %v1009, %v1005
  %v1011 = vmul.f32 1.0, %v1010
  %v1012 = vadd.f32 %v796, %v954
  %v1013 = vadd.f32 %v799, %v956
  %v1014 = vxor.u32 %v1012, 2147483648
  %v1015 = vxor.u32 %v1013, 2147483648
  %v1016 = vmul.f32 %v1014, 1.442695
  %v1017 = vpow.pop %v1016
  %v1018 = vmul.f32 %v1015, 1.442695
  %v1019 = vpow.pop %v1018
  %v1020 = vadd.f32 %v1017, 1.0
  %v1021 = vadd.f32 %v1019, 1.0
  %v1022 = vrcp.pop %v1020
  %v1023 = vmul.f32 %v1020, %v1022
  %v1024 = vsub.f32 1.0, %v1023
  %v1025 = vmul.f32 %v1022, %v1024
  %v1026 = vadd.f32 %v1022, %v1025
  %vm1027 = vweird.f32 %v1020
  %vm1028 = vweird.f32 %v1022
  %vm1029 = vmor %vm1027, %vm1028
  %v1030 = vsel %vm1029, %v1022, %v1026
  %v1031 = vand.u32 2147483647, %v1020
  %vm1032 = vcmp.eq.f32.partialorder %v1031, 8.507059e+37
  %v1033 = vand.u32 %v1020, 2147483648
  %v1034 = vor.u32 1.1754944e-38, %v1033
  %v1035 = vsel %vm1032, %v1034, %v1030
  %v1036 = vmul.f32 1.0, %v1035
  %v1037 = vrcp.pop %v1021
  %v1038 = vmul.f32 %v1021, %v1037
  %v1039 = vsub.f32 1.0, %v1038
  %v1040 = vmul.f32 %v1037, %v1039
  %v1041 = vadd.f32 %v1037, %v1040
  %vm1042 = vweird.f32 %v1021
  %vm1043 = vweird.f32 %v1037
  %vm1044 = vmor %vm1042, %vm1043
  %v1045 = vsel %vm1044, %v1037, %v1041
  %v1046 = vand.u32 2147483647, %v1021
  %vm1047 = vcmp.eq.f32.partialorder %v1046, 8.507059e+37
  %v1048 = vand.u32 %v1021, 2147483648
  %v1049 = vor.u32 1.1754944e-38, %v1048
  %v1050 = vsel %vm1047, %v1049, %v1045
  %v1051 = vmul.f32 1.0, %v1050
  %v1053 = vperm.slane %v789, 0
  %v1055 = vadd.f32 %v968, %v1053
  %v1056 = vadd.f32 %v970, %v1053
  %v1057 = vmul.f32 %v996, %v1055
  %v1058 = vmul.f32 %v1011, %v1056
  %v1059 = vadd.f32 %v797, %v1057
  %v1060 = vadd.f32 %v800, %v1058
  %v1061 = vtanh.pop %v1059
  %v1062 = vtanh.pop %v1060
  %v1063 = vsub.f32 %v791, %v1061
  %v1064 = vsub.f32 %v792, %v1062
  %v1065 = vmul.f32 %v1036, %v1063
  %v1066 = vmul.f32 %v1051, %v1064
  %v1067 = vadd.f32 %v1061, %v1065
  %v1068 = vadd.f32 %v1062, %v1066
  %v1069 = vld [vmem:[%s2] sm:$0xff]
  %v1070 = vld [vmem:[%s2 + $0x8] sm:$0xff]
  %vm1071 = vcmp.gt.f32.partialorder %v1069, 0.0
  %vm1072 = vcmp.gt.f32.partialorder %v1070, 0.0
  %v1073 = vsel %vm1071, 1, 0
  %v1074 = vsel %vm1072, 1, 0
  %1075 = vset.pattern.permute.xlu0 0
  %1076 = vperm.xlu0 %1075, %v1073
  %v1077 = vpop.permute.xlu0 %1076
  %1078 = vset.pattern.permute.xlu0 0
  %1079 = vperm.xlu0 %1078, %v1074
  %v1080 = vpop.permute.xlu0 %1079
  %vm1081 = vcmp.eq.s32.totalorder %v1077, 1
  %vm1082 = vcmp.eq.s32.totalorder %v1080, 1
  %v1083 = vsel %vm1081, %v1067, 0.0
  %v1084 = vsel %vm1082, %v1068, 0.0
  %1085 = vst [vmem:[%s12] sm:$0xff] %v1083
  %1086 = vst [vmem:[%s12 + $0x8] sm:$0xff] %v1084
  %v1087 = vsel %vm1081, %v1067, %v791
  %v1088 = vsel %vm1082, %v1068, %v792
  %s1089 = scalar_lea.vmem [#allocation3], 336
  %v1090 = vld [vmem:[%s1089] sm:$0xff]
  %v1091 = vld [vmem:[%s1089 + $0x8] sm:$0xff]
  %v1092 = vld [vmem:[%s1089 + $0x10] sm:$0xff]
  %v1093 = vld [vmem:[%s1089 + $0x18] sm:$0xff]
  %v1094 = vld [vmem:[%s1089 + $0x20] sm:$0xff]
  %v1095 = vld [vmem:[%s1089 + $0x28] sm:$0xff]
  %v1096 = vpack.c.bf16 %v794, %v793
  %v1129 = vunpack.c.l.b16 %v757
  %v1130 = vunpack.c.h.b16 %v757
  %v1131 = vunpack.c.l.b16 %v758
  %v1132 = vunpack.c.l.b16 %v759
  %v1133 = vunpack.c.h.b16 %v759
  %v1134 = vunpack.c.l.b16 %v760
  %v1135 = vunpack.c.l.b16 %v761
  %v1136 = vunpack.c.h.b16 %v761
  %v1137 = vunpack.c.l.b16 %v762
  %v1138 = vunpack.c.l.b16 %v763
  %v1139 = vunpack.c.h.b16 %v763
  %v1140 = vunpack.c.l.b16 %v764
  %v1141 = vunpack.c.l.b16 %v765
  %v1142 = vunpack.c.h.b16 %v765
  %v1143 = vunpack.c.l.b16 %v766
  %v1144 = vunpack.c.l.b16 %v767
  %v1145 = vunpack.c.h.b16 %v767
  %v1146 = vunpack.c.l.b16 %v768
  %v1147 = vunpack.c.l.b16 %v769
  %v1148 = vunpack.c.h.b16 %v769
  %v1149 = vunpack.c.l.b16 %v770
  %v1150 = vunpack.c.l.b16 %v771
  %v1151 = vunpack.c.h.b16 %v771
  %v1152 = vunpack.c.l.b16 %v772
  %v1153 = vunpack.c.l.b16 %v773
  %v1154 = vunpack.c.h.b16 %v773
  %v1155 = vunpack.c.l.b16 %v774
  %v1156 = vunpack.c.l.b16 %v775
  %v1157 = vunpack.c.h.b16 %v775
  %v1158 = vunpack.c.l.b16 %v776
  %v1159 = vunpack.c.l.b16 %v777
  %v1160 = vunpack.c.h.b16 %v777
  %v1161 = vunpack.c.l.b16 %v778
  %v1162 = vunpack.c.l.b16 %v779
  %v1163 = vunpack.c.h.b16 %v779
  %v1164 = vunpack.c.l.b16 %v780
  %v1165 = vunpack.c.l.b16 %v781
  %v1166 = vunpack.c.h.b16 %v781
  %v1167 = vunpack.c.l.b16 %v782
  %v1168 = vunpack.c.l.b16 %v783
  %v1169 = vunpack.c.h.b16 %v783
  %v1170 = vunpack.c.l.b16 %v784
  %v1171 = vunpack.c.l.b16 %v785
  %v1172 = vunpack.c.h.b16 %v785
  %v1173 = vunpack.c.l.b16 %v786
  %v1174 = vunpack.c.l.b16 %v787
  %v1175 = vunpack.c.h.b16 %v787
  %v1176 = vunpack.c.l.b16 %v788
  %v1177 = vpack.c.b16 %v1132, %v1129
  %v1178 = vpack.c.b16 %v1133, %v1130
  %v1179 = vpack.c.b16 %v1134, %v1131
  %v1180 = vpack.c.b16 %v1138, %v1135
  %v1181 = vpack.c.b16 %v1139, %v1136
  %v1182 = vpack.c.b16 %v1140, %v1137
  %v1183 = vpack.c.b16 %v1144, %v1141
  %v1184 = vpack.c.b16 %v1145, %v1142
  %v1185 = vpack.c.b16 %v1146, %v1143
  %v1186 = vpack.c.b16 %v1150, %v1147
  %v1187 = vpack.c.b16 %v1151, %v1148
  %v1188 = vpack.c.b16 %v1152, %v1149
  %v1189 = vpack.c.b16 %v1156, %v1153
  %v1190 = vpack.c.b16 %v1157, %v1154
  %v1191 = vpack.c.b16 %v1158, %v1155
  %v1192 = vpack.c.b16 %v1162, %v1159
  %v1193 = vpack.c.b16 %v1163, %v1160
  %v1194 = vpack.c.b16 %v1164, %v1161
  %v1195 = vpack.c.b16 %v1168, %v1165
  %v1196 = vpack.c.b16 %v1169, %v1166
  %v1197 = vpack.c.b16 %v1170, %v1167
  %v1198 = vpack.c.b16 %v1174, %v1171
  %v1199 = vpack.c.b16 %v1175, %v1172
  %v1200 = vpack.c.b16 %v1176, %v1173
  %1225 = vmatpush.bf16.msra.mxu0 %v1198
  %1226 = vmatpush.bf16.msra.mxu0 %v1195
  %1227 = vmatpush.bf16.msra.mxu0 %v1192
  %1228 = vmatpush.bf16.msra.mxu0 %v1189
  %1229 = vmatpush.bf16.msra.mxu0 %v1186
  %1230 = vmatpush.bf16.msra.mxu0 %v1183
  %1231 = vmatpush.bf16.msra.mxu0 %v1180
  %1232 = vmatpush.bf16.msra.mxu0 %v1177
  %1233 = vmatmul.bf16.gmra.mxu0 %v1096
  %v1234 = vpop.f32.mrf.mxu0
  %v1235 = vadd.f32 0.0, %v1234
  %v1236 = vpop.f32.mrf.mxu0
  %v1237 = vadd.f32 0.0, %v1236
  %1238 = vdwg.mxu0
  %1239 = vmatpush.bf16.msra.mxu0 %v1199
  %1240 = vmatpush.bf16.msra.mxu0 %v1196
  %1241 = vmatpush.bf16.msra.mxu0 %v1193
  %1242 = vmatpush.bf16.msra.mxu0 %v1190
  %1243 = vmatpush.bf16.msra.mxu0 %v1187
  %1244 = vmatpush.bf16.msra.mxu0 %v1184
  %1245 = vmatpush.bf16.msra.mxu0 %v1181
  %1246 = vmatpush.bf16.msra.mxu0 %v1178
  %1247 = vmatmul.bf16.gmra.mxu0 %v1096
  %v1248 = vpop.f32.mrf.mxu0
  %v1249 = vadd.f32 0.0, %v1248
  %v1250 = vpop.f32.mrf.mxu0
  %v1251 = vadd.f32 0.0, %v1250
  %1252 = vdwg.mxu0
  %1253 = vmatpush.bf16.msra.mxu0 %v1200
  %1254 = vmatpush.bf16.msra.mxu0 %v1197
  %1255 = vmatpush.bf16.msra.mxu0 %v1194
  %1256 = vmatpush.bf16.msra.mxu0 %v1191
  %1257 = vmatpush.bf16.msra.mxu0 %v1188
  %1258 = vmatpush.bf16.msra.mxu0 %v1185
  %1259 = vmatpush.bf16.msra.mxu0 %v1182
  %1260 = vmatpush.bf16.msra.mxu0 %v1179
  %1261 = vmatmul.bf16.gmra.mxu0 %v1096
  %v1262 = vpop.f32.mrf.mxu0
  %v1263 = vadd.f32 0.0, %v1262
  %v1264 = vpop.f32.mrf.mxu0
  %v1265 = vadd.f32 0.0, %v1264
  %1266 = vdwg.mxu0
  %v1267 = vadd.f32 %v1090, %v1235
  %v1268 = vadd.f32 %v1093, %v1237
  %v1269 = vxor.u32 %v1267, 2147483648
  %v1270 = vxor.u32 %v1268, 2147483648
  %v1271 = vmul.f32 %v1269, 1.442695
  %v1272 = vpow.pop %v1271
  %v1273 = vmul.f32 %v1270, 1.442695
  %v1274 = vpow.pop %v1273
  %v1275 = vadd.f32 %v1272, 1.0
  %v1276 = vadd.f32 %v1274, 1.0
  %v1277 = vrcp.pop %v1275
  %v1278 = vmul.f32 %v1275, %v1277
  %v1279 = vsub.f32 1.0, %v1278
  %v1280 = vmul.f32 %v1277, %v1279
  %v1281 = vadd.f32 %v1277, %v1280
  %vm1282 = vweird.f32 %v1275
  %vm1283 = vweird.f32 %v1277
  %vm1284 = vmor %vm1282, %vm1283
  %v1285 = vsel %vm1284, %v1277, %v1281
  %v1286 = vand.u32 2147483647, %v1275
  %vm1287 = vcmp.eq.f32.partialorder %v1286, 8.507059e+37
  %v1288 = vand.u32 %v1275, 2147483648
  %v1289 = vor.u32 1.1754944e-38, %v1288
  %v1290 = vsel %vm1287, %v1289, %v1285
  %v1291 = vmul.f32 1.0, %v1290
  %v1292 = vrcp.pop %v1276
  %v1293 = vmul.f32 %v1276, %v1292
  %v1294 = vsub.f32 1.0, %v1293
  %v1295 = vmul.f32 %v1292, %v1294
  %v1296 = vadd.f32 %v1292, %v1295
  %vm1297 = vweird.f32 %v1276
  %vm1298 = vweird.f32 %v1292
  %vm1299 = vmor %vm1297, %vm1298
  %v1300 = vsel %vm1299, %v1292, %v1296
  %v1301 = vand.u32 2147483647, %v1276
  %vm1302 = vcmp.eq.f32.partialorder %v1301, 8.507059e+37
  %v1303 = vand.u32 %v1276, 2147483648
  %v1304 = vor.u32 1.1754944e-38, %v1303
  %v1305 = vsel %vm1302, %v1304, %v1300
  %v1306 = vmul.f32 1.0, %v1305
  %v1307 = vadd.f32 %v1091, %v1249
  %v1308 = vadd.f32 %v1094, %v1251
  %v1309 = vxor.u32 %v1307, 2147483648
  %v1310 = vxor.u32 %v1308, 2147483648
  %v1311 = vmul.f32 %v1309, 1.442695
  %v1312 = vpow.pop %v1311
  %v1313 = vmul.f32 %v1310, 1.442695
  %v1314 = vpow.pop %v1313
  %v1315 = vadd.f32 %v1312, 1.0
  %v1316 = vadd.f32 %v1314, 1.0
  %v1317 = vrcp.pop %v1315
  %v1318 = vmul.f32 %v1315, %v1317
  %v1319 = vsub.f32 1.0, %v1318
  %v1320 = vmul.f32 %v1317, %v1319
  %v1321 = vadd.f32 %v1317, %v1320
  %vm1322 = vweird.f32 %v1315
  %vm1323 = vweird.f32 %v1317
  %vm1324 = vmor %vm1322, %vm1323
  %v1325 = vsel %vm1324, %v1317, %v1321
  %v1326 = vand.u32 2147483647, %v1315
  %vm1327 = vcmp.eq.f32.partialorder %v1326, 8.507059e+37
  %v1328 = vand.u32 %v1315, 2147483648
  %v1329 = vor.u32 1.1754944e-38, %v1328
  %v1330 = vsel %vm1327, %v1329, %v1325
  %v1331 = vmul.f32 1.0, %v1330
  %v1332 = vrcp.pop %v1316
  %v1333 = vmul.f32 %v1316, %v1332
  %v1334 = vsub.f32 1.0, %v1333
  %v1335 = vmul.f32 %v1332, %v1334
  %v1336 = vadd.f32 %v1332, %v1335
  %vm1337 = vweird.f32 %v1316
  %vm1338 = vweird.f32 %v1332
  %vm1339 = vmor %vm1337, %vm1338
  %v1340 = vsel %vm1339, %v1332, %v1336
  %v1341 = vand.u32 2147483647, %v1316
  %vm1342 = vcmp.eq.f32.partialorder %v1341, 8.507059e+37
  %v1343 = vand.u32 %v1316, 2147483648
  %v1344 = vor.u32 1.1754944e-38, %v1343
  %v1345 = vsel %vm1342, %v1344, %v1340
  %v1346 = vmul.f32 1.0, %v1345
  %v1348 = vperm.slane %v790, 0
  %v1350 = vadd.f32 %v1263, %v1348
  %v1351 = vadd.f32 %v1265, %v1348
  %v1352 = vmul.f32 %v1291, %v1350
  %v1353 = vmul.f32 %v1306, %v1351
  %v1354 = vadd.f32 %v1092, %v1352
  %v1355 = vadd.f32 %v1095, %v1353
  %v1356 = vtanh.pop %v1354
  %v1357 = vtanh.pop %v1355
  %v1358 = vsub.f32 %v793, %v1356
  %v1359 = vsub.f32 %v794, %v1357
  %v1360 = vmul.f32 %v1331, %v1358
  %v1361 = vmul.f32 %v1346, %v1359
  %v1362 = vadd.f32 %v1356, %v1360
  %v1363 = vadd.f32 %v1357, %v1361
  %s1364 = scalar_lea.vmem %s97, 112
  %v1365 = vld [vmem:[%s1364] sm:$0xff]
  %v1366 = vld [vmem:[%s1364 + $0x8] sm:$0xff]
  %vm1367 = vcmp.gt.f32.partialorder %v1365, 0.0
  %vm1368 = vcmp.gt.f32.partialorder %v1366, 0.0
  %v1369 = vsel %vm1367, 1, 0
  %v1370 = vsel %vm1368, 1, 0
  %1371 = vset.pattern.permute.xlu0 0
  %1372 = vperm.xlu0 %1371, %v1369
  %v1373 = vpop.permute.xlu0 %1372
  %1374 = vset.pattern.permute.xlu0 0
  %1375 = vperm.xlu0 %1374, %v1370
  %v1376 = vpop.permute.xlu0 %1375
  %vm1377 = vcmp.eq.s32.totalorder %v1373, 1
  %vm1378 = vcmp.eq.s32.totalorder %v1376, 1
  %v1379 = vsel %vm1377, %v1362, 0.0
  %v1380 = vsel %vm1378, %v1363, 0.0
  %s1381 = scalar_lea.vmem %s106, 112
  %1382 = vst [vmem:[%s1381] sm:$0xff] %v1379
  %1383 = vst [vmem:[%s1381 + $0x8] sm:$0xff] %v1380
  %v1384 = vsel %vm1377, %v1362, %v793
  %v1385 = vsel %vm1378, %v1363, %v794
  %s1386 = scalar_lea.vmem [#allocation2], 48
  %v1387 = vld [vmem:[%s1386] sm:$0xff]
  %v1388 = vld [vmem:[%s1386 + $0x8] sm:$0xff]
  %v1389 = vld [vmem:[%s1386 + $0x10] sm:$0xff]
  %v1390 = vld [vmem:[%s1386 + $0x18] sm:$0xff]
  %v1391 = vld [vmem:[%s1386 + $0x20] sm:$0xff]
  %v1392 = vld [vmem:[%s1386 + $0x28] sm:$0xff]
  %v1393 = vpack.c.bf16 %v1088, %v1087
  %1394 = vmatpush.bf16.msra.mxu0 %v903
  %1395 = vmatpush.bf16.msra.mxu0 %v900
  %1396 = vmatpush.bf16.msra.mxu0 %v897
  %1397 = vmatpush.bf16.msra.mxu0 %v894
  %1398 = vmatpush.bf16.msra.mxu0 %v891
  %1399 = vmatpush.bf16.msra.mxu0 %v888
  %1400 = vmatpush.bf16.msra.mxu0 %v885
  %1401 = vmatpush.bf16.msra.mxu0 %v882
  %1402 = vmatmul.bf16.gmra.mxu0 %v1393
  %v1403 = vpop.f32.mrf.mxu0
  %v1404 = vadd.f32 0.0, %v1403
  %v1405 = vpop.f32.mrf.mxu0
  %v1406 = vadd.f32 0.0, %v1405
  %1407 = vdwg.mxu0
  %1408 = vmatpush.bf16.msra.mxu0 %v904
  %1409 = vmatpush.bf16.msra.mxu0 %v901
  %1410 = vmatpush.bf16.msra.mxu0 %v898
  %1411 = vmatpush.bf16.msra.mxu0 %v895
  %1412 = vmatpush.bf16.msra.mxu0 %v892
  %1413 = vmatpush.bf16.msra.mxu0 %v889
  %1414 = vmatpush.bf16.msra.mxu0 %v886
  %1415 = vmatpush.bf16.msra.mxu0 %v883
  %1416 = vmatmul.bf16.gmra.mxu0 %v1393
  %v1417 = vpop.f32.mrf.mxu0
  %v1418 = vadd.f32 0.0, %v1417
  %v1419 = vpop.f32.mrf.mxu0
  %v1420 = vadd.f32 0.0, %v1419
  %1421 = vdwg.mxu0
  %1422 = vmatpush.bf16.msra.mxu0 %v905
  %1423 = vmatpush.bf16.msra.mxu0 %v902
  %1424 = vmatpush.bf16.msra.mxu0 %v899
  %1425 = vmatpush.bf16.msra.mxu0 %v896
  %1426 = vmatpush.bf16.msra.mxu0 %v893
  %1427 = vmatpush.bf16.msra.mxu0 %v890
  %1428 = vmatpush.bf16.msra.mxu0 %v887
  %1429 = vmatpush.bf16.msra.mxu0 %v884
  %1430 = vmatmul.bf16.gmra.mxu0 %v1393
  %v1431 = vpop.f32.mrf.mxu0
  %v1432 = vadd.f32 0.0, %v1431
  %v1433 = vpop.f32.mrf.mxu0
  %v1434 = vadd.f32 0.0, %v1433
  %1435 = vdwg.mxu0
  %v1436 = vadd.f32 %v1387, %v1404
  %v1437 = vadd.f32 %v1390, %v1406
  %v1438 = vxor.u32 %v1436, 2147483648
  %v1439 = vxor.u32 %v1437, 2147483648
  %v1440 = vmul.f32 %v1438, 1.442695
  %v1441 = vpow.pop %v1440
  %v1442 = vmul.f32 %v1439, 1.442695
  %v1443 = vpow.pop %v1442
  %v1444 = vadd.f32 %v1441, 1.0
  %v1445 = vadd.f32 %v1443, 1.0
  %v1446 = vrcp.pop %v1444
  %v1447 = vmul.f32 %v1444, %v1446
  %v1448 = vsub.f32 1.0, %v1447
  %v1449 = vmul.f32 %v1446, %v1448
  %v1450 = vadd.f32 %v1446, %v1449
  %vm1451 = vweird.f32 %v1444
  %vm1452 = vweird.f32 %v1446
  %vm1453 = vmor %vm1451, %vm1452
  %v1454 = vsel %vm1453, %v1446, %v1450
  %v1455 = vand.u32 2147483647, %v1444
  %vm1456 = vcmp.eq.f32.partialorder %v1455, 8.507059e+37
  %v1457 = vand.u32 %v1444, 2147483648
  %v1458 = vor.u32 1.1754944e-38, %v1457
  %v1459 = vsel %vm1456, %v1458, %v1454
  %v1460 = vmul.f32 1.0, %v1459
  %v1461 = vrcp.pop %v1445
  %v1462 = vmul.f32 %v1445, %v1461
  %v1463 = vsub.f32 1.0, %v1462
  %v1464 = vmul.f32 %v1461, %v1463
  %v1465 = vadd.f32 %v1461, %v1464
  %vm1466 = vweird.f32 %v1445
  %vm1467 = vweird.f32 %v1461
  %vm1468 = vmor %vm1466, %vm1467
  %v1469 = vsel %vm1468, %v1461, %v1465
  %v1470 = vand.u32 2147483647, %v1445
  %vm1471 = vcmp.eq.f32.partialorder %v1470, 8.507059e+37
  %v1472 = vand.u32 %v1445, 2147483648
  %v1473 = vor.u32 1.1754944e-38, %v1472
  %v1474 = vsel %vm1471, %v1473, %v1469
  %v1475 = vmul.f32 1.0, %v1474
  %v1476 = vadd.f32 %v1388, %v1418
  %v1477 = vadd.f32 %v1391, %v1420
  %v1478 = vxor.u32 %v1476, 2147483648
  %v1479 = vxor.u32 %v1477, 2147483648
  %v1480 = vmul.f32 %v1478, 1.442695
  %v1481 = vpow.pop %v1480
  %v1482 = vmul.f32 %v1479, 1.442695
  %v1483 = vpow.pop %v1482
  %v1484 = vadd.f32 %v1481, 1.0
  %v1485 = vadd.f32 %v1483, 1.0
  %v1486 = vrcp.pop %v1484
  %v1487 = vmul.f32 %v1484, %v1486
  %v1488 = vsub.f32 1.0, %v1487
  %v1489 = vmul.f32 %v1486, %v1488
  %v1490 = vadd.f32 %v1486, %v1489
  %vm1491 = vweird.f32 %v1484
  %vm1492 = vweird.f32 %v1486
  %vm1493 = vmor %vm1491, %vm1492
  %v1494 = vsel %vm1493, %v1486, %v1490
  %v1495 = vand.u32 2147483647, %v1484
  %vm1496 = vcmp.eq.f32.partialorder %v1495, 8.507059e+37
  %v1497 = vand.u32 %v1484, 2147483648
  %v1498 = vor.u32 1.1754944e-38, %v1497
  %v1499 = vsel %vm1496, %v1498, %v1494
  %v1500 = vmul.f32 1.0, %v1499
  %v1501 = vrcp.pop %v1485
  %v1502 = vmul.f32 %v1485, %v1501
  %v1503 = vsub.f32 1.0, %v1502
  %v1504 = vmul.f32 %v1501, %v1503
  %v1505 = vadd.f32 %v1501, %v1504
  %vm1506 = vweird.f32 %v1485
  %vm1507 = vweird.f32 %v1501
  %vm1508 = vmor %vm1506, %vm1507
  %v1509 = vsel %vm1508, %v1501, %v1505
  %v1510 = vand.u32 2147483647, %v1485
  %vm1511 = vcmp.eq.f32.partialorder %v1510, 8.507059e+37
  %v1512 = vand.u32 %v1485, 2147483648
  %v1513 = vor.u32 1.1754944e-38, %v1512
  %v1514 = vsel %vm1511, %v1513, %v1509
  %v1515 = vmul.f32 1.0, %v1514
  %v1516 = vadd.f32 %v1432, %v1053
  %v1517 = vadd.f32 %v1434, %v1053
  %v1518 = vmul.f32 %v1460, %v1516
  %v1519 = vmul.f32 %v1475, %v1517
  %v1520 = vadd.f32 %v1389, %v1518
  %v1521 = vadd.f32 %v1392, %v1519
  %v1522 = vtanh.pop %v1520
  %v1523 = vtanh.pop %v1521
  %v1524 = vsub.f32 %v1087, %v1522
  %v1525 = vsub.f32 %v1088, %v1523
  %v1526 = vmul.f32 %v1500, %v1524
  %v1527 = vmul.f32 %v1515, %v1525
  %v1528 = vadd.f32 %v1522, %v1526
  %v1529 = vadd.f32 %v1523, %v1527
  %s1530 = scalar_lea.vmem %s2, 16
  %v1531 = vld [vmem:[%s1530] sm:$0xff]
  %v1532 = vld [vmem:[%s1530 + $0x8] sm:$0xff]
  %vm1533 = vcmp.gt.f32.partialorder %v1531, 0.0
  %vm1534 = vcmp.gt.f32.partialorder %v1532, 0.0
  %v1535 = vsel %vm1533, 1, 0
  %v1536 = vsel %vm1534, 1, 0
  %1537 = vset.pattern.permute.xlu0 0
  %1538 = vperm.xlu0 %1537, %v1535
  %v1539 = vpop.permute.xlu0 %1538
  %1540 = vset.pattern.permute.xlu0 0
  %1541 = vperm.xlu0 %1540, %v1536
  %v1542 = vpop.permute.xlu0 %1541
  %vm1543 = vcmp.eq.s32.totalorder %v1539, 1
  %vm1544 = vcmp.eq.s32.totalorder %v1542, 1
  %v1545 = vsel %vm1543, %v1528, 0.0
  %v1546 = vsel %vm1544, %v1529, 0.0
  %s1547 = scalar_lea.vmem %s12, 16
  %1548 = vst [vmem:[%s1547] sm:$0xff] %v1545
  %1549 = vst [vmem:[%s1547 + $0x8] sm:$0xff] %v1546
  %v1550 = vsel %vm1543, %v1528, %v1087
  %v1551 = vsel %vm1544, %v1529, %v1088
  %s1552 = scalar_lea.vmem [#allocation3], 288
  %v1553 = vld [vmem:[%s1552] sm:$0xff]
  %v1554 = vld [vmem:[%s1552 + $0x8] sm:$0xff]
  %v1555 = vld [vmem:[%s1552 + $0x10] sm:$0xff]
  %v1556 = vld [vmem:[%s1552 + $0x18] sm:$0xff]
  %v1557 = vld [vmem:[%s1552 + $0x20] sm:$0xff]
  %v1558 = vld [vmem:[%s1552 + $0x28] sm:$0xff]
  %v1559 = vpack.c.bf16 %v1385, %v1384
  %1560 = vmatpush.bf16.msra.mxu0 %v1198
  %1561 = vmatpush.bf16.msra.mxu0 %v1195
  %1562 = vmatpush.bf16.msra.mxu0 %v1192
  %1563 = vmatpush.bf16.msra.mxu0 %v1189
  %1564 = vmatpush.bf16.msra.mxu0 %v1186
  %1565 = vmatpush.bf16.msra.mxu0 %v1183
  %1566 = vmatpush.bf16.msra.mxu0 %v1180
  %1567 = vmatpush.bf16.msra.mxu0 %v1177
  %1568 = vmatmul.bf16.gmra.mxu0 %v1559
  %v1569 = vpop.f32.mrf.mxu0
  %v1570 = vadd.f32 0.0, %v1569
  %v1571 = vpop.f32.mrf.mxu0
  %v1572 = vadd.f32 0.0, %v1571
  %1573 = vdwg.mxu0
  %1574 = vmatpush.bf16.msra.mxu0 %v1199
  %1575 = vmatpush.bf16.msra.mxu0 %v1196
  %1576 = vmatpush.bf16.msra.mxu0 %v1193
  %1577 = vmatpush.bf16.msra.mxu0 %v1190
  %1578 = vmatpush.bf16.msra.mxu0 %v1187
  %1579 = vmatpush.bf16.msra.mxu0 %v1184
  %1580 = vmatpush.bf16.msra.mxu0 %v1181
  %1581 = vmatpush.bf16.msra.mxu0 %v1178
  %1582 = vmatmul.bf16.gmra.mxu0 %v1559
  %v1583 = vpop.f32.mrf.mxu0
  %v1584 = vadd.f32 0.0, %v1583
  %v1585 = vpop.f32.mrf.mxu0
  %v1586 = vadd.f32 0.0, %v1585
  %1587 = vdwg.mxu0
  %1588 = vmatpush.bf16.msra.mxu0 %v1200
  %1589 = vmatpush.bf16.msra.mxu0 %v1197
  %1590 = vmatpush.bf16.msra.mxu0 %v1194
  %1591 = vmatpush.bf16.msra.mxu0 %v1191
  %1592 = vmatpush.bf16.msra.mxu0 %v1188
  %1593 = vmatpush.bf16.msra.mxu0 %v1185
  %1594 = vmatpush.bf16.msra.mxu0 %v1182
  %1595 = vmatpush.bf16.msra.mxu0 %v1179
  %1596 = vmatmul.bf16.gmra.mxu0 %v1559
  %v1597 = vpop.f32.mrf.mxu0
  %v1598 = vadd.f32 0.0, %v1597
  %v1599 = vpop.f32.mrf.mxu0
  %v1600 = vadd.f32 0.0, %v1599
  %1601 = vdwg.mxu0
  %v1602 = vadd.f32 %v1553, %v1570
  %v1603 = vadd.f32 %v1556, %v1572
  %v1604 = vxor.u32 %v1602, 2147483648
  %v1605 = vxor.u32 %v1603, 2147483648
  %v1606 = vmul.f32 %v1604, 1.442695
  %v1607 = vpow.pop %v1606
  %v1608 = vmul.f32 %v1605, 1.442695
  %v1609 = vpow.pop %v1608
  %v1610 = vadd.f32 %v1607, 1.0
  %v1611 = vadd.f32 %v1609, 1.0
  %v1612 = vrcp.pop %v1610
  %v1613 = vmul.f32 %v1610, %v1612
  %v1614 = vsub.f32 1.0, %v1613
  %v1615 = vmul.f32 %v1612, %v1614
  %v1616 = vadd.f32 %v1612, %v1615
  %vm1617 = vweird.f32 %v1610
  %vm1618 = vweird.f32 %v1612
  %vm1619 = vmor %vm1617, %vm1618
  %v1620 = vsel %vm1619, %v1612, %v1616
  %v1621 = vand.u32 2147483647, %v1610
  %vm1622 = vcmp.eq.f32.partialorder %v1621, 8.507059e+37
  %v1623 = vand.u32 %v1610, 2147483648
  %v1624 = vor.u32 1.1754944e-38, %v1623
  %v1625 = vsel %vm1622, %v1624, %v1620
  %v1626 = vmul.f32 1.0, %v1625
  %v1627 = vrcp.pop %v1611
  %v1628 = vmul.f32 %v1611, %v1627
  %v1629 = vsub.f32 1.0, %v1628
  %v1630 = vmul.f32 %v1627, %v1629
  %v1631 = vadd.f32 %v1627, %v1630
  %vm1632 = vweird.f32 %v1611
  %vm1633 = vweird.f32 %v1627
  %vm1634 = vmor %vm1632, %vm1633
  %v1635 = vsel %vm1634, %v1627, %v1631
  %v1636 = vand.u32 2147483647, %v1611
  %vm1637 = vcmp.eq.f32.partialorder %v1636, 8.507059e+37
  %v1638 = vand.u32 %v1611, 2147483648
  %v1639 = vor.u32 1.1754944e-38, %v1638
  %v1640 = vsel %vm1637, %v1639, %v1635
  %v1641 = vmul.f32 1.0, %v1640
  %v1642 = vadd.f32 %v1554, %v1584
  %v1643 = vadd.f32 %v1557, %v1586
  %v1644 = vxor.u32 %v1642, 2147483648
  %v1645 = vxor.u32 %v1643, 2147483648
  %v1646 = vmul.f32 %v1644, 1.442695
  %v1647 = vpow.pop %v1646
  %v1648 = vmul.f32 %v1645, 1.442695
  %v1649 = vpow.pop %v1648
  %v1650 = vadd.f32 %v1647, 1.0
  %v1651 = vadd.f32 %v1649, 1.0
  %v1652 = vrcp.pop %v1650
  %v1653 = vmul.f32 %v1650, %v1652
  %v1654 = vsub.f32 1.0, %v1653
  %v1655 = vmul.f32 %v1652, %v1654
  %v1656 = vadd.f32 %v1652, %v1655
  %vm1657 = vweird.f32 %v1650
  %vm1658 = vweird.f32 %v1652
  %vm1659 = vmor %vm1657, %vm1658
  %v1660 = vsel %vm1659, %v1652, %v1656
  %v1661 = vand.u32 2147483647, %v1650
  %vm1662 = vcmp.eq.f32.partialorder %v1661, 8.507059e+37
  %v1663 = vand.u32 %v1650, 2147483648
  %v1664 = vor.u32 1.1754944e-38, %v1663
  %v1665 = vsel %vm1662, %v1664, %v1660
  %v1666 = vmul.f32 1.0, %v1665
  %v1667 = vrcp.pop %v1651
  %v1668 = vmul.f32 %v1651, %v1667
  %v1669 = vsub.f32 1.0, %v1668
  %v1670 = vmul.f32 %v1667, %v1669
  %v1671 = vadd.f32 %v1667, %v1670
  %vm1672 = vweird.f32 %v1651
  %vm1673 = vweird.f32 %v1667
  %vm1674 = vmor %vm1672, %vm1673
  %v1675 = vsel %vm1674, %v1667, %v1671
  %v1676 = vand.u32 2147483647, %v1651
  %vm1677 = vcmp.eq.f32.partialorder %v1676, 8.507059e+37
  %v1678 = vand.u32 %v1651, 2147483648
  %v1679 = vor.u32 1.1754944e-38, %v1678
  %v1680 = vsel %vm1677, %v1679, %v1675
  %v1681 = vmul.f32 1.0, %v1680
  %v1682 = vadd.f32 %v1598, %v1348
  %v1683 = vadd.f32 %v1600, %v1348
  %v1684 = vmul.f32 %v1626, %v1682
  %v1685 = vmul.f32 %v1641, %v1683
  %v1686 = vadd.f32 %v1555, %v1684
  %v1687 = vadd.f32 %v1558, %v1685
  %v1688 = vtanh.pop %v1686
  %v1689 = vtanh.pop %v1687
  %v1690 = vsub.f32 %v1384, %v1688
  %v1691 = vsub.f32 %v1385, %v1689
  %v1692 = vmul.f32 %v1666, %v1690
  %v1693 = vmul.f32 %v1681, %v1691
  %v1694 = vadd.f32 %v1688, %v1692
  %v1695 = vadd.f32 %v1689, %v1693
  %s1696 = scalar_lea.vmem %s97, 96
  %v1697 = vld [vmem:[%s1696] sm:$0xff]
  %v1698 = vld [vmem:[%s1696 + $0x8] sm:$0xff]
  %vm1699 = vcmp.gt.f32.partialorder %v1697, 0.0
  %vm1700 = vcmp.gt.f32.partialorder %v1698, 0.0
  %v1701 = vsel %vm1699, 1, 0
  %v1702 = vsel %vm1700, 1, 0
  %1703 = vset.pattern.permute.xlu0 0
  %1704 = vperm.xlu0 %1703, %v1701
  %v1705 = vpop.permute.xlu0 %1704
  %1706 = vset.pattern.permute.xlu0 0
  %1707 = vperm.xlu0 %1706, %v1702
  %v1708 = vpop.permute.xlu0 %1707
  %vm1709 = vcmp.eq.s32.totalorder %v1705, 1
  %vm1710 = vcmp.eq.s32.totalorder %v1708, 1
  %v1711 = vsel %vm1709, %v1694, 0.0
  %v1712 = vsel %vm1710, %v1695, 0.0
  %s1713 = scalar_lea.vmem %s106, 96
  %1714 = vst [vmem:[%s1713] sm:$0xff] %v1711
  %1715 = vst [vmem:[%s1713 + $0x8] sm:$0xff] %v1712
  %v1716 = vsel %vm1709, %v1694, %v1384
  %v1717 = vsel %vm1710, %v1695, %v1385
  %s1718 = scalar_lea.vmem [#allocation2], 96
  %v1719 = vld [vmem:[%s1718] sm:$0xff]
  %v1720 = vld [vmem:[%s1718 + $0x8] sm:$0xff]
  %v1721 = vld [vmem:[%s1718 + $0x10] sm:$0xff]
  %v1722 = vld [vmem:[%s1718 + $0x18] sm:$0xff]
  %v1723 = vld [vmem:[%s1718 + $0x20] sm:$0xff]
  %v1724 = vld [vmem:[%s1718 + $0x28] sm:$0xff]
  %v1725 = vpack.c.bf16 %v1551, %v1550
  %1726 = vmatpush.bf16.msra.mxu0 %v903
  %1727 = vmatpush.bf16.msra.mxu0 %v900
  %1728 = vmatpush.bf16.msra.mxu0 %v897
  %1729 = vmatpush.bf16.msra.mxu0 %v894
  %1730 = vmatpush.bf16.msra.mxu0 %v891
  %1731 = vmatpush.bf16.msra.mxu0 %v888
  %1732 = vmatpush.bf16.msra.mxu0 %v885
  %1733 = vmatpush.bf16.msra.mxu0 %v882
  %1734 = vmatmul.bf16.gmra.mxu0 %v1725
  %v1735 = vpop.f32.mrf.mxu0
  %v1736 = vadd.f32 0.0, %v1735
  %v1737 = vpop.f32.mrf.mxu0
  %v1738 = vadd.f32 0.0, %v1737
  %1739 = vdwg.mxu0
  %1740 = vmatpush.bf16.msra.mxu0 %v904
  %1741 = vmatpush.bf16.msra.mxu0 %v901
  %1742 = vmatpush.bf16.msra.mxu0 %v898
  %1743 = vmatpush.bf16.msra.mxu0 %v895
  %1744 = vmatpush.bf16.msra.mxu0 %v892
  %1745 = vmatpush.bf16.msra.mxu0 %v889
  %1746 = vmatpush.bf16.msra.mxu0 %v886
  %1747 = vmatpush.bf16.msra.mxu0 %v883
  %1748 = vmatmul.bf16.gmra.mxu0 %v1725
  %v1749 = vpop.f32.mrf.mxu0
  %v1750 = vadd.f32 0.0, %v1749
  %v1751 = vpop.f32.mrf.mxu0
  %v1752 = vadd.f32 0.0, %v1751
  %1753 = vdwg.mxu0
  %1754 = vmatpush.bf16.msra.mxu0 %v905
  %1755 = vmatpush.bf16.msra.mxu0 %v902
  %1756 = vmatpush.bf16.msra.mxu0 %v899
  %1757 = vmatpush.bf16.msra.mxu0 %v896
  %1758 = vmatpush.bf16.msra.mxu0 %v893
  %1759 = vmatpush.bf16.msra.mxu0 %v890
  %1760 = vmatpush.bf16.msra.mxu0 %v887
  %1761 = vmatpush.bf16.msra.mxu0 %v884
  %1762 = vmatmul.bf16.gmra.mxu0 %v1725
  %v1763 = vpop.f32.mrf.mxu0
  %v1764 = vadd.f32 0.0, %v1763
  %v1765 = vpop.f32.mrf.mxu0
  %v1766 = vadd.f32 0.0, %v1765
  %1767 = vdwg.mxu0
  %v1768 = vadd.f32 %v1719, %v1736
  %v1769 = vadd.f32 %v1722, %v1738
  %v1770 = vxor.u32 %v1768, 2147483648
  %v1771 = vxor.u32 %v1769, 2147483648
  %v1772 = vmul.f32 %v1770, 1.442695
  %v1773 = vpow.pop %v1772
  %v1774 = vmul.f32 %v1771, 1.442695
  %v1775 = vpow.pop %v1774
  %v1776 = vadd.f32 %v1773, 1.0
  %v1777 = vadd.f32 %v1775, 1.0
  %v1778 = vrcp.pop %v1776
  %v1779 = vmul.f32 %v1776, %v1778
  %v1780 = vsub.f32 1.0, %v1779
  %v1781 = vmul.f32 %v1778, %v1780
  %v1782 = vadd.f32 %v1778, %v1781
  %vm1783 = vweird.f32 %v1776
  %vm1784 = vweird.f32 %v1778
  %vm1785 = vmor %vm1783, %vm1784
  %v1786 = vsel %vm1785, %v1778, %v1782
  %v1787 = vand.u32 2147483647, %v1776
  %vm1788 = vcmp.eq.f32.partialorder %v1787, 8.507059e+37
  %v1789 = vand.u32 %v1776, 2147483648
  %v1790 = vor.u32 1.1754944e-38, %v1789
  %v1791 = vsel %vm1788, %v1790, %v1786
  %v1792 = vmul.f32 1.0, %v1791
  %v1793 = vrcp.pop %v1777
  %v1794 = vmul.f32 %v1777, %v1793
  %v1795 = vsub.f32 1.0, %v1794
  %v1796 = vmul.f32 %v1793, %v1795
  %v1797 = vadd.f32 %v1793, %v1796
  %vm1798 = vweird.f32 %v1777
  %vm1799 = vweird.f32 %v1793
  %vm1800 = vmor %vm1798, %vm1799
  %v1801 = vsel %vm1800, %v1793, %v1797
  %v1802 = vand.u32 2147483647, %v1777
  %vm1803 = vcmp.eq.f32.partialorder %v1802, 8.507059e+37
  %v1804 = vand.u32 %v1777, 2147483648
  %v1805 = vor.u32 1.1754944e-38, %v1804
  %v1806 = vsel %vm1803, %v1805, %v1801
  %v1807 = vmul.f32 1.0, %v1806
  %v1808 = vadd.f32 %v1720, %v1750
  %v1809 = vadd.f32 %v1723, %v1752
  %v1810 = vxor.u32 %v1808, 2147483648
  %v1811 = vxor.u32 %v1809, 2147483648
  %v1812 = vmul.f32 %v1810, 1.442695
  %v1813 = vpow.pop %v1812
  %v1814 = vmul.f32 %v1811, 1.442695
  %v1815 = vpow.pop %v1814
  %v1816 = vadd.f32 %v1813, 1.0
  %v1817 = vadd.f32 %v1815, 1.0
  %v1818 = vrcp.pop %v1816
  %v1819 = vmul.f32 %v1816, %v1818
  %v1820 = vsub.f32 1.0, %v1819
  %v1821 = vmul.f32 %v1818, %v1820
  %v1822 = vadd.f32 %v1818, %v1821
  %vm1823 = vweird.f32 %v1816
  %vm1824 = vweird.f32 %v1818
  %vm1825 = vmor %vm1823, %vm1824
  %v1826 = vsel %vm1825, %v1818, %v1822
  %v1827 = vand.u32 2147483647, %v1816
  %vm1828 = vcmp.eq.f32.partialorder %v1827, 8.507059e+37
  %v1829 = vand.u32 %v1816, 2147483648
  %v1830 = vor.u32 1.1754944e-38, %v1829
  %v1831 = vsel %vm1828, %v1830, %v1826
  %v1832 = vmul.f32 1.0, %v1831
  %v1833 = vrcp.pop %v1817
  %v1834 = vmul.f32 %v1817, %v1833
  %v1835 = vsub.f32 1.0, %v1834
  %v1836 = vmul.f32 %v1833, %v1835
  %v1837 = vadd.f32 %v1833, %v1836
  %vm1838 = vweird.f32 %v1817
  %vm1839 = vweird.f32 %v1833
  %vm1840 = vmor %vm1838, %vm1839
  %v1841 = vsel %vm1840, %v1833, %v1837
  %v1842 = vand.u32 2147483647, %v1817
  %vm1843 = vcmp.eq.f32.partialorder %v1842, 8.507059e+37
  %v1844 = vand.u32 %v1817, 2147483648
  %v1845 = vor.u32 1.1754944e-38, %v1844
  %v1846 = vsel %vm1843, %v1845, %v1841
  %v1847 = vmul.f32 1.0, %v1846
  %v1848 = vadd.f32 %v1764, %v1053
  %v1849 = vadd.f32 %v1766, %v1053
  %v1850 = vmul.f32 %v1792, %v1848
  %v1851 = vmul.f32 %v1807, %v1849
  %v1852 = vadd.f32 %v1721, %v1850
  %v1853 = vadd.f32 %v1724, %v1851
  %v1854 = vtanh.pop %v1852
  %v1855 = vtanh.pop %v1853
  %v1856 = vsub.f32 %v1550, %v1854
  %v1857 = vsub.f32 %v1551, %v1855
  %v1858 = vmul.f32 %v1832, %v1856
  %v1859 = vmul.f32 %v1847, %v1857
  %v1860 = vadd.f32 %v1854, %v1858
  %v1861 = vadd.f32 %v1855, %v1859
  %s1862 = scalar_lea.vmem %s2, 32
  %v1863 = vld [vmem:[%s1862] sm:$0xff]
  %v1864 = vld [vmem:[%s1862 + $0x8] sm:$0xff]
  %vm1865 = vcmp.gt.f32.partialorder %v1863, 0.0
  %vm1866 = vcmp.gt.f32.partialorder %v1864, 0.0
  %v1867 = vsel %vm1865, 1, 0
  %v1868 = vsel %vm1866, 1, 0
  %1869 = vset.pattern.permute.xlu0 0
  %1870 = vperm.xlu0 %1869, %v1867
  %v1871 = vpop.permute.xlu0 %1870
  %1872 = vset.pattern.permute.xlu0 0
  %1873 = vperm.xlu0 %1872, %v1868
  %v1874 = vpop.permute.xlu0 %1873
  %vm1875 = vcmp.eq.s32.totalorder %v1871, 1
  %vm1876 = vcmp.eq.s32.totalorder %v1874, 1
  %v1877 = vsel %vm1875, %v1860, 0.0
  %v1878 = vsel %vm1876, %v1861, 0.0
  %s1879 = scalar_lea.vmem %s12, 32
  %1880 = vst [vmem:[%s1879] sm:$0xff] %v1877
  %1881 = vst [vmem:[%s1879 + $0x8] sm:$0xff] %v1878
  %v1882 = vsel %vm1875, %v1860, %v1550
  %v1883 = vsel %vm1876, %v1861, %v1551
  %s1884 = scalar_lea.vmem [#allocation3], 240
  %v1885 = vld [vmem:[%s1884] sm:$0xff]
  %v1886 = vld [vmem:[%s1884 + $0x8] sm:$0xff]
  %v1887 = vld [vmem:[%s1884 + $0x10] sm:$0xff]
  %v1888 = vld [vmem:[%s1884 + $0x18] sm:$0xff]
  %v1889 = vld [vmem:[%s1884 + $0x20] sm:$0xff]
  %v1890 = vld [vmem:[%s1884 + $0x28] sm:$0xff]
  %v1891 = vpack.c.bf16 %v1717, %v1716
  %1892 = vmatpush.bf16.msra.mxu0 %v1198
  %1893 = vmatpush.bf16.msra.mxu0 %v1195
  %1894 = vmatpush.bf16.msra.mxu0 %v1192
  %1895 = vmatpush.bf16.msra.mxu0 %v1189
  %1896 = vmatpush.bf16.msra.mxu0 %v1186
  %1897 = vmatpush.bf16.msra.mxu0 %v1183
  %1898 = vmatpush.bf16.msra.mxu0 %v1180
  %1899 = vmatpush.bf16.msra.mxu0 %v1177
  %1900 = vmatmul.bf16.gmra.mxu0 %v1891
  %v1901 = vpop.f32.mrf.mxu0
  %v1902 = vadd.f32 0.0, %v1901
  %v1903 = vpop.f32.mrf.mxu0
  %v1904 = vadd.f32 0.0, %v1903
  %1905 = vdwg.mxu0
  %1906 = vmatpush.bf16.msra.mxu0 %v1199
  %1907 = vmatpush.bf16.msra.mxu0 %v1196
  %1908 = vmatpush.bf16.msra.mxu0 %v1193
  %1909 = vmatpush.bf16.msra.mxu0 %v1190
  %1910 = vmatpush.bf16.msra.mxu0 %v1187
  %1911 = vmatpush.bf16.msra.mxu0 %v1184
  %1912 = vmatpush.bf16.msra.mxu0 %v1181
  %1913 = vmatpush.bf16.msra.mxu0 %v1178
  %1914 = vmatmul.bf16.gmra.mxu0 %v1891
  %v1915 = vpop.f32.mrf.mxu0
  %v1916 = vadd.f32 0.0, %v1915
  %v1917 = vpop.f32.mrf.mxu0
  %v1918 = vadd.f32 0.0, %v1917
  %1919 = vdwg.mxu0
  %1920 = vmatpush.bf16.msra.mxu0 %v1200
  %1921 = vmatpush.bf16.msra.mxu0 %v1197
  %1922 = vmatpush.bf16.msra.mxu0 %v1194
  %1923 = vmatpush.bf16.msra.mxu0 %v1191
  %1924 = vmatpush.bf16.msra.mxu0 %v1188
  %1925 = vmatpush.bf16.msra.mxu0 %v1185
  %1926 = vmatpush.bf16.msra.mxu0 %v1182
  %1927 = vmatpush.bf16.msra.mxu0 %v1179
  %1928 = vmatmul.bf16.gmra.mxu0 %v1891
  %v1929 = vpop.f32.mrf.mxu0
  %v1930 = vadd.f32 0.0, %v1929
  %v1931 = vpop.f32.mrf.mxu0
  %v1932 = vadd.f32 0.0, %v1931
  %1933 = vdwg.mxu0
  %v1934 = vadd.f32 %v1885, %v1902
  %v1935 = vadd.f32 %v1888, %v1904
  %v1936 = vxor.u32 %v1934, 2147483648
  %v1937 = vxor.u32 %v1935, 2147483648
  %v1938 = vmul.f32 %v1936, 1.442695
  %v1939 = vpow.pop %v1938
  %v1940 = vmul.f32 %v1937, 1.442695
  %v1941 = vpow.pop %v1940
  %v1942 = vadd.f32 %v1939, 1.0
  %v1943 = vadd.f32 %v1941, 1.0
  %v1944 = vrcp.pop %v1942
  %v1945 = vmul.f32 %v1942, %v1944
  %v1946 = vsub.f32 1.0, %v1945
  %v1947 = vmul.f32 %v1944, %v1946
  %v1948 = vadd.f32 %v1944, %v1947
  %vm1949 = vweird.f32 %v1942
  %vm1950 = vweird.f32 %v1944
  %vm1951 = vmor %vm1949, %vm1950
  %v1952 = vsel %vm1951, %v1944, %v1948
  %v1953 = vand.u32 2147483647, %v1942
  %vm1954 = vcmp.eq.f32.partialorder %v1953, 8.507059e+37
  %v1955 = vand.u32 %v1942, 2147483648
  %v1956 = vor.u32 1.1754944e-38, %v1955
  %v1957 = vsel %vm1954, %v1956, %v1952
  %v1958 = vmul.f32 1.0, %v1957
  %v1959 = vrcp.pop %v1943
  %v1960 = vmul.f32 %v1943, %v1959
  %v1961 = vsub.f32 1.0, %v1960
  %v1962 = vmul.f32 %v1959, %v1961
  %v1963 = vadd.f32 %v1959, %v1962
  %vm1964 = vweird.f32 %v1943
  %vm1965 = vweird.f32 %v1959
  %vm1966 = vmor %vm1964, %vm1965
  %v1967 = vsel %vm1966, %v1959, %v1963
  %v1968 = vand.u32 2147483647, %v1943
  %vm1969 = vcmp.eq.f32.partialorder %v1968, 8.507059e+37
  %v1970 = vand.u32 %v1943, 2147483648
  %v1971 = vor.u32 1.1754944e-38, %v1970
  %v1972 = vsel %vm1969, %v1971, %v1967
  %v1973 = vmul.f32 1.0, %v1972
  %v1974 = vadd.f32 %v1886, %v1916
  %v1975 = vadd.f32 %v1889, %v1918
  %v1976 = vxor.u32 %v1974, 2147483648
  %v1977 = vxor.u32 %v1975, 2147483648
  %v1978 = vmul.f32 %v1976, 1.442695
  %v1979 = vpow.pop %v1978
  %v1980 = vmul.f32 %v1977, 1.442695
  %v1981 = vpow.pop %v1980
  %v1982 = vadd.f32 %v1979, 1.0
  %v1983 = vadd.f32 %v1981, 1.0
  %v1984 = vrcp.pop %v1982
  %v1985 = vmul.f32 %v1982, %v1984
  %v1986 = vsub.f32 1.0, %v1985
  %v1987 = vmul.f32 %v1984, %v1986
  %v1988 = vadd.f32 %v1984, %v1987
  %vm1989 = vweird.f32 %v1982
  %vm1990 = vweird.f32 %v1984
  %vm1991 = vmor %vm1989, %vm1990
  %v1992 = vsel %vm1991, %v1984, %v1988
  %v1993 = vand.u32 2147483647, %v1982
  %vm1994 = vcmp.eq.f32.partialorder %v1993, 8.507059e+37
  %v1995 = vand.u32 %v1982, 2147483648
  %v1996 = vor.u32 1.1754944e-38, %v1995
  %v1997 = vsel %vm1994, %v1996, %v1992
  %v1998 = vmul.f32 1.0, %v1997
  %v1999 = vrcp.pop %v1983
  %v2000 = vmul.f32 %v1983, %v1999
  %v2001 = vsub.f32 1.0, %v2000
  %v2002 = vmul.f32 %v1999, %v2001
  %v2003 = vadd.f32 %v1999, %v2002
  %vm2004 = vweird.f32 %v1983
  %vm2005 = vweird.f32 %v1999
  %vm2006 = vmor %vm2004, %vm2005
  %v2007 = vsel %vm2006, %v1999, %v2003
  %v2008 = vand.u32 2147483647, %v1983
  %vm2009 = vcmp.eq.f32.partialorder %v2008, 8.507059e+37
  %v2010 = vand.u32 %v1983, 2147483648
  %v2011 = vor.u32 1.1754944e-38, %v2010
  %v2012 = vsel %vm2009, %v2011, %v2007
  %v2013 = vmul.f32 1.0, %v2012
  %v2014 = vadd.f32 %v1930, %v1348
  %v2015 = vadd.f32 %v1932, %v1348
  %v2016 = vmul.f32 %v1958, %v2014
  %v2017 = vmul.f32 %v1973, %v2015
  %v2018 = vadd.f32 %v1887, %v2016
  %v2019 = vadd.f32 %v1890, %v2017
  %v2020 = vtanh.pop %v2018
  %v2021 = vtanh.pop %v2019
  %v2022 = vsub.f32 %v1716, %v2020
  %v2023 = vsub.f32 %v1717, %v2021
  %v2024 = vmul.f32 %v1998, %v2022
  %v2025 = vmul.f32 %v2013, %v2023
  %v2026 = vadd.f32 %v2020, %v2024
  %v2027 = vadd.f32 %v2021, %v2025
  %s2028 = scalar_lea.vmem %s97, 80
  %v2029 = vld [vmem:[%s2028] sm:$0xff]
  %v2030 = vld [vmem:[%s2028 + $0x8] sm:$0xff]
  %vm2031 = vcmp.gt.f32.partialorder %v2029, 0.0
  %vm2032 = vcmp.gt.f32.partialorder %v2030, 0.0
  %v2033 = vsel %vm2031, 1, 0
  %v2034 = vsel %vm2032, 1, 0
  %2035 = vset.pattern.permute.xlu0 0
  %2036 = vperm.xlu0 %2035, %v2033
  %v2037 = vpop.permute.xlu0 %2036
  %2038 = vset.pattern.permute.xlu0 0
  %2039 = vperm.xlu0 %2038, %v2034
  %v2040 = vpop.permute.xlu0 %2039
  %vm2041 = vcmp.eq.s32.totalorder %v2037, 1
  %vm2042 = vcmp.eq.s32.totalorder %v2040, 1
  %v2043 = vsel %vm2041, %v2026, 0.0
  %v2044 = vsel %vm2042, %v2027, 0.0
  %s2045 = scalar_lea.vmem %s106, 80
  %2046 = vst [vmem:[%s2045] sm:$0xff] %v2043
  %2047 = vst [vmem:[%s2045 + $0x8] sm:$0xff] %v2044
  %v2048 = vsel %vm2041, %v2026, %v1716
  %v2049 = vsel %vm2042, %v2027, %v1717
  %s2050 = scalar_lea.vmem [#allocation2], 144
  %v2051 = vld [vmem:[%s2050] sm:$0xff]
  %v2052 = vld [vmem:[%s2050 + $0x8] sm:$0xff]
  %v2053 = vld [vmem:[%s2050 + $0x10] sm:$0xff]
  %v2054 = vld [vmem:[%s2050 + $0x18] sm:$0xff]
  %v2055 = vld [vmem:[%s2050 + $0x20] sm:$0xff]
  %v2056 = vld [vmem:[%s2050 + $0x28] sm:$0xff]
  %v2057 = vpack.c.bf16 %v1883, %v1882
  %2058 = vmatpush.bf16.msra.mxu0 %v903
  %2059 = vmatpush.bf16.msra.mxu0 %v900
  %2060 = vmatpush.bf16.msra.mxu0 %v897
  %2061 = vmatpush.bf16.msra.mxu0 %v894
  %2062 = vmatpush.bf16.msra.mxu0 %v891
  %2063 = vmatpush.bf16.msra.mxu0 %v888
  %2064 = vmatpush.bf16.msra.mxu0 %v885
  %2065 = vmatpush.bf16.msra.mxu0 %v882
  %2066 = vmatmul.bf16.gmra.mxu0 %v2057
  %v2067 = vpop.f32.mrf.mxu0
  %v2068 = vadd.f32 0.0, %v2067
  %v2069 = vpop.f32.mrf.mxu0
  %v2070 = vadd.f32 0.0, %v2069
  %2071 = vdwg.mxu0
  %2072 = vmatpush.bf16.msra.mxu0 %v904
  %2073 = vmatpush.bf16.msra.mxu0 %v901
  %2074 = vmatpush.bf16.msra.mxu0 %v898
  %2075 = vmatpush.bf16.msra.mxu0 %v895
  %2076 = vmatpush.bf16.msra.mxu0 %v892
  %2077 = vmatpush.bf16.msra.mxu0 %v889
  %2078 = vmatpush.bf16.msra.mxu0 %v886
  %2079 = vmatpush.bf16.msra.mxu0 %v883
  %2080 = vmatmul.bf16.gmra.mxu0 %v2057
  %v2081 = vpop.f32.mrf.mxu0
  %v2082 = vadd.f32 0.0, %v2081
  %v2083 = vpop.f32.mrf.mxu0
  %v2084 = vadd.f32 0.0, %v2083
  %2085 = vdwg.mxu0
  %2086 = vmatpush.bf16.msra.mxu0 %v905
  %2087 = vmatpush.bf16.msra.mxu0 %v902
  %2088 = vmatpush.bf16.msra.mxu0 %v899
  %2089 = vmatpush.bf16.msra.mxu0 %v896
  %2090 = vmatpush.bf16.msra.mxu0 %v893
  %2091 = vmatpush.bf16.msra.mxu0 %v890
  %2092 = vmatpush.bf16.msra.mxu0 %v887
  %2093 = vmatpush.bf16.msra.mxu0 %v884
  %2094 = vmatmul.bf16.gmra.mxu0 %v2057
  %v2095 = vpop.f32.mrf.mxu0
  %v2096 = vadd.f32 0.0, %v2095
  %v2097 = vpop.f32.mrf.mxu0
  %v2098 = vadd.f32 0.0, %v2097
  %2099 = vdwg.mxu0
  %v2100 = vadd.f32 %v2051, %v2068
  %v2101 = vadd.f32 %v2054, %v2070
  %v2102 = vxor.u32 %v2100, 2147483648
  %v2103 = vxor.u32 %v2101, 2147483648
  %v2104 = vmul.f32 %v2102, 1.442695
  %v2105 = vpow.pop %v2104
  %v2106 = vmul.f32 %v2103, 1.442695
  %v2107 = vpow.pop %v2106
  %v2108 = vadd.f32 %v2105, 1.0
  %v2109 = vadd.f32 %v2107, 1.0
  %v2110 = vrcp.pop %v2108
  %v2111 = vmul.f32 %v2108, %v2110
  %v2112 = vsub.f32 1.0, %v2111
  %v2113 = vmul.f32 %v2110, %v2112
  %v2114 = vadd.f32 %v2110, %v2113
  %vm2115 = vweird.f32 %v2108
  %vm2116 = vweird.f32 %v2110
  %vm2117 = vmor %vm2115, %vm2116
  %v2118 = vsel %vm2117, %v2110, %v2114
  %v2119 = vand.u32 2147483647, %v2108
  %vm2120 = vcmp.eq.f32.partialorder %v2119, 8.507059e+37
  %v2121 = vand.u32 %v2108, 2147483648
  %v2122 = vor.u32 1.1754944e-38, %v2121
  %v2123 = vsel %vm2120, %v2122, %v2118
  %v2124 = vmul.f32 1.0, %v2123
  %v2125 = vrcp.pop %v2109
  %v2126 = vmul.f32 %v2109, %v2125
  %v2127 = vsub.f32 1.0, %v2126
  %v2128 = vmul.f32 %v2125, %v2127
  %v2129 = vadd.f32 %v2125, %v2128
  %vm2130 = vweird.f32 %v2109
  %vm2131 = vweird.f32 %v2125
  %vm2132 = vmor %vm2130, %vm2131
  %v2133 = vsel %vm2132, %v2125, %v2129
  %v2134 = vand.u32 2147483647, %v2109
  %vm2135 = vcmp.eq.f32.partialorder %v2134, 8.507059e+37
  %v2136 = vand.u32 %v2109, 2147483648
  %v2137 = vor.u32 1.1754944e-38, %v2136
  %v2138 = vsel %vm2135, %v2137, %v2133
  %v2139 = vmul.f32 1.0, %v2138
  %v2140 = vadd.f32 %v2052, %v2082
  %v2141 = vadd.f32 %v2055, %v2084
  %v2142 = vxor.u32 %v2140, 2147483648
  %v2143 = vxor.u32 %v2141, 2147483648
  %v2144 = vmul.f32 %v2142, 1.442695
  %v2145 = vpow.pop %v2144
  %v2146 = vmul.f32 %v2143, 1.442695
  %v2147 = vpow.pop %v2146
  %v2148 = vadd.f32 %v2145, 1.0
  %v2149 = vadd.f32 %v2147, 1.0
  %v2150 = vrcp.pop %v2148
  %v2151 = vmul.f32 %v2148, %v2150
  %v2152 = vsub.f32 1.0, %v2151
  %v2153 = vmul.f32 %v2150, %v2152
  %v2154 = vadd.f32 %v2150, %v2153
  %vm2155 = vweird.f32 %v2148
  %vm2156 = vweird.f32 %v2150
  %vm2157 = vmor %vm2155, %vm2156
  %v2158 = vsel %vm2157, %v2150, %v2154
  %v2159 = vand.u32 2147483647, %v2148
  %vm2160 = vcmp.eq.f32.partialorder %v2159, 8.507059e+37
  %v2161 = vand.u32 %v2148, 2147483648
  %v2162 = vor.u32 1.1754944e-38, %v2161
  %v2163 = vsel %vm2160, %v2162, %v2158
  %v2164 = vmul.f32 1.0, %v2163
  %v2165 = vrcp.pop %v2149
  %v2166 = vmul.f32 %v2149, %v2165
  %v2167 = vsub.f32 1.0, %v2166
  %v2168 = vmul.f32 %v2165, %v2167
  %v2169 = vadd.f32 %v2165, %v2168
  %vm2170 = vweird.f32 %v2149
  %vm2171 = vweird.f32 %v2165
  %vm2172 = vmor %vm2170, %vm2171
  %v2173 = vsel %vm2172, %v2165, %v2169
  %v2174 = vand.u32 2147483647, %v2149
  %vm2175 = vcmp.eq.f32.partialorder %v2174, 8.507059e+37
  %v2176 = vand.u32 %v2149, 2147483648
  %v2177 = vor.u32 1.1754944e-38, %v2176
  %v2178 = vsel %vm2175, %v2177, %v2173
  %v2179 = vmul.f32 1.0, %v2178
  %v2180 = vadd.f32 %v2096, %v1053
  %v2181 = vadd.f32 %v2098, %v1053
  %v2182 = vmul.f32 %v2124, %v2180
  %v2183 = vmul.f32 %v2139, %v2181
  %v2184 = vadd.f32 %v2053, %v2182
  %v2185 = vadd.f32 %v2056, %v2183
  %v2186 = vtanh.pop %v2184
  %v2187 = vtanh.pop %v2185
  %v2188 = vsub.f32 %v1882, %v2186
  %v2189 = vsub.f32 %v1883, %v2187
  %v2190 = vmul.f32 %v2164, %v2188
  %v2191 = vmul.f32 %v2179, %v2189
  %v2192 = vadd.f32 %v2186, %v2190
  %v2193 = vadd.f32 %v2187, %v2191
  %s2194 = scalar_lea.vmem %s2, 48
  %v2195 = vld [vmem:[%s2194] sm:$0xff]
  %v2196 = vld [vmem:[%s2194 + $0x8] sm:$0xff]
  %vm2197 = vcmp.gt.f32.partialorder %v2195, 0.0
  %vm2198 = vcmp.gt.f32.partialorder %v2196, 0.0
  %v2199 = vsel %vm2197, 1, 0
  %v2200 = vsel %vm2198, 1, 0
  %2201 = vset.pattern.permute.xlu0 0
  %2202 = vperm.xlu0 %2201, %v2199
  %v2203 = vpop.permute.xlu0 %2202
  %2204 = vset.pattern.permute.xlu0 0
  %2205 = vperm.xlu0 %2204, %v2200
  %v2206 = vpop.permute.xlu0 %2205
  %vm2207 = vcmp.eq.s32.totalorder %v2203, 1
  %vm2208 = vcmp.eq.s32.totalorder %v2206, 1
  %v2209 = vsel %vm2207, %v2192, 0.0
  %v2210 = vsel %vm2208, %v2193, 0.0
  %s2211 = scalar_lea.vmem %s12, 48
  %2212 = vst [vmem:[%s2211] sm:$0xff] %v2209
  %2213 = vst [vmem:[%s2211 + $0x8] sm:$0xff] %v2210
  %v2214 = vsel %vm2207, %v2192, %v1882
  %v2215 = vsel %vm2208, %v2193, %v1883
  %s2216 = scalar_lea.vmem [#allocation3], 192
  %v2217 = vld [vmem:[%s2216] sm:$0xff]
  %v2218 = vld [vmem:[%s2216 + $0x8] sm:$0xff]
  %v2219 = vld [vmem:[%s2216 + $0x10] sm:$0xff]
  %v2220 = vld [vmem:[%s2216 + $0x18] sm:$0xff]
  %v2221 = vld [vmem:[%s2216 + $0x20] sm:$0xff]
  %v2222 = vld [vmem:[%s2216 + $0x28] sm:$0xff]
  %v2223 = vpack.c.bf16 %v2049, %v2048
  %2224 = vmatpush.bf16.msra.mxu0 %v1198
  %2225 = vmatpush.bf16.msra.mxu0 %v1195
  %2226 = vmatpush.bf16.msra.mxu0 %v1192
  %2227 = vmatpush.bf16.msra.mxu0 %v1189
  %2228 = vmatpush.bf16.msra.mxu0 %v1186
  %2229 = vmatpush.bf16.msra.mxu0 %v1183
  %2230 = vmatpush.bf16.msra.mxu0 %v1180
  %2231 = vmatpush.bf16.msra.mxu0 %v1177
  %2232 = vmatmul.bf16.gmra.mxu0 %v2223
  %v2233 = vpop.f32.mrf.mxu0
  %v2234 = vadd.f32 0.0, %v2233
  %v2235 = vpop.f32.mrf.mxu0
  %v2236 = vadd.f32 0.0, %v2235
  %2237 = vdwg.mxu0
  %2238 = vmatpush.bf16.msra.mxu0 %v1199
  %2239 = vmatpush.bf16.msra.mxu0 %v1196
  %2240 = vmatpush.bf16.msra.mxu0 %v1193
  %2241 = vmatpush.bf16.msra.mxu0 %v1190
  %2242 = vmatpush.bf16.msra.mxu0 %v1187
  %2243 = vmatpush.bf16.msra.mxu0 %v1184
  %2244 = vmatpush.bf16.msra.mxu0 %v1181
  %2245 = vmatpush.bf16.msra.mxu0 %v1178
  %2246 = vmatmul.bf16.gmra.mxu0 %v2223
  %v2247 = vpop.f32.mrf.mxu0
  %v2248 = vadd.f32 0.0, %v2247
  %v2249 = vpop.f32.mrf.mxu0
  %v2250 = vadd.f32 0.0, %v2249
  %2251 = vdwg.mxu0
  %2252 = vmatpush.bf16.msra.mxu0 %v1200
  %2253 = vmatpush.bf16.msra.mxu0 %v1197
  %2254 = vmatpush.bf16.msra.mxu0 %v1194
  %2255 = vmatpush.bf16.msra.mxu0 %v1191
  %2256 = vmatpush.bf16.msra.mxu0 %v1188
  %2257 = vmatpush.bf16.msra.mxu0 %v1185
  %2258 = vmatpush.bf16.msra.mxu0 %v1182
  %2259 = vmatpush.bf16.msra.mxu0 %v1179
  %2260 = vmatmul.bf16.gmra.mxu0 %v2223
  %v2261 = vpop.f32.mrf.mxu0
  %v2262 = vadd.f32 0.0, %v2261
  %v2263 = vpop.f32.mrf.mxu0
  %v2264 = vadd.f32 0.0, %v2263
  %2265 = vdwg.mxu0
  %v2266 = vadd.f32 %v2217, %v2234
  %v2267 = vadd.f32 %v2220, %v2236
  %v2268 = vxor.u32 %v2266, 2147483648
  %v2269 = vxor.u32 %v2267, 2147483648
  %v2270 = vmul.f32 %v2268, 1.442695
  %v2271 = vpow.pop %v2270
  %v2272 = vmul.f32 %v2269, 1.442695
  %v2273 = vpow.pop %v2272
  %v2274 = vadd.f32 %v2271, 1.0
  %v2275 = vadd.f32 %v2273, 1.0
  %v2276 = vrcp.pop %v2274
  %v2277 = vmul.f32 %v2274, %v2276
  %v2278 = vsub.f32 1.0, %v2277
  %v2279 = vmul.f32 %v2276, %v2278
  %v2280 = vadd.f32 %v2276, %v2279
  %vm2281 = vweird.f32 %v2274
  %vm2282 = vweird.f32 %v2276
  %vm2283 = vmor %vm2281, %vm2282
  %v2284 = vsel %vm2283, %v2276, %v2280
  %v2285 = vand.u32 2147483647, %v2274
  %vm2286 = vcmp.eq.f32.partialorder %v2285, 8.507059e+37
  %v2287 = vand.u32 %v2274, 2147483648
  %v2288 = vor.u32 1.1754944e-38, %v2287
  %v2289 = vsel %vm2286, %v2288, %v2284
  %v2290 = vmul.f32 1.0, %v2289
  %v2291 = vrcp.pop %v2275
  %v2292 = vmul.f32 %v2275, %v2291
  %v2293 = vsub.f32 1.0, %v2292
  %v2294 = vmul.f32 %v2291, %v2293
  %v2295 = vadd.f32 %v2291, %v2294
  %vm2296 = vweird.f32 %v2275
  %vm2297 = vweird.f32 %v2291
  %vm2298 = vmor %vm2296, %vm2297
  %v2299 = vsel %vm2298, %v2291, %v2295
  %v2300 = vand.u32 2147483647, %v2275
  %vm2301 = vcmp.eq.f32.partialorder %v2300, 8.507059e+37
  %v2302 = vand.u32 %v2275, 2147483648
  %v2303 = vor.u32 1.1754944e-38, %v2302
  %v2304 = vsel %vm2301, %v2303, %v2299
  %v2305 = vmul.f32 1.0, %v2304
  %v2306 = vadd.f32 %v2218, %v2248
  %v2307 = vadd.f32 %v2221, %v2250
  %v2308 = vxor.u32 %v2306, 2147483648
  %v2309 = vxor.u32 %v2307, 2147483648
  %v2310 = vmul.f32 %v2308, 1.442695
  %v2311 = vpow.pop %v2310
  %v2312 = vmul.f32 %v2309, 1.442695
  %v2313 = vpow.pop %v2312
  %v2314 = vadd.f32 %v2311, 1.0
  %v2315 = vadd.f32 %v2313, 1.0
  %v2316 = vrcp.pop %v2314
  %v2317 = vmul.f32 %v2314, %v2316
  %v2318 = vsub.f32 1.0, %v2317
  %v2319 = vmul.f32 %v2316, %v2318
  %v2320 = vadd.f32 %v2316, %v2319
  %vm2321 = vweird.f32 %v2314
  %vm2322 = vweird.f32 %v2316
  %vm2323 = vmor %vm2321, %vm2322
  %v2324 = vsel %vm2323, %v2316, %v2320
  %v2325 = vand.u32 2147483647, %v2314
  %vm2326 = vcmp.eq.f32.partialorder %v2325, 8.507059e+37
  %v2327 = vand.u32 %v2314, 2147483648
  %v2328 = vor.u32 1.1754944e-38, %v2327
  %v2329 = vsel %vm2326, %v2328, %v2324
  %v2330 = vmul.f32 1.0, %v2329
  %v2331 = vrcp.pop %v2315
  %v2332 = vmul.f32 %v2315, %v2331
  %v2333 = vsub.f32 1.0, %v2332
  %v2334 = vmul.f32 %v2331, %v2333
  %v2335 = vadd.f32 %v2331, %v2334
  %vm2336 = vweird.f32 %v2315
  %vm2337 = vweird.f32 %v2331
  %vm2338 = vmor %vm2336, %vm2337
  %v2339 = vsel %vm2338, %v2331, %v2335
  %v2340 = vand.u32 2147483647, %v2315
  %vm2341 = vcmp.eq.f32.partialorder %v2340, 8.507059e+37
  %v2342 = vand.u32 %v2315, 2147483648
  %v2343 = vor.u32 1.1754944e-38, %v2342
  %v2344 = vsel %vm2341, %v2343, %v2339
  %v2345 = vmul.f32 1.0, %v2344
  %v2346 = vadd.f32 %v2262, %v1348
  %v2347 = vadd.f32 %v2264, %v1348
  %v2348 = vmul.f32 %v2290, %v2346
  %v2349 = vmul.f32 %v2305, %v2347
  %v2350 = vadd.f32 %v2219, %v2348
  %v2351 = vadd.f32 %v2222, %v2349
  %v2352 = vtanh.pop %v2350
  %v2353 = vtanh.pop %v2351
  %v2354 = vsub.f32 %v2048, %v2352
  %v2355 = vsub.f32 %v2049, %v2353
  %v2356 = vmul.f32 %v2330, %v2354
  %v2357 = vmul.f32 %v2345, %v2355
  %v2358 = vadd.f32 %v2352, %v2356
  %v2359 = vadd.f32 %v2353, %v2357
  %s2360 = scalar_lea.vmem %s97, 64
  %v2361 = vld [vmem:[%s2360] sm:$0xff]
  %v2362 = vld [vmem:[%s2360 + $0x8] sm:$0xff]
  %vm2363 = vcmp.gt.f32.partialorder %v2361, 0.0
  %vm2364 = vcmp.gt.f32.partialorder %v2362, 0.0
  %v2365 = vsel %vm2363, 1, 0
  %v2366 = vsel %vm2364, 1, 0
  %2367 = vset.pattern.permute.xlu0 0
  %2368 = vperm.xlu0 %2367, %v2365
  %v2369 = vpop.permute.xlu0 %2368
  %2370 = vset.pattern.permute.xlu0 0
  %2371 = vperm.xlu0 %2370, %v2366
  %v2372 = vpop.permute.xlu0 %2371
  %vm2373 = vcmp.eq.s32.totalorder %v2369, 1
  %vm2374 = vcmp.eq.s32.totalorder %v2372, 1
  %v2375 = vsel %vm2373, %v2358, 0.0
  %v2376 = vsel %vm2374, %v2359, 0.0
  %s2377 = scalar_lea.vmem %s106, 64
  %2378 = vst [vmem:[%s2377] sm:$0xff] %v2375
  %2379 = vst [vmem:[%s2377 + $0x8] sm:$0xff] %v2376
  %v2380 = vsel %vm2373, %v2358, %v2048
  %v2381 = vsel %vm2374, %v2359, %v2049
  %s2382 = scalar_lea.vmem [#allocation2], 192
  %v2383 = vld [vmem:[%s2382] sm:$0xff]
  %v2384 = vld [vmem:[%s2382 + $0x8] sm:$0xff]
  %v2385 = vld [vmem:[%s2382 + $0x10] sm:$0xff]
  %v2386 = vld [vmem:[%s2382 + $0x18] sm:$0xff]
  %v2387 = vld [vmem:[%s2382 + $0x20] sm:$0xff]
  %v2388 = vld [vmem:[%s2382 + $0x28] sm:$0xff]
  %v2389 = vpack.c.bf16 %v2215, %v2214
  %2390 = vmatpush.bf16.msra.mxu0 %v903
  %2391 = vmatpush.bf16.msra.mxu0 %v900
  %2392 = vmatpush.bf16.msra.mxu0 %v897
  %2393 = vmatpush.bf16.msra.mxu0 %v894
  %2394 = vmatpush.bf16.msra.mxu0 %v891
  %2395 = vmatpush.bf16.msra.mxu0 %v888
  %2396 = vmatpush.bf16.msra.mxu0 %v885
  %2397 = vmatpush.bf16.msra.mxu0 %v882
  %2398 = vmatmul.bf16.gmra.mxu0 %v2389
  %v2399 = vpop.f32.mrf.mxu0
  %v2400 = vadd.f32 0.0, %v2399
  %v2401 = vpop.f32.mrf.mxu0
  %v2402 = vadd.f32 0.0, %v2401
  %2403 = vdwg.mxu0
  %2404 = vmatpush.bf16.msra.mxu0 %v904
  %2405 = vmatpush.bf16.msra.mxu0 %v901
  %2406 = vmatpush.bf16.msra.mxu0 %v898
  %2407 = vmatpush.bf16.msra.mxu0 %v895
  %2408 = vmatpush.bf16.msra.mxu0 %v892
  %2409 = vmatpush.bf16.msra.mxu0 %v889
  %2410 = vmatpush.bf16.msra.mxu0 %v886
  %2411 = vmatpush.bf16.msra.mxu0 %v883
  %2412 = vmatmul.bf16.gmra.mxu0 %v2389
  %v2413 = vpop.f32.mrf.mxu0
  %v2414 = vadd.f32 0.0, %v2413
  %v2415 = vpop.f32.mrf.mxu0
  %v2416 = vadd.f32 0.0, %v2415
  %2417 = vdwg.mxu0
  %2418 = vmatpush.bf16.msra.mxu0 %v905
  %2419 = vmatpush.bf16.msra.mxu0 %v902
  %2420 = vmatpush.bf16.msra.mxu0 %v899
  %2421 = vmatpush.bf16.msra.mxu0 %v896
  %2422 = vmatpush.bf16.msra.mxu0 %v893
  %2423 = vmatpush.bf16.msra.mxu0 %v890
  %2424 = vmatpush.bf16.msra.mxu0 %v887
  %2425 = vmatpush.bf16.msra.mxu0 %v884
  %2426 = vmatmul.bf16.gmra.mxu0 %v2389
  %v2427 = vpop.f32.mrf.mxu0
  %v2428 = vadd.f32 0.0, %v2427
  %v2429 = vpop.f32.mrf.mxu0
  %v2430 = vadd.f32 0.0, %v2429
  %2431 = vdwg.mxu0
  %v2432 = vadd.f32 %v2383, %v2400
  %v2433 = vadd.f32 %v2386, %v2402
  %v2434 = vxor.u32 %v2432, 2147483648
  %v2435 = vxor.u32 %v2433, 2147483648
  %v2436 = vmul.f32 %v2434, 1.442695
  %v2437 = vpow.pop %v2436
  %v2438 = vmul.f32 %v2435, 1.442695
  %v2439 = vpow.pop %v2438
  %v2440 = vadd.f32 %v2437, 1.0
  %v2441 = vadd.f32 %v2439, 1.0
  %v2442 = vrcp.pop %v2440
  %v2443 = vmul.f32 %v2440, %v2442
  %v2444 = vsub.f32 1.0, %v2443
  %v2445 = vmul.f32 %v2442, %v2444
  %v2446 = vadd.f32 %v2442, %v2445
  %vm2447 = vweird.f32 %v2440
  %vm2448 = vweird.f32 %v2442
  %vm2449 = vmor %vm2447, %vm2448
  %v2450 = vsel %vm2449, %v2442, %v2446
  %v2451 = vand.u32 2147483647, %v2440
  %vm2452 = vcmp.eq.f32.partialorder %v2451, 8.507059e+37
  %v2453 = vand.u32 %v2440, 2147483648
  %v2454 = vor.u32 1.1754944e-38, %v2453
  %v2455 = vsel %vm2452, %v2454, %v2450
  %v2456 = vmul.f32 1.0, %v2455
  %v2457 = vrcp.pop %v2441
  %v2458 = vmul.f32 %v2441, %v2457
  %v2459 = vsub.f32 1.0, %v2458
  %v2460 = vmul.f32 %v2457, %v2459
  %v2461 = vadd.f32 %v2457, %v2460
  %vm2462 = vweird.f32 %v2441
  %vm2463 = vweird.f32 %v2457
  %vm2464 = vmor %vm2462, %vm2463
  %v2465 = vsel %vm2464, %v2457, %v2461
  %v2466 = vand.u32 2147483647, %v2441
  %vm2467 = vcmp.eq.f32.partialorder %v2466, 8.507059e+37
  %v2468 = vand.u32 %v2441, 2147483648
  %v2469 = vor.u32 1.1754944e-38, %v2468
  %v2470 = vsel %vm2467, %v2469, %v2465
  %v2471 = vmul.f32 1.0, %v2470
  %v2472 = vadd.f32 %v2384, %v2414
  %v2473 = vadd.f32 %v2387, %v2416
  %v2474 = vxor.u32 %v2472, 2147483648
  %v2475 = vxor.u32 %v2473, 2147483648
  %v2476 = vmul.f32 %v2474, 1.442695
  %v2477 = vpow.pop %v2476
  %v2478 = vmul.f32 %v2475, 1.442695
  %v2479 = vpow.pop %v2478
  %v2480 = vadd.f32 %v2477, 1.0
  %v2481 = vadd.f32 %v2479, 1.0
  %v2482 = vrcp.pop %v2480
  %v2483 = vmul.f32 %v2480, %v2482
  %v2484 = vsub.f32 1.0, %v2483
  %v2485 = vmul.f32 %v2482, %v2484
  %v2486 = vadd.f32 %v2482, %v2485
  %vm2487 = vweird.f32 %v2480
  %vm2488 = vweird.f32 %v2482
  %vm2489 = vmor %vm2487, %vm2488
  %v2490 = vsel %vm2489, %v2482, %v2486
  %v2491 = vand.u32 2147483647, %v2480
  %vm2492 = vcmp.eq.f32.partialorder %v2491, 8.507059e+37
  %v2493 = vand.u32 %v2480, 2147483648
  %v2494 = vor.u32 1.1754944e-38, %v2493
  %v2495 = vsel %vm2492, %v2494, %v2490
  %v2496 = vmul.f32 1.0, %v2495
  %v2497 = vrcp.pop %v2481
  %v2498 = vmul.f32 %v2481, %v2497
  %v2499 = vsub.f32 1.0, %v2498
  %v2500 = vmul.f32 %v2497, %v2499
  %v2501 = vadd.f32 %v2497, %v2500
  %vm2502 = vweird.f32 %v2481
  %vm2503 = vweird.f32 %v2497
  %vm2504 = vmor %vm2502, %vm2503
  %v2505 = vsel %vm2504, %v2497, %v2501
  %v2506 = vand.u32 2147483647, %v2481
  %vm2507 = vcmp.eq.f32.partialorder %v2506, 8.507059e+37
  %v2508 = vand.u32 %v2481, 2147483648
  %v2509 = vor.u32 1.1754944e-38, %v2508
  %v2510 = vsel %vm2507, %v2509, %v2505
  %v2511 = vmul.f32 1.0, %v2510
  %v2512 = vadd.f32 %v2428, %v1053
  %v2513 = vadd.f32 %v2430, %v1053
  %v2514 = vmul.f32 %v2456, %v2512
  %v2515 = vmul.f32 %v2471, %v2513
  %v2516 = vadd.f32 %v2385, %v2514
  %v2517 = vadd.f32 %v2388, %v2515
  %v2518 = vtanh.pop %v2516
  %v2519 = vtanh.pop %v2517
  %v2520 = vsub.f32 %v2214, %v2518
  %v2521 = vsub.f32 %v2215, %v2519
  %v2522 = vmul.f32 %v2496, %v2520
  %v2523 = vmul.f32 %v2511, %v2521
  %v2524 = vadd.f32 %v2518, %v2522
  %v2525 = vadd.f32 %v2519, %v2523
  %s2526 = scalar_lea.vmem %s2, 64
  %v2527 = vld [vmem:[%s2526] sm:$0xff]
  %v2528 = vld [vmem:[%s2526 + $0x8] sm:$0xff]
  %vm2529 = vcmp.gt.f32.partialorder %v2527, 0.0
  %vm2530 = vcmp.gt.f32.partialorder %v2528, 0.0
  %v2531 = vsel %vm2529, 1, 0
  %v2532 = vsel %vm2530, 1, 0
  %2533 = vset.pattern.permute.xlu0 0
  %2534 = vperm.xlu0 %2533, %v2531
  %v2535 = vpop.permute.xlu0 %2534
  %2536 = vset.pattern.permute.xlu0 0
  %2537 = vperm.xlu0 %2536, %v2532
  %v2538 = vpop.permute.xlu0 %2537
  %vm2539 = vcmp.eq.s32.totalorder %v2535, 1
  %vm2540 = vcmp.eq.s32.totalorder %v2538, 1
  %v2541 = vsel %vm2539, %v2524, 0.0
  %v2542 = vsel %vm2540, %v2525, 0.0
  %s2543 = scalar_lea.vmem %s12, 64
  %2544 = vst [vmem:[%s2543] sm:$0xff] %v2541
  %2545 = vst [vmem:[%s2543 + $0x8] sm:$0xff] %v2542
  %v2546 = vsel %vm2539, %v2524, %v2214
  %v2547 = vsel %vm2540, %v2525, %v2215
  %s2548 = scalar_lea.vmem [#allocation3], 144
  %v2549 = vld [vmem:[%s2548] sm:$0xff]
  %v2550 = vld [vmem:[%s2548 + $0x8] sm:$0xff]
  %v2551 = vld [vmem:[%s2548 + $0x10] sm:$0xff]
  %v2552 = vld [vmem:[%s2548 + $0x18] sm:$0xff]
  %v2553 = vld [vmem:[%s2548 + $0x20] sm:$0xff]
  %v2554 = vld [vmem:[%s2548 + $0x28] sm:$0xff]
  %v2555 = vpack.c.bf16 %v2381, %v2380
  %2556 = vmatpush.bf16.msra.mxu0 %v1198
  %2557 = vmatpush.bf16.msra.mxu0 %v1195
  %2558 = vmatpush.bf16.msra.mxu0 %v1192
  %2559 = vmatpush.bf16.msra.mxu0 %v1189
  %2560 = vmatpush.bf16.msra.mxu0 %v1186
  %2561 = vmatpush.bf16.msra.mxu0 %v1183
  %2562 = vmatpush.bf16.msra.mxu0 %v1180
  %2563 = vmatpush.bf16.msra.mxu0 %v1177
  %2564 = vmatmul.bf16.gmra.mxu0 %v2555
  %v2565 = vpop.f32.mrf.mxu0
  %v2566 = vadd.f32 0.0, %v2565
  %v2567 = vpop.f32.mrf.mxu0
  %v2568 = vadd.f32 0.0, %v2567
  %2569 = vdwg.mxu0
  %2570 = vmatpush.bf16.msra.mxu0 %v1199
  %2571 = vmatpush.bf16.msra.mxu0 %v1196
  %2572 = vmatpush.bf16.msra.mxu0 %v1193
  %2573 = vmatpush.bf16.msra.mxu0 %v1190
  %2574 = vmatpush.bf16.msra.mxu0 %v1187
  %2575 = vmatpush.bf16.msra.mxu0 %v1184
  %2576 = vmatpush.bf16.msra.mxu0 %v1181
  %2577 = vmatpush.bf16.msra.mxu0 %v1178
  %2578 = vmatmul.bf16.gmra.mxu0 %v2555
  %v2579 = vpop.f32.mrf.mxu0
  %v2580 = vadd.f32 0.0, %v2579
  %v2581 = vpop.f32.mrf.mxu0
  %v2582 = vadd.f32 0.0, %v2581
  %2583 = vdwg.mxu0
  %2584 = vmatpush.bf16.msra.mxu0 %v1200
  %2585 = vmatpush.bf16.msra.mxu0 %v1197
  %2586 = vmatpush.bf16.msra.mxu0 %v1194
  %2587 = vmatpush.bf16.msra.mxu0 %v1191
  %2588 = vmatpush.bf16.msra.mxu0 %v1188
  %2589 = vmatpush.bf16.msra.mxu0 %v1185
  %2590 = vmatpush.bf16.msra.mxu0 %v1182
  %2591 = vmatpush.bf16.msra.mxu0 %v1179
  %2592 = vmatmul.bf16.gmra.mxu0 %v2555
  %v2593 = vpop.f32.mrf.mxu0
  %v2594 = vadd.f32 0.0, %v2593
  %v2595 = vpop.f32.mrf.mxu0
  %v2596 = vadd.f32 0.0, %v2595
  %2597 = vdwg.mxu0
  %v2598 = vadd.f32 %v2549, %v2566
  %v2599 = vadd.f32 %v2552, %v2568
  %v2600 = vxor.u32 %v2598, 2147483648
  %v2601 = vxor.u32 %v2599, 2147483648
  %v2602 = vmul.f32 %v2600, 1.442695
  %v2603 = vpow.pop %v2602
  %v2604 = vmul.f32 %v2601, 1.442695
  %v2605 = vpow.pop %v2604
  %v2606 = vadd.f32 %v2603, 1.0
  %v2607 = vadd.f32 %v2605, 1.0
  %v2608 = vrcp.pop %v2606
  %v2609 = vmul.f32 %v2606, %v2608
  %v2610 = vsub.f32 1.0, %v2609
  %v2611 = vmul.f32 %v2608, %v2610
  %v2612 = vadd.f32 %v2608, %v2611
  %vm2613 = vweird.f32 %v2606
  %vm2614 = vweird.f32 %v2608
  %vm2615 = vmor %vm2613, %vm2614
  %v2616 = vsel %vm2615, %v2608, %v2612
  %v2617 = vand.u32 2147483647, %v2606
  %vm2618 = vcmp.eq.f32.partialorder %v2617, 8.507059e+37
  %v2619 = vand.u32 %v2606, 2147483648
  %v2620 = vor.u32 1.1754944e-38, %v2619
  %v2621 = vsel %vm2618, %v2620, %v2616
  %v2622 = vmul.f32 1.0, %v2621
  %v2623 = vrcp.pop %v2607
  %v2624 = vmul.f32 %v2607, %v2623
  %v2625 = vsub.f32 1.0, %v2624
  %v2626 = vmul.f32 %v2623, %v2625
  %v2627 = vadd.f32 %v2623, %v2626
  %vm2628 = vweird.f32 %v2607
  %vm2629 = vweird.f32 %v2623
  %vm2630 = vmor %vm2628, %vm2629
  %v2631 = vsel %vm2630, %v2623, %v2627
  %v2632 = vand.u32 2147483647, %v2607
  %vm2633 = vcmp.eq.f32.partialorder %v2632, 8.507059e+37
  %v2634 = vand.u32 %v2607, 2147483648
  %v2635 = vor.u32 1.1754944e-38, %v2634
  %v2636 = vsel %vm2633, %v2635, %v2631
  %v2637 = vmul.f32 1.0, %v2636
  %v2638 = vadd.f32 %v2550, %v2580
  %v2639 = vadd.f32 %v2553, %v2582
  %v2640 = vxor.u32 %v2638, 2147483648
  %v2641 = vxor.u32 %v2639, 2147483648
  %v2642 = vmul.f32 %v2640, 1.442695
  %v2643 = vpow.pop %v2642
  %v2644 = vmul.f32 %v2641, 1.442695
  %v2645 = vpow.pop %v2644
  %v2646 = vadd.f32 %v2643, 1.0
  %v2647 = vadd.f32 %v2645, 1.0
  %v2648 = vrcp.pop %v2646
  %v2649 = vmul.f32 %v2646, %v2648
  %v2650 = vsub.f32 1.0, %v2649
  %v2651 = vmul.f32 %v2648, %v2650
  %v2652 = vadd.f32 %v2648, %v2651
  %vm2653 = vweird.f32 %v2646
  %vm2654 = vweird.f32 %v2648
  %vm2655 = vmor %vm2653, %vm2654
  %v2656 = vsel %vm2655, %v2648, %v2652
  %v2657 = vand.u32 2147483647, %v2646
  %vm2658 = vcmp.eq.f32.partialorder %v2657, 8.507059e+37
  %v2659 = vand.u32 %v2646, 2147483648
  %v2660 = vor.u32 1.1754944e-38, %v2659
  %v2661 = vsel %vm2658, %v2660, %v2656
  %v2662 = vmul.f32 1.0, %v2661
  %v2663 = vrcp.pop %v2647
  %v2664 = vmul.f32 %v2647, %v2663
  %v2665 = vsub.f32 1.0, %v2664
  %v2666 = vmul.f32 %v2663, %v2665
  %v2667 = vadd.f32 %v2663, %v2666
  %vm2668 = vweird.f32 %v2647
  %vm2669 = vweird.f32 %v2663
  %vm2670 = vmor %vm2668, %vm2669
  %v2671 = vsel %vm2670, %v2663, %v2667
  %v2672 = vand.u32 2147483647, %v2647
  %vm2673 = vcmp.eq.f32.partialorder %v2672, 8.507059e+37
  %v2674 = vand.u32 %v2647, 2147483648
  %v2675 = vor.u32 1.1754944e-38, %v2674
  %v2676 = vsel %vm2673, %v2675, %v2671
  %v2677 = vmul.f32 1.0, %v2676
  %v2678 = vadd.f32 %v2594, %v1348
  %v2679 = vadd.f32 %v2596, %v1348
  %v2680 = vmul.f32 %v2622, %v2678
  %v2681 = vmul.f32 %v2637, %v2679
  %v2682 = vadd.f32 %v2551, %v2680
  %v2683 = vadd.f32 %v2554, %v2681
  %v2684 = vtanh.pop %v2682
  %v2685 = vtanh.pop %v2683
  %v2686 = vsub.f32 %v2380, %v2684
  %v2687 = vsub.f32 %v2381, %v2685
  %v2688 = vmul.f32 %v2662, %v2686
  %v2689 = vmul.f32 %v2677, %v2687
  %v2690 = vadd.f32 %v2684, %v2688
  %v2691 = vadd.f32 %v2685, %v2689
  %s2692 = scalar_lea.vmem %s97, 48
  %v2693 = vld [vmem:[%s2692] sm:$0xff]
  %v2694 = vld [vmem:[%s2692 + $0x8] sm:$0xff]
  %vm2695 = vcmp.gt.f32.partialorder %v2693, 0.0
  %vm2696 = vcmp.gt.f32.partialorder %v2694, 0.0
  %v2697 = vsel %vm2695, 1, 0
  %v2698 = vsel %vm2696, 1, 0
  %2699 = vset.pattern.permute.xlu0 0
  %2700 = vperm.xlu0 %2699, %v2697
  %v2701 = vpop.permute.xlu0 %2700
  %2702 = vset.pattern.permute.xlu0 0
  %2703 = vperm.xlu0 %2702, %v2698
  %v2704 = vpop.permute.xlu0 %2703
  %vm2705 = vcmp.eq.s32.totalorder %v2701, 1
  %vm2706 = vcmp.eq.s32.totalorder %v2704, 1
  %v2707 = vsel %vm2705, %v2690, 0.0
  %v2708 = vsel %vm2706, %v2691, 0.0
  %s2709 = scalar_lea.vmem %s106, 48
  %2710 = vst [vmem:[%s2709] sm:$0xff] %v2707
  %2711 = vst [vmem:[%s2709 + $0x8] sm:$0xff] %v2708
  %v2712 = vsel %vm2705, %v2690, %v2380
  %v2713 = vsel %vm2706, %v2691, %v2381
  %s2714 = scalar_lea.vmem [#allocation2], 240
  %v2715 = vld [vmem:[%s2714] sm:$0xff]
  %v2716 = vld [vmem:[%s2714 + $0x8] sm:$0xff]
  %v2717 = vld [vmem:[%s2714 + $0x10] sm:$0xff]
  %v2718 = vld [vmem:[%s2714 + $0x18] sm:$0xff]
  %v2719 = vld [vmem:[%s2714 + $0x20] sm:$0xff]
  %v2720 = vld [vmem:[%s2714 + $0x28] sm:$0xff]
  %v2721 = vpack.c.bf16 %v2547, %v2546
  %2722 = vmatpush.bf16.msra.mxu0 %v903
  %2723 = vmatpush.bf16.msra.mxu0 %v900
  %2724 = vmatpush.bf16.msra.mxu0 %v897
  %2725 = vmatpush.bf16.msra.mxu0 %v894
  %2726 = vmatpush.bf16.msra.mxu0 %v891
  %2727 = vmatpush.bf16.msra.mxu0 %v888
  %2728 = vmatpush.bf16.msra.mxu0 %v885
  %2729 = vmatpush.bf16.msra.mxu0 %v882
  %2730 = vmatmul.bf16.gmra.mxu0 %v2721
  %v2731 = vpop.f32.mrf.mxu0
  %v2732 = vadd.f32 0.0, %v2731
  %v2733 = vpop.f32.mrf.mxu0
  %v2734 = vadd.f32 0.0, %v2733
  %2735 = vdwg.mxu0
  %2736 = vmatpush.bf16.msra.mxu0 %v904
  %2737 = vmatpush.bf16.msra.mxu0 %v901
  %2738 = vmatpush.bf16.msra.mxu0 %v898
  %2739 = vmatpush.bf16.msra.mxu0 %v895
  %2740 = vmatpush.bf16.msra.mxu0 %v892
  %2741 = vmatpush.bf16.msra.mxu0 %v889
  %2742 = vmatpush.bf16.msra.mxu0 %v886
  %2743 = vmatpush.bf16.msra.mxu0 %v883
  %2744 = vmatmul.bf16.gmra.mxu0 %v2721
  %v2745 = vpop.f32.mrf.mxu0
  %v2746 = vadd.f32 0.0, %v2745
  %v2747 = vpop.f32.mrf.mxu0
  %v2748 = vadd.f32 0.0, %v2747
  %2749 = vdwg.mxu0
  %2750 = vmatpush.bf16.msra.mxu0 %v905
  %2751 = vmatpush.bf16.msra.mxu0 %v902
  %2752 = vmatpush.bf16.msra.mxu0 %v899
  %2753 = vmatpush.bf16.msra.mxu0 %v896
  %2754 = vmatpush.bf16.msra.mxu0 %v893
  %2755 = vmatpush.bf16.msra.mxu0 %v890
  %2756 = vmatpush.bf16.msra.mxu0 %v887
  %2757 = vmatpush.bf16.msra.mxu0 %v884
  %2758 = vmatmul.bf16.gmra.mxu0 %v2721
  %v2759 = vpop.f32.mrf.mxu0
  %v2760 = vadd.f32 0.0, %v2759
  %v2761 = vpop.f32.mrf.mxu0
  %v2762 = vadd.f32 0.0, %v2761
  %2763 = vdwg.mxu0
  %v2764 = vadd.f32 %v2715, %v2732
  %v2765 = vadd.f32 %v2718, %v2734
  %v2766 = vxor.u32 %v2764, 2147483648
  %v2767 = vxor.u32 %v2765, 2147483648
  %v2768 = vmul.f32 %v2766, 1.442695
  %v2769 = vpow.pop %v2768
  %v2770 = vmul.f32 %v2767, 1.442695
  %v2771 = vpow.pop %v2770
  %v2772 = vadd.f32 %v2769, 1.0
  %v2773 = vadd.f32 %v2771, 1.0
  %v2774 = vrcp.pop %v2772
  %v2775 = vmul.f32 %v2772, %v2774
  %v2776 = vsub.f32 1.0, %v2775
  %v2777 = vmul.f32 %v2774, %v2776
  %v2778 = vadd.f32 %v2774, %v2777
  %vm2779 = vweird.f32 %v2772
  %vm2780 = vweird.f32 %v2774
  %vm2781 = vmor %vm2779, %vm2780
  %v2782 = vsel %vm2781, %v2774, %v2778
  %v2783 = vand.u32 2147483647, %v2772
  %vm2784 = vcmp.eq.f32.partialorder %v2783, 8.507059e+37
  %v2785 = vand.u32 %v2772, 2147483648
  %v2786 = vor.u32 1.1754944e-38, %v2785
  %v2787 = vsel %vm2784, %v2786, %v2782
  %v2788 = vmul.f32 1.0, %v2787
  %v2789 = vrcp.pop %v2773
  %v2790 = vmul.f32 %v2773, %v2789
  %v2791 = vsub.f32 1.0, %v2790
  %v2792 = vmul.f32 %v2789, %v2791
  %v2793 = vadd.f32 %v2789, %v2792
  %vm2794 = vweird.f32 %v2773
  %vm2795 = vweird.f32 %v2789
  %vm2796 = vmor %vm2794, %vm2795
  %v2797 = vsel %vm2796, %v2789, %v2793
  %v2798 = vand.u32 2147483647, %v2773
  %vm2799 = vcmp.eq.f32.partialorder %v2798, 8.507059e+37
  %v2800 = vand.u32 %v2773, 2147483648
  %v2801 = vor.u32 1.1754944e-38, %v2800
  %v2802 = vsel %vm2799, %v2801, %v2797
  %v2803 = vmul.f32 1.0, %v2802
  %v2804 = vadd.f32 %v2716, %v2746
  %v2805 = vadd.f32 %v2719, %v2748
  %v2806 = vxor.u32 %v2804, 2147483648
  %v2807 = vxor.u32 %v2805, 2147483648
  %v2808 = vmul.f32 %v2806, 1.442695
  %v2809 = vpow.pop %v2808
  %v2810 = vmul.f32 %v2807, 1.442695
  %v2811 = vpow.pop %v2810
  %v2812 = vadd.f32 %v2809, 1.0
  %v2813 = vadd.f32 %v2811, 1.0
  %v2814 = vrcp.pop %v2812
  %v2815 = vmul.f32 %v2812, %v2814
  %v2816 = vsub.f32 1.0, %v2815
  %v2817 = vmul.f32 %v2814, %v2816
  %v2818 = vadd.f32 %v2814, %v2817
  %vm2819 = vweird.f32 %v2812
  %vm2820 = vweird.f32 %v2814
  %vm2821 = vmor %vm2819, %vm2820
  %v2822 = vsel %vm2821, %v2814, %v2818
  %v2823 = vand.u32 2147483647, %v2812
  %vm2824 = vcmp.eq.f32.partialorder %v2823, 8.507059e+37
  %v2825 = vand.u32 %v2812, 2147483648
  %v2826 = vor.u32 1.1754944e-38, %v2825
  %v2827 = vsel %vm2824, %v2826, %v2822
  %v2828 = vmul.f32 1.0, %v2827
  %v2829 = vrcp.pop %v2813
  %v2830 = vmul.f32 %v2813, %v2829
  %v2831 = vsub.f32 1.0, %v2830
  %v2832 = vmul.f32 %v2829, %v2831
  %v2833 = vadd.f32 %v2829, %v2832
  %vm2834 = vweird.f32 %v2813
  %vm2835 = vweird.f32 %v2829
  %vm2836 = vmor %vm2834, %vm2835
  %v2837 = vsel %vm2836, %v2829, %v2833
  %v2838 = vand.u32 2147483647, %v2813
  %vm2839 = vcmp.eq.f32.partialorder %v2838, 8.507059e+37
  %v2840 = vand.u32 %v2813, 2147483648
  %v2841 = vor.u32 1.1754944e-38, %v2840
  %v2842 = vsel %vm2839, %v2841, %v2837
  %v2843 = vmul.f32 1.0, %v2842
  %v2844 = vadd.f32 %v2760, %v1053
  %v2845 = vadd.f32 %v2762, %v1053
  %v2846 = vmul.f32 %v2788, %v2844
  %v2847 = vmul.f32 %v2803, %v2845
  %v2848 = vadd.f32 %v2717, %v2846
  %v2849 = vadd.f32 %v2720, %v2847
  %v2850 = vtanh.pop %v2848
  %v2851 = vtanh.pop %v2849
  %v2852 = vsub.f32 %v2546, %v2850
  %v2853 = vsub.f32 %v2547, %v2851
  %v2854 = vmul.f32 %v2828, %v2852
  %v2855 = vmul.f32 %v2843, %v2853
  %v2856 = vadd.f32 %v2850, %v2854
  %v2857 = vadd.f32 %v2851, %v2855
  %s2858 = scalar_lea.vmem %s2, 80
  %v2859 = vld [vmem:[%s2858] sm:$0xff]
  %v2860 = vld [vmem:[%s2858 + $0x8] sm:$0xff]
  %vm2861 = vcmp.gt.f32.partialorder %v2859, 0.0
  %vm2862 = vcmp.gt.f32.partialorder %v2860, 0.0
  %v2863 = vsel %vm2861, 1, 0
  %v2864 = vsel %vm2862, 1, 0
  %2865 = vset.pattern.permute.xlu0 0
  %2866 = vperm.xlu0 %2865, %v2863
  %v2867 = vpop.permute.xlu0 %2866
  %2868 = vset.pattern.permute.xlu0 0
  %2869 = vperm.xlu0 %2868, %v2864
  %v2870 = vpop.permute.xlu0 %2869
  %vm2871 = vcmp.eq.s32.totalorder %v2867, 1
  %vm2872 = vcmp.eq.s32.totalorder %v2870, 1
  %v2873 = vsel %vm2871, %v2856, 0.0
  %v2874 = vsel %vm2872, %v2857, 0.0
  %s2875 = scalar_lea.vmem %s12, 80
  %2876 = vst [vmem:[%s2875] sm:$0xff] %v2873
  %2877 = vst [vmem:[%s2875 + $0x8] sm:$0xff] %v2874
  %v2878 = vsel %vm2871, %v2856, %v2546
  %v2879 = vsel %vm2872, %v2857, %v2547
  %s2880 = scalar_lea.vmem [#allocation3], 96
  %v2881 = vld [vmem:[%s2880] sm:$0xff]
  %v2882 = vld [vmem:[%s2880 + $0x8] sm:$0xff]
  %v2883 = vld [vmem:[%s2880 + $0x10] sm:$0xff]
  %v2884 = vld [vmem:[%s2880 + $0x18] sm:$0xff]
  %v2885 = vld [vmem:[%s2880 + $0x20] sm:$0xff]
  %v2886 = vld [vmem:[%s2880 + $0x28] sm:$0xff]
  %v2887 = vpack.c.bf16 %v2713, %v2712
  %2888 = vmatpush.bf16.msra.mxu0 %v1198
  %2889 = vmatpush.bf16.msra.mxu0 %v1195
  %2890 = vmatpush.bf16.msra.mxu0 %v1192
  %2891 = vmatpush.bf16.msra.mxu0 %v1189
  %2892 = vmatpush.bf16.msra.mxu0 %v1186
  %2893 = vmatpush.bf16.msra.mxu0 %v1183
  %2894 = vmatpush.bf16.msra.mxu0 %v1180
  %2895 = vmatpush.bf16.msra.mxu0 %v1177
  %2896 = vmatmul.bf16.gmra.mxu0 %v2887
  %v2897 = vpop.f32.mrf.mxu0
  %v2898 = vadd.f32 0.0, %v2897
  %v2899 = vpop.f32.mrf.mxu0
  %v2900 = vadd.f32 0.0, %v2899
  %2901 = vdwg.mxu0
  %2902 = vmatpush.bf16.msra.mxu0 %v1199
  %2903 = vmatpush.bf16.msra.mxu0 %v1196
  %2904 = vmatpush.bf16.msra.mxu0 %v1193
  %2905 = vmatpush.bf16.msra.mxu0 %v1190
  %2906 = vmatpush.bf16.msra.mxu0 %v1187
  %2907 = vmatpush.bf16.msra.mxu0 %v1184
  %2908 = vmatpush.bf16.msra.mxu0 %v1181
  %2909 = vmatpush.bf16.msra.mxu0 %v1178
  %2910 = vmatmul.bf16.gmra.mxu0 %v2887
  %v2911 = vpop.f32.mrf.mxu0
  %v2912 = vadd.f32 0.0, %v2911
  %v2913 = vpop.f32.mrf.mxu0
  %v2914 = vadd.f32 0.0, %v2913
  %2915 = vdwg.mxu0
  %2916 = vmatpush.bf16.msra.mxu0 %v1200
  %2917 = vmatpush.bf16.msra.mxu0 %v1197
  %2918 = vmatpush.bf16.msra.mxu0 %v1194
  %2919 = vmatpush.bf16.msra.mxu0 %v1191
  %2920 = vmatpush.bf16.msra.mxu0 %v1188
  %2921 = vmatpush.bf16.msra.mxu0 %v1185
  %2922 = vmatpush.bf16.msra.mxu0 %v1182
  %2923 = vmatpush.bf16.msra.mxu0 %v1179
  %2924 = vmatmul.bf16.gmra.mxu0 %v2887
  %v2925 = vpop.f32.mrf.mxu0
  %v2926 = vadd.f32 0.0, %v2925
  %v2927 = vpop.f32.mrf.mxu0
  %v2928 = vadd.f32 0.0, %v2927
  %2929 = vdwg.mxu0
  %v2930 = vadd.f32 %v2881, %v2898
  %v2931 = vadd.f32 %v2884, %v2900
  %v2932 = vxor.u32 %v2930, 2147483648
  %v2933 = vxor.u32 %v2931, 2147483648
  %v2934 = vmul.f32 %v2932, 1.442695
  %v2935 = vpow.pop %v2934
  %v2936 = vmul.f32 %v2933, 1.442695
  %v2937 = vpow.pop %v2936
  %v2938 = vadd.f32 %v2935, 1.0
  %v2939 = vadd.f32 %v2937, 1.0
  %v2940 = vrcp.pop %v2938
  %v2941 = vmul.f32 %v2938, %v2940
  %v2942 = vsub.f32 1.0, %v2941
  %v2943 = vmul.f32 %v2940, %v2942
  %v2944 = vadd.f32 %v2940, %v2943
  %vm2945 = vweird.f32 %v2938
  %vm2946 = vweird.f32 %v2940
  %vm2947 = vmor %vm2945, %vm2946
  %v2948 = vsel %vm2947, %v2940, %v2944
  %v2949 = vand.u32 2147483647, %v2938
  %vm2950 = vcmp.eq.f32.partialorder %v2949, 8.507059e+37
  %v2951 = vand.u32 %v2938, 2147483648
  %v2952 = vor.u32 1.1754944e-38, %v2951
  %v2953 = vsel %vm2950, %v2952, %v2948
  %v2954 = vmul.f32 1.0, %v2953
  %v2955 = vrcp.pop %v2939
  %v2956 = vmul.f32 %v2939, %v2955
  %v2957 = vsub.f32 1.0, %v2956
  %v2958 = vmul.f32 %v2955, %v2957
  %v2959 = vadd.f32 %v2955, %v2958
  %vm2960 = vweird.f32 %v2939
  %vm2961 = vweird.f32 %v2955
  %vm2962 = vmor %vm2960, %vm2961
  %v2963 = vsel %vm2962, %v2955, %v2959
  %v2964 = vand.u32 2147483647, %v2939
  %vm2965 = vcmp.eq.f32.partialorder %v2964, 8.507059e+37
  %v2966 = vand.u32 %v2939, 2147483648
  %v2967 = vor.u32 1.1754944e-38, %v2966
  %v2968 = vsel %vm2965, %v2967, %v2963
  %v2969 = vmul.f32 1.0, %v2968
  %v2970 = vadd.f32 %v2882, %v2912
  %v2971 = vadd.f32 %v2885, %v2914
  %v2972 = vxor.u32 %v2970, 2147483648
  %v2973 = vxor.u32 %v2971, 2147483648
  %v2974 = vmul.f32 %v2972, 1.442695
  %v2975 = vpow.pop %v2974
  %v2976 = vmul.f32 %v2973, 1.442695
  %v2977 = vpow.pop %v2976
  %v2978 = vadd.f32 %v2975, 1.0
  %v2979 = vadd.f32 %v2977, 1.0
  %v2980 = vrcp.pop %v2978
  %v2981 = vmul.f32 %v2978, %v2980
  %v2982 = vsub.f32 1.0, %v2981
  %v2983 = vmul.f32 %v2980, %v2982
  %v2984 = vadd.f32 %v2980, %v2983
  %vm2985 = vweird.f32 %v2978
  %vm2986 = vweird.f32 %v2980
  %vm2987 = vmor %vm2985, %vm2986
  %v2988 = vsel %vm2987, %v2980, %v2984
  %v2989 = vand.u32 2147483647, %v2978
  %vm2990 = vcmp.eq.f32.partialorder %v2989, 8.507059e+37
  %v2991 = vand.u32 %v2978, 2147483648
  %v2992 = vor.u32 1.1754944e-38, %v2991
  %v2993 = vsel %vm2990, %v2992, %v2988
  %v2994 = vmul.f32 1.0, %v2993
  %v2995 = vrcp.pop %v2979
  %v2996 = vmul.f32 %v2979, %v2995
  %v2997 = vsub.f32 1.0, %v2996
  %v2998 = vmul.f32 %v2995, %v2997
  %v2999 = vadd.f32 %v2995, %v2998
  %vm3000 = vweird.f32 %v2979
  %vm3001 = vweird.f32 %v2995
  %vm3002 = vmor %vm3000, %vm3001
  %v3003 = vsel %vm3002, %v2995, %v2999
  %v3004 = vand.u32 2147483647, %v2979
  %vm3005 = vcmp.eq.f32.partialorder %v3004, 8.507059e+37
  %v3006 = vand.u32 %v2979, 2147483648
  %v3007 = vor.u32 1.1754944e-38, %v3006
  %v3008 = vsel %vm3005, %v3007, %v3003
  %v3009 = vmul.f32 1.0, %v3008
  %v3010 = vadd.f32 %v2926, %v1348
  %v3011 = vadd.f32 %v2928, %v1348
  %v3012 = vmul.f32 %v2954, %v3010
  %v3013 = vmul.f32 %v2969, %v3011
  %v3014 = vadd.f32 %v2883, %v3012
  %v3015 = vadd.f32 %v2886, %v3013
  %v3016 = vtanh.pop %v3014
  %v3017 = vtanh.pop %v3015
  %v3018 = vsub.f32 %v2712, %v3016
  %v3019 = vsub.f32 %v2713, %v3017
  %v3020 = vmul.f32 %v2994, %v3018
  %v3021 = vmul.f32 %v3009, %v3019
  %v3022 = vadd.f32 %v3016, %v3020
  %v3023 = vadd.f32 %v3017, %v3021
  %s3024 = scalar_lea.vmem %s97, 32
  %v3025 = vld [vmem:[%s3024] sm:$0xff]
  %v3026 = vld [vmem:[%s3024 + $0x8] sm:$0xff]
  %vm3027 = vcmp.gt.f32.partialorder %v3025, 0.0
  %vm3028 = vcmp.gt.f32.partialorder %v3026, 0.0
  %v3029 = vsel %vm3027, 1, 0
  %v3030 = vsel %vm3028, 1, 0
  %3031 = vset.pattern.permute.xlu0 0
  %3032 = vperm.xlu0 %3031, %v3029
  %v3033 = vpop.permute.xlu0 %3032
  %3034 = vset.pattern.permute.xlu0 0
  %3035 = vperm.xlu0 %3034, %v3030
  %v3036 = vpop.permute.xlu0 %3035
  %vm3037 = vcmp.eq.s32.totalorder %v3033, 1
  %vm3038 = vcmp.eq.s32.totalorder %v3036, 1
  %v3039 = vsel %vm3037, %v3022, 0.0
  %v3040 = vsel %vm3038, %v3023, 0.0
  %s3041 = scalar_lea.vmem %s106, 32
  %3042 = vst [vmem:[%s3041] sm:$0xff] %v3039
  %3043 = vst [vmem:[%s3041 + $0x8] sm:$0xff] %v3040
  %v3044 = vsel %vm3037, %v3022, %v2712
  %v3045 = vsel %vm3038, %v3023, %v2713
  %s3046 = scalar_lea.vmem [#allocation2], 288
  %v3047 = vld [vmem:[%s3046] sm:$0xff]
  %v3048 = vld [vmem:[%s3046 + $0x8] sm:$0xff]
  %v3049 = vld [vmem:[%s3046 + $0x10] sm:$0xff]
  %v3050 = vld [vmem:[%s3046 + $0x18] sm:$0xff]
  %v3051 = vld [vmem:[%s3046 + $0x20] sm:$0xff]
  %v3052 = vld [vmem:[%s3046 + $0x28] sm:$0xff]
  %v3053 = vpack.c.bf16 %v2879, %v2878
  %3054 = vmatpush.bf16.msra.mxu0 %v903
  %3055 = vmatpush.bf16.msra.mxu0 %v900
  %3056 = vmatpush.bf16.msra.mxu0 %v897
  %3057 = vmatpush.bf16.msra.mxu0 %v894
  %3058 = vmatpush.bf16.msra.mxu0 %v891
  %3059 = vmatpush.bf16.msra.mxu0 %v888
  %3060 = vmatpush.bf16.msra.mxu0 %v885
  %3061 = vmatpush.bf16.msra.mxu0 %v882
  %3062 = vmatmul.bf16.gmra.mxu0 %v3053
  %v3063 = vpop.f32.mrf.mxu0
  %v3064 = vadd.f32 0.0, %v3063
  %v3065 = vpop.f32.mrf.mxu0
  %v3066 = vadd.f32 0.0, %v3065
  %3067 = vdwg.mxu0
  %3068 = vmatpush.bf16.msra.mxu0 %v904
  %3069 = vmatpush.bf16.msra.mxu0 %v901
  %3070 = vmatpush.bf16.msra.mxu0 %v898
  %3071 = vmatpush.bf16.msra.mxu0 %v895
  %3072 = vmatpush.bf16.msra.mxu0 %v892
  %3073 = vmatpush.bf16.msra.mxu0 %v889
  %3074 = vmatpush.bf16.msra.mxu0 %v886
  %3075 = vmatpush.bf16.msra.mxu0 %v883
  %3076 = vmatmul.bf16.gmra.mxu0 %v3053
  %v3077 = vpop.f32.mrf.mxu0
  %v3078 = vadd.f32 0.0, %v3077
  %v3079 = vpop.f32.mrf.mxu0
  %v3080 = vadd.f32 0.0, %v3079
  %3081 = vdwg.mxu0
  %3082 = vmatpush.bf16.msra.mxu0 %v905
  %3083 = vmatpush.bf16.msra.mxu0 %v902
  %3084 = vmatpush.bf16.msra.mxu0 %v899
  %3085 = vmatpush.bf16.msra.mxu0 %v896
  %3086 = vmatpush.bf16.msra.mxu0 %v893
  %3087 = vmatpush.bf16.msra.mxu0 %v890
  %3088 = vmatpush.bf16.msra.mxu0 %v887
  %3089 = vmatpush.bf16.msra.mxu0 %v884
  %3090 = vmatmul.bf16.gmra.mxu0 %v3053
  %v3091 = vpop.f32.mrf.mxu0
  %v3092 = vadd.f32 0.0, %v3091
  %v3093 = vpop.f32.mrf.mxu0
  %v3094 = vadd.f32 0.0, %v3093
  %3095 = vdwg.mxu0
  %v3096 = vadd.f32 %v3047, %v3064
  %v3097 = vadd.f32 %v3050, %v3066
  %v3098 = vxor.u32 %v3096, 2147483648
  %v3099 = vxor.u32 %v3097, 2147483648
  %v3100 = vmul.f32 %v3098, 1.442695
  %v3101 = vpow.pop %v3100
  %v3102 = vmul.f32 %v3099, 1.442695
  %v3103 = vpow.pop %v3102
  %v3104 = vadd.f32 %v3101, 1.0
  %v3105 = vadd.f32 %v3103, 1.0
  %v3106 = vrcp.pop %v3104
  %v3107 = vmul.f32 %v3104, %v3106
  %v3108 = vsub.f32 1.0, %v3107
  %v3109 = vmul.f32 %v3106, %v3108
  %v3110 = vadd.f32 %v3106, %v3109
  %vm3111 = vweird.f32 %v3104
  %vm3112 = vweird.f32 %v3106
  %vm3113 = vmor %vm3111, %vm3112
  %v3114 = vsel %vm3113, %v3106, %v3110
  %v3115 = vand.u32 2147483647, %v3104
  %vm3116 = vcmp.eq.f32.partialorder %v3115, 8.507059e+37
  %v3117 = vand.u32 %v3104, 2147483648
  %v3118 = vor.u32 1.1754944e-38, %v3117
  %v3119 = vsel %vm3116, %v3118, %v3114
  %v3120 = vmul.f32 1.0, %v3119
  %v3121 = vrcp.pop %v3105
  %v3122 = vmul.f32 %v3105, %v3121
  %v3123 = vsub.f32 1.0, %v3122
  %v3124 = vmul.f32 %v3121, %v3123
  %v3125 = vadd.f32 %v3121, %v3124
  %vm3126 = vweird.f32 %v3105
  %vm3127 = vweird.f32 %v3121
  %vm3128 = vmor %vm3126, %vm3127
  %v3129 = vsel %vm3128, %v3121, %v3125
  %v3130 = vand.u32 2147483647, %v3105
  %vm3131 = vcmp.eq.f32.partialorder %v3130, 8.507059e+37
  %v3132 = vand.u32 %v3105, 2147483648
  %v3133 = vor.u32 1.1754944e-38, %v3132
  %v3134 = vsel %vm3131, %v3133, %v3129
  %v3135 = vmul.f32 1.0, %v3134
  %v3136 = vadd.f32 %v3048, %v3078
  %v3137 = vadd.f32 %v3051, %v3080
  %v3138 = vxor.u32 %v3136, 2147483648
  %v3139 = vxor.u32 %v3137, 2147483648
  %v3140 = vmul.f32 %v3138, 1.442695
  %v3141 = vpow.pop %v3140
  %v3142 = vmul.f32 %v3139, 1.442695
  %v3143 = vpow.pop %v3142
  %v3144 = vadd.f32 %v3141, 1.0
  %v3145 = vadd.f32 %v3143, 1.0
  %v3146 = vrcp.pop %v3144
  %v3147 = vmul.f32 %v3144, %v3146
  %v3148 = vsub.f32 1.0, %v3147
  %v3149 = vmul.f32 %v3146, %v3148
  %v3150 = vadd.f32 %v3146, %v3149
  %vm3151 = vweird.f32 %v3144
  %vm3152 = vweird.f32 %v3146
  %vm3153 = vmor %vm3151, %vm3152
  %v3154 = vsel %vm3153, %v3146, %v3150
  %v3155 = vand.u32 2147483647, %v3144
  %vm3156 = vcmp.eq.f32.partialorder %v3155, 8.507059e+37
  %v3157 = vand.u32 %v3144, 2147483648
  %v3158 = vor.u32 1.1754944e-38, %v3157
  %v3159 = vsel %vm3156, %v3158, %v3154
  %v3160 = vmul.f32 1.0, %v3159
  %v3161 = vrcp.pop %v3145
  %v3162 = vmul.f32 %v3145, %v3161
  %v3163 = vsub.f32 1.0, %v3162
  %v3164 = vmul.f32 %v3161, %v3163
  %v3165 = vadd.f32 %v3161, %v3164
  %vm3166 = vweird.f32 %v3145
  %vm3167 = vweird.f32 %v3161
  %vm3168 = vmor %vm3166, %vm3167
  %v3169 = vsel %vm3168, %v3161, %v3165
  %v3170 = vand.u32 2147483647, %v3145
  %vm3171 = vcmp.eq.f32.partialorder %v3170, 8.507059e+37
  %v3172 = vand.u32 %v3145, 2147483648
  %v3173 = vor.u32 1.1754944e-38, %v3172
  %v3174 = vsel %vm3171, %v3173, %v3169
  %v3175 = vmul.f32 1.0, %v3174
  %v3176 = vadd.f32 %v3092, %v1053
  %v3177 = vadd.f32 %v3094, %v1053
  %v3178 = vmul.f32 %v3120, %v3176
  %v3179 = vmul.f32 %v3135, %v3177
  %v3180 = vadd.f32 %v3049, %v3178
  %v3181 = vadd.f32 %v3052, %v3179
  %v3182 = vtanh.pop %v3180
  %v3183 = vtanh.pop %v3181
  %v3184 = vsub.f32 %v2878, %v3182
  %v3185 = vsub.f32 %v2879, %v3183
  %v3186 = vmul.f32 %v3160, %v3184
  %v3187 = vmul.f32 %v3175, %v3185
  %v3188 = vadd.f32 %v3182, %v3186
  %v3189 = vadd.f32 %v3183, %v3187
  %s3190 = scalar_lea.vmem %s2, 96
  %v3191 = vld [vmem:[%s3190] sm:$0xff]
  %v3192 = vld [vmem:[%s3190 + $0x8] sm:$0xff]
  %vm3193 = vcmp.gt.f32.partialorder %v3191, 0.0
  %vm3194 = vcmp.gt.f32.partialorder %v3192, 0.0
  %v3195 = vsel %vm3193, 1, 0
  %v3196 = vsel %vm3194, 1, 0
  %3197 = vset.pattern.permute.xlu0 0
  %3198 = vperm.xlu0 %3197, %v3195
  %v3199 = vpop.permute.xlu0 %3198
  %3200 = vset.pattern.permute.xlu0 0
  %3201 = vperm.xlu0 %3200, %v3196
  %v3202 = vpop.permute.xlu0 %3201
  %vm3203 = vcmp.eq.s32.totalorder %v3199, 1
  %vm3204 = vcmp.eq.s32.totalorder %v3202, 1
  %v3205 = vsel %vm3203, %v3188, 0.0
  %v3206 = vsel %vm3204, %v3189, 0.0
  %s3207 = scalar_lea.vmem %s12, 96
  %3208 = vst [vmem:[%s3207] sm:$0xff] %v3205
  %3209 = vst [vmem:[%s3207 + $0x8] sm:$0xff] %v3206
  %v3210 = vsel %vm3203, %v3188, %v2878
  %v3211 = vsel %vm3204, %v3189, %v2879
  %s3212 = scalar_lea.vmem [#allocation3], 48
  %v3213 = vld [vmem:[%s3212] sm:$0xff]
  %v3214 = vld [vmem:[%s3212 + $0x8] sm:$0xff]
  %v3215 = vld [vmem:[%s3212 + $0x10] sm:$0xff]
  %v3216 = vld [vmem:[%s3212 + $0x18] sm:$0xff]
  %v3217 = vld [vmem:[%s3212 + $0x20] sm:$0xff]
  %v3218 = vld [vmem:[%s3212 + $0x28] sm:$0xff]
  %v3219 = vpack.c.bf16 %v3045, %v3044
  %3220 = vmatpush.bf16.msra.mxu0 %v1198
  %3221 = vmatpush.bf16.msra.mxu0 %v1195
  %3222 = vmatpush.bf16.msra.mxu0 %v1192
  %3223 = vmatpush.bf16.msra.mxu0 %v1189
  %3224 = vmatpush.bf16.msra.mxu0 %v1186
  %3225 = vmatpush.bf16.msra.mxu0 %v1183
  %3226 = vmatpush.bf16.msra.mxu0 %v1180
  %3227 = vmatpush.bf16.msra.mxu0 %v1177
  %3228 = vmatmul.bf16.gmra.mxu0 %v3219
  %v3229 = vpop.f32.mrf.mxu0
  %v3230 = vadd.f32 0.0, %v3229
  %v3231 = vpop.f32.mrf.mxu0
  %v3232 = vadd.f32 0.0, %v3231
  %3233 = vdwg.mxu0
  %3234 = vmatpush.bf16.msra.mxu0 %v1199
  %3235 = vmatpush.bf16.msra.mxu0 %v1196
  %3236 = vmatpush.bf16.msra.mxu0 %v1193
  %3237 = vmatpush.bf16.msra.mxu0 %v1190
  %3238 = vmatpush.bf16.msra.mxu0 %v1187
  %3239 = vmatpush.bf16.msra.mxu0 %v1184
  %3240 = vmatpush.bf16.msra.mxu0 %v1181
  %3241 = vmatpush.bf16.msra.mxu0 %v1178
  %3242 = vmatmul.bf16.gmra.mxu0 %v3219
  %v3243 = vpop.f32.mrf.mxu0
  %v3244 = vadd.f32 0.0, %v3243
  %v3245 = vpop.f32.mrf.mxu0
  %v3246 = vadd.f32 0.0, %v3245
  %3247 = vdwg.mxu0
  %3248 = vmatpush.bf16.msra.mxu0 %v1200
  %3249 = vmatpush.bf16.msra.mxu0 %v1197
  %3250 = vmatpush.bf16.msra.mxu0 %v1194
  %3251 = vmatpush.bf16.msra.mxu0 %v1191
  %3252 = vmatpush.bf16.msra.mxu0 %v1188
  %3253 = vmatpush.bf16.msra.mxu0 %v1185
  %3254 = vmatpush.bf16.msra.mxu0 %v1182
  %3255 = vmatpush.bf16.msra.mxu0 %v1179
  %3256 = vmatmul.bf16.gmra.mxu0 %v3219
  %v3257 = vpop.f32.mrf.mxu0
  %v3258 = vadd.f32 0.0, %v3257
  %v3259 = vpop.f32.mrf.mxu0
  %v3260 = vadd.f32 0.0, %v3259
  %3261 = vdwg.mxu0
  %v3262 = vadd.f32 %v3213, %v3230
  %v3263 = vadd.f32 %v3216, %v3232
  %v3264 = vxor.u32 %v3262, 2147483648
  %v3265 = vxor.u32 %v3263, 2147483648
  %v3266 = vmul.f32 %v3264, 1.442695
  %v3267 = vpow.pop %v3266
  %v3268 = vmul.f32 %v3265, 1.442695
  %v3269 = vpow.pop %v3268
  %v3270 = vadd.f32 %v3267, 1.0
  %v3271 = vadd.f32 %v3269, 1.0
  %v3272 = vrcp.pop %v3270
  %v3273 = vmul.f32 %v3270, %v3272
  %v3274 = vsub.f32 1.0, %v3273
  %v3275 = vmul.f32 %v3272, %v3274
  %v3276 = vadd.f32 %v3272, %v3275
  %vm3277 = vweird.f32 %v3270
  %vm3278 = vweird.f32 %v3272
  %vm3279 = vmor %vm3277, %vm3278
  %v3280 = vsel %vm3279, %v3272, %v3276
  %v3281 = vand.u32 2147483647, %v3270
  %vm3282 = vcmp.eq.f32.partialorder %v3281, 8.507059e+37
  %v3283 = vand.u32 %v3270, 2147483648
  %v3284 = vor.u32 1.1754944e-38, %v3283
  %v3285 = vsel %vm3282, %v3284, %v3280
  %v3286 = vmul.f32 1.0, %v3285
  %v3287 = vrcp.pop %v3271
  %v3288 = vmul.f32 %v3271, %v3287
  %v3289 = vsub.f32 1.0, %v3288
  %v3290 = vmul.f32 %v3287, %v3289
  %v3291 = vadd.f32 %v3287, %v3290
  %vm3292 = vweird.f32 %v3271
  %vm3293 = vweird.f32 %v3287
  %vm3294 = vmor %vm3292, %vm3293
  %v3295 = vsel %vm3294, %v3287, %v3291
  %v3296 = vand.u32 2147483647, %v3271
  %vm3297 = vcmp.eq.f32.partialorder %v3296, 8.507059e+37
  %v3298 = vand.u32 %v3271, 2147483648
  %v3299 = vor.u32 1.1754944e-38, %v3298
  %v3300 = vsel %vm3297, %v3299, %v3295
  %v3301 = vmul.f32 1.0, %v3300
  %v3302 = vadd.f32 %v3214, %v3244
  %v3303 = vadd.f32 %v3217, %v3246
  %v3304 = vxor.u32 %v3302, 2147483648
  %v3305 = vxor.u32 %v3303, 2147483648
  %v3306 = vmul.f32 %v3304, 1.442695
  %v3307 = vpow.pop %v3306
  %v3308 = vmul.f32 %v3305, 1.442695
  %v3309 = vpow.pop %v3308
  %v3310 = vadd.f32 %v3307, 1.0
  %v3311 = vadd.f32 %v3309, 1.0
  %v3312 = vrcp.pop %v3310
  %v3313 = vmul.f32 %v3310, %v3312
  %v3314 = vsub.f32 1.0, %v3313
  %v3315 = vmul.f32 %v3312, %v3314
  %v3316 = vadd.f32 %v3312, %v3315
  %vm3317 = vweird.f32 %v3310
  %vm3318 = vweird.f32 %v3312
  %vm3319 = vmor %vm3317, %vm3318
  %v3320 = vsel %vm3319, %v3312, %v3316
  %v3321 = vand.u32 2147483647, %v3310
  %vm3322 = vcmp.eq.f32.partialorder %v3321, 8.507059e+37
  %v3323 = vand.u32 %v3310, 2147483648
  %v3324 = vor.u32 1.1754944e-38, %v3323
  %v3325 = vsel %vm3322, %v3324, %v3320
  %v3326 = vmul.f32 1.0, %v3325
  %v3327 = vrcp.pop %v3311
  %v3328 = vmul.f32 %v3311, %v3327
  %v3329 = vsub.f32 1.0, %v3328
  %v3330 = vmul.f32 %v3327, %v3329
  %v3331 = vadd.f32 %v3327, %v3330
  %vm3332 = vweird.f32 %v3311
  %vm3333 = vweird.f32 %v3327
  %vm3334 = vmor %vm3332, %vm3333
  %v3335 = vsel %vm3334, %v3327, %v3331
  %v3336 = vand.u32 2147483647, %v3311
  %vm3337 = vcmp.eq.f32.partialorder %v3336, 8.507059e+37
  %v3338 = vand.u32 %v3311, 2147483648
  %v3339 = vor.u32 1.1754944e-38, %v3338
  %v3340 = vsel %vm3337, %v3339, %v3335
  %v3341 = vmul.f32 1.0, %v3340
  %v3342 = vadd.f32 %v3258, %v1348
  %v3343 = vadd.f32 %v3260, %v1348
  %v3344 = vmul.f32 %v3286, %v3342
  %v3345 = vmul.f32 %v3301, %v3343
  %v3346 = vadd.f32 %v3215, %v3344
  %v3347 = vadd.f32 %v3218, %v3345
  %v3348 = vtanh.pop %v3346
  %v3349 = vtanh.pop %v3347
  %v3350 = vsub.f32 %v3044, %v3348
  %v3351 = vsub.f32 %v3045, %v3349
  %v3352 = vmul.f32 %v3326, %v3350
  %v3353 = vmul.f32 %v3341, %v3351
  %v3354 = vadd.f32 %v3348, %v3352
  %v3355 = vadd.f32 %v3349, %v3353
  %s3356 = scalar_lea.vmem %s97, 16
  %v3357 = vld [vmem:[%s3356] sm:$0xff]
  %v3358 = vld [vmem:[%s3356 + $0x8] sm:$0xff]
  %vm3359 = vcmp.gt.f32.partialorder %v3357, 0.0
  %vm3360 = vcmp.gt.f32.partialorder %v3358, 0.0
  %v3361 = vsel %vm3359, 1, 0
  %v3362 = vsel %vm3360, 1, 0
  %3363 = vset.pattern.permute.xlu0 0
  %3364 = vperm.xlu0 %3363, %v3361
  %v3365 = vpop.permute.xlu0 %3364
  %3366 = vset.pattern.permute.xlu0 0
  %3367 = vperm.xlu0 %3366, %v3362
  %v3368 = vpop.permute.xlu0 %3367
  %vm3369 = vcmp.eq.s32.totalorder %v3365, 1
  %vm3370 = vcmp.eq.s32.totalorder %v3368, 1
  %v3371 = vsel %vm3369, %v3354, 0.0
  %v3372 = vsel %vm3370, %v3355, 0.0
  %s3373 = scalar_lea.vmem %s106, 16
  %3374 = vst [vmem:[%s3373] sm:$0xff] %v3371
  %3375 = vst [vmem:[%s3373 + $0x8] sm:$0xff] %v3372
  %v3376 = vsel %vm3369, %v3354, %v3044
  %v3377 = vsel %vm3370, %v3355, %v3045
  %s3378 = scalar_lea.vmem [#allocation2], 336
  %v3379 = vld [vmem:[%s3378] sm:$0xff]
  %v3380 = vld [vmem:[%s3378 + $0x8] sm:$0xff]
  %v3381 = vld [vmem:[%s3378 + $0x10] sm:$0xff]
  %v3382 = vld [vmem:[%s3378 + $0x18] sm:$0xff]
  %v3383 = vld [vmem:[%s3378 + $0x20] sm:$0xff]
  %v3384 = vld [vmem:[%s3378 + $0x28] sm:$0xff]
  %v3385 = vpack.c.bf16 %v3211, %v3210
  %3386 = vmatpush.bf16.msra.mxu0 %v903
  %3387 = vmatpush.bf16.msra.mxu0 %v900
  %3388 = vmatpush.bf16.msra.mxu0 %v897
  %3389 = vmatpush.bf16.msra.mxu0 %v894
  %3390 = vmatpush.bf16.msra.mxu0 %v891
  %3391 = vmatpush.bf16.msra.mxu0 %v888
  %3392 = vmatpush.bf16.msra.mxu0 %v885
  %3393 = vmatpush.bf16.msra.mxu0 %v882
  %3394 = vmatmul.bf16.gmra.mxu0 %v3385
  %v3395 = vpop.f32.mrf.mxu0
  %v3396 = vadd.f32 0.0, %v3395
  %v3397 = vpop.f32.mrf.mxu0
  %v3398 = vadd.f32 0.0, %v3397
  %3399 = vdwg.mxu0
  %3400 = vmatpush.bf16.msra.mxu0 %v904
  %3401 = vmatpush.bf16.msra.mxu0 %v901
  %3402 = vmatpush.bf16.msra.mxu0 %v898
  %3403 = vmatpush.bf16.msra.mxu0 %v895
  %3404 = vmatpush.bf16.msra.mxu0 %v892
  %3405 = vmatpush.bf16.msra.mxu0 %v889
  %3406 = vmatpush.bf16.msra.mxu0 %v886
  %3407 = vmatpush.bf16.msra.mxu0 %v883
  %3408 = vmatmul.bf16.gmra.mxu0 %v3385
  %v3409 = vpop.f32.mrf.mxu0
  %v3410 = vadd.f32 0.0, %v3409
  %v3411 = vpop.f32.mrf.mxu0
  %v3412 = vadd.f32 0.0, %v3411
  %3413 = vdwg.mxu0
  %3414 = vmatpush.bf16.msra.mxu0 %v905
  %3415 = vmatpush.bf16.msra.mxu0 %v902
  %3416 = vmatpush.bf16.msra.mxu0 %v899
  %3417 = vmatpush.bf16.msra.mxu0 %v896
  %3418 = vmatpush.bf16.msra.mxu0 %v893
  %3419 = vmatpush.bf16.msra.mxu0 %v890
  %3420 = vmatpush.bf16.msra.mxu0 %v887
  %3421 = vmatpush.bf16.msra.mxu0 %v884
  %3422 = vmatmul.bf16.gmra.mxu0 %v3385
  %v3423 = vpop.f32.mrf.mxu0
  %v3424 = vadd.f32 0.0, %v3423
  %v3425 = vpop.f32.mrf.mxu0
  %v3426 = vadd.f32 0.0, %v3425
  %3427 = vdwg.mxu0
  %v3428 = vadd.f32 %v3379, %v3396
  %v3429 = vadd.f32 %v3382, %v3398
  %v3430 = vxor.u32 %v3428, 2147483648
  %v3431 = vxor.u32 %v3429, 2147483648
  %v3432 = vmul.f32 %v3430, 1.442695
  %v3433 = vpow.pop %v3432
  %v3434 = vmul.f32 %v3431, 1.442695
  %v3435 = vpow.pop %v3434
  %v3436 = vadd.f32 %v3433, 1.0
  %v3437 = vadd.f32 %v3435, 1.0
  %v3438 = vrcp.pop %v3436
  %v3439 = vmul.f32 %v3436, %v3438
  %v3440 = vsub.f32 1.0, %v3439
  %v3441 = vmul.f32 %v3438, %v3440
  %v3442 = vadd.f32 %v3438, %v3441
  %vm3443 = vweird.f32 %v3436
  %vm3444 = vweird.f32 %v3438
  %vm3445 = vmor %vm3443, %vm3444
  %v3446 = vsel %vm3445, %v3438, %v3442
  %v3447 = vand.u32 2147483647, %v3436
  %vm3448 = vcmp.eq.f32.partialorder %v3447, 8.507059e+37
  %v3449 = vand.u32 %v3436, 2147483648
  %v3450 = vor.u32 1.1754944e-38, %v3449
  %v3451 = vsel %vm3448, %v3450, %v3446
  %v3452 = vmul.f32 1.0, %v3451
  %v3453 = vrcp.pop %v3437
  %v3454 = vmul.f32 %v3437, %v3453
  %v3455 = vsub.f32 1.0, %v3454
  %v3456 = vmul.f32 %v3453, %v3455
  %v3457 = vadd.f32 %v3453, %v3456
  %vm3458 = vweird.f32 %v3437
  %vm3459 = vweird.f32 %v3453
  %vm3460 = vmor %vm3458, %vm3459
  %v3461 = vsel %vm3460, %v3453, %v3457
  %v3462 = vand.u32 2147483647, %v3437
  %vm3463 = vcmp.eq.f32.partialorder %v3462, 8.507059e+37
  %v3464 = vand.u32 %v3437, 2147483648
  %v3465 = vor.u32 1.1754944e-38, %v3464
  %v3466 = vsel %vm3463, %v3465, %v3461
  %v3467 = vmul.f32 1.0, %v3466
  %v3468 = vadd.f32 %v3380, %v3410
  %v3469 = vadd.f32 %v3383, %v3412
  %v3470 = vxor.u32 %v3468, 2147483648
  %v3471 = vxor.u32 %v3469, 2147483648
  %v3472 = vmul.f32 %v3470, 1.442695
  %v3473 = vpow.pop %v3472
  %v3474 = vmul.f32 %v3471, 1.442695
  %v3475 = vpow.pop %v3474
  %v3476 = vadd.f32 %v3473, 1.0
  %v3477 = vadd.f32 %v3475, 1.0
  %v3478 = vrcp.pop %v3476
  %v3479 = vmul.f32 %v3476, %v3478
  %v3480 = vsub.f32 1.0, %v3479
  %v3481 = vmul.f32 %v3478, %v3480
  %v3482 = vadd.f32 %v3478, %v3481
  %vm3483 = vweird.f32 %v3476
  %vm3484 = vweird.f32 %v3478
  %vm3485 = vmor %vm3483, %vm3484
  %v3486 = vsel %vm3485, %v3478, %v3482
  %v3487 = vand.u32 2147483647, %v3476
  %vm3488 = vcmp.eq.f32.partialorder %v3487, 8.507059e+37
  %v3489 = vand.u32 %v3476, 2147483648
  %v3490 = vor.u32 1.1754944e-38, %v3489
  %v3491 = vsel %vm3488, %v3490, %v3486
  %v3492 = vmul.f32 1.0, %v3491
  %v3493 = vrcp.pop %v3477
  %v3494 = vmul.f32 %v3477, %v3493
  %v3495 = vsub.f32 1.0, %v3494
  %v3496 = vmul.f32 %v3493, %v3495
  %v3497 = vadd.f32 %v3493, %v3496
  %vm3498 = vweird.f32 %v3477
  %vm3499 = vweird.f32 %v3493
  %vm3500 = vmor %vm3498, %vm3499
  %v3501 = vsel %vm3500, %v3493, %v3497
  %v3502 = vand.u32 2147483647, %v3477
  %vm3503 = vcmp.eq.f32.partialorder %v3502, 8.507059e+37
  %v3504 = vand.u32 %v3477, 2147483648
  %v3505 = vor.u32 1.1754944e-38, %v3504
  %v3506 = vsel %vm3503, %v3505, %v3501
  %v3507 = vmul.f32 1.0, %v3506
  %v3508 = vadd.f32 %v3424, %v1053
  %v3509 = vadd.f32 %v3426, %v1053
  %v3510 = vmul.f32 %v3452, %v3508
  %v3511 = vmul.f32 %v3467, %v3509
  %v3512 = vadd.f32 %v3381, %v3510
  %v3513 = vadd.f32 %v3384, %v3511
  %v3514 = vtanh.pop %v3512
  %v3515 = vtanh.pop %v3513
  %v3516 = vsub.f32 %v3210, %v3514
  %v3517 = vsub.f32 %v3211, %v3515
  %v3518 = vmul.f32 %v3492, %v3516
  %v3519 = vmul.f32 %v3507, %v3517
  %v3520 = vadd.f32 %v3514, %v3518
  %v3521 = vadd.f32 %v3515, %v3519
  %s3522 = scalar_lea.vmem %s2, 112
  %v3523 = vld [vmem:[%s3522] sm:$0xff]
  %v3524 = vld [vmem:[%s3522 + $0x8] sm:$0xff]
  %vm3525 = vcmp.gt.f32.partialorder %v3523, 0.0
  %vm3526 = vcmp.gt.f32.partialorder %v3524, 0.0
  %v3527 = vsel %vm3525, 1, 0
  %v3528 = vsel %vm3526, 1, 0
  %3529 = vset.pattern.permute.xlu0 0
  %3530 = vperm.xlu0 %3529, %v3527
  %v3531 = vpop.permute.xlu0 %3530
  %3532 = vset.pattern.permute.xlu0 0
  %3533 = vperm.xlu0 %3532, %v3528
  %v3534 = vpop.permute.xlu0 %3533
  %vm3535 = vcmp.eq.s32.totalorder %v3531, 1
  %vm3536 = vcmp.eq.s32.totalorder %v3534, 1
  %v3537 = vsel %vm3535, %v3520, 0.0
  %v3538 = vsel %vm3536, %v3521, 0.0
  %s3539 = scalar_lea.vmem %s12, 112
  %3540 = vst [vmem:[%s3539] sm:$0xff] %v3537
  %3541 = vst [vmem:[%s3539 + $0x8] sm:$0xff] %v3538
  %v3542 = vsel %vm3535, %v3520, %v3210
  %v3543 = vsel %vm3536, %v3521, %v3211
  %v3544 = vld [vmem:[#allocation3] sm:$0xff]
  %v3545 = vld [vmem:[#allocation3 + $0x8] sm:$0xff]
  %v3546 = vld [vmem:[#allocation3 + $0x10] sm:$0xff]
  %v3547 = vld [vmem:[#allocation3 + $0x18] sm:$0xff]
  %v3548 = vld [vmem:[#allocation3 + $0x20] sm:$0xff]
  %v3549 = vld [vmem:[#allocation3 + $0x28] sm:$0xff]
  %v3550 = vpack.c.bf16 %v3377, %v3376
  %3551 = vmatpush.bf16.msra.mxu0 %v1198
  %3552 = vmatpush.bf16.msra.mxu0 %v1195
  %3553 = vmatpush.bf16.msra.mxu0 %v1192
  %3554 = vmatpush.bf16.msra.mxu0 %v1189
  %3555 = vmatpush.bf16.msra.mxu0 %v1186
  %3556 = vmatpush.bf16.msra.mxu0 %v1183
  %3557 = vmatpush.bf16.msra.mxu0 %v1180
  %3558 = vmatpush.bf16.msra.mxu0 %v1177
  %3559 = vmatmul.bf16.gmra.mxu0 %v3550
  %v3560 = vpop.f32.mrf.mxu0
  %v3561 = vadd.f32 0.0, %v3560
  %v3562 = vpop.f32.mrf.mxu0
  %v3563 = vadd.f32 0.0, %v3562
  %3564 = vdwg.mxu0
  %3565 = vmatpush.bf16.msra.mxu0 %v1199
  %3566 = vmatpush.bf16.msra.mxu0 %v1196
  %3567 = vmatpush.bf16.msra.mxu0 %v1193
  %3568 = vmatpush.bf16.msra.mxu0 %v1190
  %3569 = vmatpush.bf16.msra.mxu0 %v1187
  %3570 = vmatpush.bf16.msra.mxu0 %v1184
  %3571 = vmatpush.bf16.msra.mxu0 %v1181
  %3572 = vmatpush.bf16.msra.mxu0 %v1178
  %3573 = vmatmul.bf16.gmra.mxu0 %v3550
  %v3574 = vpop.f32.mrf.mxu0
  %v3575 = vadd.f32 0.0, %v3574
  %v3576 = vpop.f32.mrf.mxu0
  %v3577 = vadd.f32 0.0, %v3576
  %3578 = vdwg.mxu0
  %3579 = vmatpush.bf16.msra.mxu0 %v1200
  %3580 = vmatpush.bf16.msra.mxu0 %v1197
  %3581 = vmatpush.bf16.msra.mxu0 %v1194
  %3582 = vmatpush.bf16.msra.mxu0 %v1191
  %3583 = vmatpush.bf16.msra.mxu0 %v1188
  %3584 = vmatpush.bf16.msra.mxu0 %v1185
  %3585 = vmatpush.bf16.msra.mxu0 %v1182
  %3586 = vmatpush.bf16.msra.mxu0 %v1179
  %3587 = vmatmul.bf16.gmra.mxu0 %v3550
  %v3588 = vpop.f32.mrf.mxu0
  %v3589 = vadd.f32 0.0, %v3588
  %v3590 = vpop.f32.mrf.mxu0
  %v3591 = vadd.f32 0.0, %v3590
  %3592 = vdwg.mxu0
  %v3593 = vadd.f32 %v3544, %v3561
  %v3594 = vadd.f32 %v3547, %v3563
  %v3595 = vxor.u32 %v3593, 2147483648
  %v3596 = vxor.u32 %v3594, 2147483648
  %v3597 = vmul.f32 %v3595, 1.442695
  %v3598 = vpow.pop %v3597
  %v3599 = vmul.f32 %v3596, 1.442695
  %v3600 = vpow.pop %v3599
  %v3601 = vadd.f32 %v3598, 1.0
  %v3602 = vadd.f32 %v3600, 1.0
  %v3603 = vrcp.pop %v3601
  %v3604 = vmul.f32 %v3601, %v3603
  %v3605 = vsub.f32 1.0, %v3604
  %v3606 = vmul.f32 %v3603, %v3605
  %v3607 = vadd.f32 %v3603, %v3606
  %vm3608 = vweird.f32 %v3601
  %vm3609 = vweird.f32 %v3603
  %vm3610 = vmor %vm3608, %vm3609
  %v3611 = vsel %vm3610, %v3603, %v3607
  %v3612 = vand.u32 2147483647, %v3601
  %vm3613 = vcmp.eq.f32.partialorder %v3612, 8.507059e+37
  %v3614 = vand.u32 %v3601, 2147483648
  %v3615 = vor.u32 1.1754944e-38, %v3614
  %v3616 = vsel %vm3613, %v3615, %v3611
  %v3617 = vmul.f32 1.0, %v3616
  %v3618 = vrcp.pop %v3602
  %v3619 = vmul.f32 %v3602, %v3618
  %v3620 = vsub.f32 1.0, %v3619
  %v3621 = vmul.f32 %v3618, %v3620
  %v3622 = vadd.f32 %v3618, %v3621
  %vm3623 = vweird.f32 %v3602
  %vm3624 = vweird.f32 %v3618
  %vm3625 = vmor %vm3623, %vm3624
  %v3626 = vsel %vm3625, %v3618, %v3622
  %v3627 = vand.u32 2147483647, %v3602
  %vm3628 = vcmp.eq.f32.partialorder %v3627, 8.507059e+37
  %v3629 = vand.u32 %v3602, 2147483648
  %v3630 = vor.u32 1.1754944e-38, %v3629
  %v3631 = vsel %vm3628, %v3630, %v3626
  %v3632 = vmul.f32 1.0, %v3631
  %v3633 = vadd.f32 %v3545, %v3575
  %v3634 = vadd.f32 %v3548, %v3577
  %v3635 = vxor.u32 %v3633, 2147483648
  %v3636 = vxor.u32 %v3634, 2147483648
  %v3637 = vmul.f32 %v3635, 1.442695
  %v3638 = vpow.pop %v3637
  %v3639 = vmul.f32 %v3636, 1.442695
  %v3640 = vpow.pop %v3639
  %v3641 = vadd.f32 %v3638, 1.0
  %v3642 = vadd.f32 %v3640, 1.0
  %v3643 = vrcp.pop %v3641
  %v3644 = vmul.f32 %v3641, %v3643
  %v3645 = vsub.f32 1.0, %v3644
  %v3646 = vmul.f32 %v3643, %v3645
  %v3647 = vadd.f32 %v3643, %v3646
  %vm3648 = vweird.f32 %v3641
  %vm3649 = vweird.f32 %v3643
  %vm3650 = vmor %vm3648, %vm3649
  %v3651 = vsel %vm3650, %v3643, %v3647
  %v3652 = vand.u32 2147483647, %v3641
  %vm3653 = vcmp.eq.f32.partialorder %v3652, 8.507059e+37
  %v3654 = vand.u32 %v3641, 2147483648
  %v3655 = vor.u32 1.1754944e-38, %v3654
  %v3656 = vsel %vm3653, %v3655, %v3651
  %v3657 = vmul.f32 1.0, %v3656
  %v3658 = vrcp.pop %v3642
  %v3659 = vmul.f32 %v3642, %v3658
  %v3660 = vsub.f32 1.0, %v3659
  %v3661 = vmul.f32 %v3658, %v3660
  %v3662 = vadd.f32 %v3658, %v3661
  %vm3663 = vweird.f32 %v3642
  %vm3664 = vweird.f32 %v3658
  %vm3665 = vmor %vm3663, %vm3664
  %v3666 = vsel %vm3665, %v3658, %v3662
  %v3667 = vand.u32 2147483647, %v3642
  %vm3668 = vcmp.eq.f32.partialorder %v3667, 8.507059e+37
  %v3669 = vand.u32 %v3642, 2147483648
  %v3670 = vor.u32 1.1754944e-38, %v3669
  %v3671 = vsel %vm3668, %v3670, %v3666
  %v3672 = vmul.f32 1.0, %v3671
  %v3673 = vadd.f32 %v3589, %v1348
  %v3674 = vadd.f32 %v3591, %v1348
  %v3675 = vmul.f32 %v3617, %v3673
  %v3676 = vmul.f32 %v3632, %v3674
  %v3677 = vadd.f32 %v3546, %v3675
  %v3678 = vadd.f32 %v3549, %v3676
  %v3679 = vtanh.pop %v3677
  %v3680 = vtanh.pop %v3678
  %v3681 = vsub.f32 %v3376, %v3679
  %v3682 = vsub.f32 %v3377, %v3680
  %v3683 = vmul.f32 %v3657, %v3681
  %v3684 = vmul.f32 %v3672, %v3682
  %v3685 = vadd.f32 %v3679, %v3683
  %v3686 = vadd.f32 %v3680, %v3684
  %v3687 = vld [vmem:[%s97] sm:$0xff]
  %v3688 = vld [vmem:[%s97 + $0x8] sm:$0xff]
  %vm3689 = vcmp.gt.f32.partialorder %v3687, 0.0
  %vm3690 = vcmp.gt.f32.partialorder %v3688, 0.0
  %v3691 = vsel %vm3689, 1, 0
  %v3692 = vsel %vm3690, 1, 0
  %3693 = vset.pattern.permute.xlu0 0
  %3694 = vperm.xlu0 %3693, %v3691
  %v3695 = vpop.permute.xlu0 %3694
  %3696 = vset.pattern.permute.xlu0 0
  %3697 = vperm.xlu0 %3696, %v3692
  %v3698 = vpop.permute.xlu0 %3697
  %vm3699 = vcmp.eq.s32.totalorder %v3695, 1
  %vm3700 = vcmp.eq.s32.totalorder %v3698, 1
  %v3701 = vsel %vm3699, %v3685, 0.0
  %v3702 = vsel %vm3700, %v3686, 0.0
  %3703 = vst [vmem:[%s106] sm:$0xff] %v3701
  %3704 = vst [vmem:[%s106 + $0x8] sm:$0xff] %v3702
  %v3705 = vsel %vm3699, %v3685, %v3376
  %v3706 = vsel %vm3700, %v3686, %v3377
  %3707 = vst [vmem:[#allocation4] sm:$0xff] %v3542
  %3708 = vst [vmem:[#allocation4 + $0x8] sm:$0xff] %v3543
  %3709 = vst [vmem:[#allocation5] sm:$0xff] %v3705
  %3710 = vst [vmem:[#allocation5 + $0x8] sm:$0xff] %v3706
  %s3711 = ssub.s32 0, 0
  %s3712 = smul.u32 8, %s3711
  %p3713 = scmp.lt.s32.totalorder %s3712, 7
  %s3714 = scalar_select %p3713, %s3712, 7
  %s3715 = smul.addr %s3714, 2
  %s3716 = smul.addr %s3715, 8
  %s3717 = scalar_lea.vmem %s13, %s3716
  // Predicated region
  $region54: #{rnn_forward.1} parent=0 // pred_check
    _
  $region55: #{rnn_forward.1} parent=0 // pred_check_branch
    %3719 = sbr.rel (0) target = $region57
  $region56: #{rnn_forward.1} parent=0 // pred_region
    _
  $region57: #{rnn_forward.1} parent=0 // pred_fallthru
    _
  // Predicated region
  $region58: #{rnn_forward.1} parent=0 // pred_check
    _
  $region59: #{rnn_forward.1} parent=0 // pred_check_branch
    %3721 = sbr.rel (0) target = $region61
  $region60: #{rnn_forward.1} parent=0 // pred_region
    %s3722 = ssub.s32 0, 0
    %s3723 = smul.u32 8, %s3722
  $region61: #{rnn_forward.1} parent=0 // pred_fallthru
    _
  // Predicated region
  $region62: #{rnn_forward.1} parent=0 // pred_check
    _
  $region63: #{rnn_forward.1} parent=0 // pred_check_branch
    %3725 = sbr.rel (0) target = $region65
  $region64: #{rnn_forward.1} parent=0 // pred_region
    _
  $region65: #{rnn_forward.1} parent=0 // pred_fallthru
    _
  // Predicated region
  $region66: #{rnn_forward.1} parent=0 // pred_check
    _
  $region67: #{rnn_forward.1} parent=0 // pred_check_branch
    %3727 = sbr.rel (0) target = $region69
  $region68: #{rnn_forward.1} parent=0 // pred_region
    %s3728 = ssub.s32 0, 0
    %s3729 = smul.u32 8, %s3728
    %p3730 = scmp.lt.s32.totalorder %s3729, 7
    %s3731 = scalar_select %p3730, %s3729, 7
    %s3732 = smul.addr %s3731, 2
    %s3733 = smul.addr %s3732, 8
    %s3734 = scalar_lea.vmem %s13, %s3733
  $region69: #{rnn_forward.1} parent=0 // pred_fallthru
    _

</llo_original>
